<compile_context>
chip_gen: v5e
topology: v5e:2x2
jax: 0.10.0
libtpu: 0.0.40
codegen_flags: <defaults>
</compile_context>

<pallas_src>
import functools

import jax
import jax.numpy as jnp
from jax.experimental import pallas as pl
from jax.experimental.pallas import tpu as pltpu


_MXU_DTYPE = jnp.bfloat16          # matmul operand dtype (f32 accumulation)


def _round_up(x, m):
    return ((x + m - 1) // m) * m


@functools.lru_cache(maxsize=None)
def _vmem_limit_bytes():
    """~3/4 of physical VMEM (<=100 MiB): ~96 MiB on v5e/v6e, ~48 MiB on v7x."""
    cap = 64 * 1024 * 1024                       # conservative fallback
    try:
        info = pltpu.get_tpu_info()
        cap = int(getattr(info, "vmem_capacity_bytes", cap))
    except Exception:
        pass
    return int(min(cap * 3 // 4, 100 * 1024 * 1024))


def _target_tile_m():
    return 512 if _vmem_limit_bytes() >= 64 * 1024 * 1024 else 256


def _compiler_params(semantics):
    return pltpu.CompilerParams(dimension_semantics=semantics,
                                vmem_limit_bytes=_vmem_limit_bytes())


def _plan_tiles(M, target=None):
    """Token tiling: pad M up to a multiple of a large tile rather than
    shrinking the tile to whatever divides an awkward B*L."""
    if target is None:
        target = _target_tile_m()
    tm = min(target, _round_up(M, 8))
    # bound padding waste to <=1/8 of M by stepping the tile down in 8-row steps
    while tm > 8 and (_round_up(M, tm) - M) * 8 > M:
        tm -= 8
    M_pad = _round_up(M, tm)
    # give the second TensorCore (v7x) something to do on 1-step parallel axes
    if M_pad // tm == 1 and tm >= 16 and tm % 16 == 0:
        tm //= 2
    return tm, M_pad


def _pad_rows(x, M_pad):
    M = x.shape[0]
    if M_pad == M:
        return x
    return jnp.pad(x, ((0, M_pad - M), (0, 0)))


# ----------------------------- Pallas kernels -----------------------------

def _layernorm_f32(x, g, b):
    mu = jnp.mean(x, axis=-1, keepdims=True)
    var = jnp.mean(jnp.square(x - mu), axis=-1, keepdims=True)
    return (x - mu) * jax.lax.rsqrt(var + 1e-5) * g + b


def _patch_proj_kernel(x_ref, w_ref, b_ref, pos_ref, o_ref):
    """Patch projection + bias + positional embedding, one batch element/step."""
    x = x_ref[0].astype(_MXU_DTYPE)                  # (L, patch_dim)
    y = jnp.dot(x, w_ref[...], preferred_element_type=jnp.float32)
    o_ref[0] = (y + b_ref[...] + pos_ref[...]).astype(o_ref.dtype)


def patch_project(patches, w, b, pos):
    """patches: [B, L, C*p*p] f32; w pre-cast bf16; pos: [L, D] f32."""
    B, L, PD = patches.shape
    D = w.shape[1]
    cost = pl.CostEstimate(flops=2 * B * L * PD * D, transcendentals=0,
                           bytes_accessed=4 * B * L * (PD + D) + 2 * PD * D)
    return pl.pallas_call(
        _patch_proj_kernel,
        out_shape=jax.ShapeDtypeStruct((B, L, D), jnp.float32),
        grid=(B,),
        in_specs=[
            pl.BlockSpec((1, L, PD), lambda i: (i, 0, 0)),
            pl.BlockSpec((PD, D), lambda i: (0, 0)),   # resident weight
            pl.BlockSpec((1, D), lambda i: (0, 0)),
            pl.BlockSpec((L, D), lambda i: (0, 0)),    # resident pos-emb
        ],
        out_specs=pl.BlockSpec((1, L, D), lambda i: (i, 0, 0)),
        compiler_params=_compiler_params(("parallel",)),
        cost_estimate=cost,
    )(patches, w, b, pos)


def _ln_qkv_kernel(x_ref, g_ref, b_ref, w_ref, bias_ref, o_ref):
    """Fused LayerNorm + QKV projection; output stored in bfloat16."""
    x = x_ref[...]                                   # f32 residual stream
    xn = _layernorm_f32(x, g_ref[...], b_ref[...])
    y = jnp.dot(xn.astype(_MXU_DTYPE), w_ref[...],
                preferred_element_type=jnp.float32) + bias_ref[...]
    o_ref[...] = y.astype(o_ref.dtype)               # bf16 inter-kernel tensor


def ln_qkv(x, g, b, w, bias):
    M, K = x.shape
    N = w.shape[1]
    tm, M_pad = _plan_tiles(M)
    xp = _pad_rows(x, M_pad)
    cost = pl.CostEstimate(flops=2 * M * K * N + 8 * M * K, transcendentals=M,
                           bytes_accessed=4 * M * K + 2 * M * N + 2 * K * N)
    out = pl.pallas_call(
        _ln_qkv_kernel,
        out_shape=jax.ShapeDtypeStruct((M_pad, N), _MXU_DTYPE),
        grid=(M_pad // tm,),
        in_specs=[
            pl.BlockSpec((tm, K), lambda i: (i, 0)),
            pl.BlockSpec((1, K), lambda i: (0, 0)),
            pl.BlockSpec((1, K), lambda i: (0, 0)),
            pl.BlockSpec((K, N), lambda i: (0, 0)),   # resident weight
            pl.BlockSpec((1, N), lambda i: (0, 0)),
        ],
        out_specs=pl.BlockSpec((tm, N), lambda i: (i, 0)),
        compiler_params=_compiler_params(("parallel",)),
        cost_estimate=cost,
    )(xp, g, b, w, bias)
    return out if M_pad == M else out[:M]


def _ln_ffn_kernel(x_ref, g_ref, b_ref, w1_ref, b1_ref, w2_ref, b2_ref, o_ref):
    """Fused LayerNorm + MLP (Linear -> GELU -> Linear) + residual add."""
    x = x_ref[...]
    xn = _layernorm_f32(x, g_ref[...], b_ref[...])
    h = jnp.dot(xn.astype(_MXU_DTYPE), w1_ref[...],
                preferred_element_type=jnp.float32) + b1_ref[...]
    # TODO(synk): tanh-approx GELU (jax default); torch nn.GELU defaults to the
    # exact erf form — the `Transformer` submodule is not defined in the spec.
    h = jax.nn.gelu(h)
    y = jnp.dot(h.astype(_MXU_DTYPE), w2_ref[...],
                preferred_element_type=jnp.float32) + b2_ref[...]
    o_ref[...] = (y + x).astype(o_ref.dtype)


def ln_ffn(x, g, b, w1, b1, w2, b2):
    M, D = x.shape
    F = w1.shape[1]
    tm, M_pad = _plan_tiles(M)
    xp = _pad_rows(x, M_pad)
    cost = pl.CostEstimate(flops=4 * M * D * F, transcendentals=M * F,
                           bytes_accessed=8 * M * D + 4 * D * F)
    out = pl.pallas_call(
        _ln_ffn_kernel,
        out_shape=jax.ShapeDtypeStruct((M_pad, D), jnp.float32),
        grid=(M_pad // tm,),
        in_specs=[
            pl.BlockSpec((tm, D), lambda i: (i, 0)),
            pl.BlockSpec((1, D), lambda i: (0, 0)),
            pl.BlockSpec((1, D), lambda i: (0, 0)),
            pl.BlockSpec((D, F), lambda i: (0, 0)),   # resident weights
            pl.BlockSpec((1, F), lambda i: (0, 0)),
            pl.BlockSpec((F, D), lambda i: (0, 0)),
            pl.BlockSpec((1, D), lambda i: (0, 0)),
        ],
        out_specs=pl.BlockSpec((tm, D), lambda i: (i, 0)),
        compiler_params=_compiler_params(("parallel",)),
        cost_estimate=cost,
    )(xp, g, b, w1, b1, w2, b2)
    return out if M_pad == M else out[:M]


def _attn_kernel(qkv_ref, wo_ref, bo_ref, r_ref, o_ref, attn_sc, *,
                 num_heads, scale):
    """All heads of one batch element + output projection + residual add.

    Per-head attention outputs are written directly into a lane-dense (S, D)
    f32 VMEM scratch (no lane-narrow concatenate / relayouts)."""
    qkv = qkv_ref[0]                                 # (S, 3*D) bf16
    D = qkv.shape[1] // 3
    hd = D // num_heads
    for h in range(num_heads):                       # static unroll over heads
        q = qkv[:, h * hd:(h + 1) * hd]
        k = qkv[:, D + h * hd:D + (h + 1) * hd]
        v = qkv[:, 2 * D + h * hd:2 * D + (h + 1) * hd]
        s = jax.lax.dot_general(q, k, (((1,), (1,)), ((), ())),
                                preferred_element_type=jnp.float32) * scale
        m = jnp.max(s, axis=-1, keepdims=True)
        e = jnp.exp(s - m)
        denom = jnp.sum(e, axis=-1, keepdims=True)
        p = e * pl.reciprocal(denom, approx=True)    # EUP slot, not VALU divide
        attn_sc[:, h * hd:(h + 1) * hd] = jnp.dot(
            p.astype(_MXU_DTYPE), v, preferred_element_type=jnp.float32)
    y = jnp.dot(attn_sc[...].astype(_MXU_DTYPE), wo_ref[...],
                preferred_element_type=jnp.float32) + bo_ref[...]
    o_ref[0] = (y + r_ref[0]).astype(o_ref.dtype)


def attention_block(qkv, wo, bo, residual, num_heads, scale):
    """qkv: [B, S, 3D] bf16; residual: [B, S, D] f32."""
    B, S, D3 = qkv.shape
    D = D3 // 3
    hd = D // num_heads
    kern = functools.partial(_attn_kernel, num_heads=num_heads, scale=scale)
    cost = pl.CostEstimate(
        flops=4 * B * num_heads * S * S * hd + 2 * B * S * D * D,
        transcendentals=B * num_heads * S * S,
        bytes_accessed=2 * B * S * D3 + 8 * B * S * D + 2 * D * D)
    return pl.pallas_call(
        kern,
        out_shape=jax.ShapeDtypeStruct((B, S, D), jnp.float32),
        grid=(B,),
        in_specs=[
            pl.BlockSpec((1, S, D3), lambda b: (b, 0, 0)),
            pl.BlockSpec((D, D), lambda b: (0, 0)),   # resident weight
            pl.BlockSpec((1, D), lambda b: (0, 0)),
            pl.BlockSpec((1, S, D), lambda b: (b, 0, 0)),
        ],
        out_specs=pl.BlockSpec((1, S, D), lambda b: (b, 0, 0)),
        scratch_shapes=[pltpu.VMEM((S, D), jnp.float32)],
        compiler_params=_compiler_params(("parallel",)),
        cost_estimate=cost,
    )(qkv, wo, bo, residual)


def _pool_head_kernel(x_ref, w1_ref, b1_ref, w2_ref, b2_ref, o_ref):
    x = x_ref[...]                                   # (tb, S, D) f32
    pooled = jnp.mean(x, axis=1)                     # average pooling
    h = jnp.dot(pooled.astype(_MXU_DTYPE), w1_ref[...],
                preferred_element_type=jnp.float32) + b1_ref[...]
    h = jnp.maximum(h, 0.0)                          # ReLU
    y = jnp.dot(h.astype(_MXU_DTYPE), w2_ref[...],
                preferred_element_type=jnp.float32) + b2_ref[...]
    o_ref[...] = y.astype(o_ref.dtype)


def pool_head(x, w1, b1, w2p, b2p, num_classes):
    """Mean pool over tokens + Linear/ReLU/Linear head; class dim pre-padded."""
    B, S, D = x.shape
    n_pad = w2p.shape[1]
    tb = 8 if (B > 8 and B % 8 == 0) else B          # batch tiling when it helps
    out = pl.pallas_call(
        _pool_head_kernel,
        out_shape=jax.ShapeDtypeStruct((B, n_pad), jnp.float32),
        grid=(B // tb,),
        in_specs=[
            pl.BlockSpec((tb, S, D), lambda i: (i, 0, 0)),
            pl.BlockSpec((D, D), lambda i: (0, 0)),
            pl.BlockSpec((1, D), lambda i: (0, 0)),
            pl.BlockSpec((D, n_pad), lambda i: (0, 0)),
            pl.BlockSpec((1, n_pad), lambda i: (0, 0)),
        ],
        out_specs=pl.BlockSpec((tb, n_pad), lambda i: (i, 0)),
        compiler_params=_compiler_params(("parallel",)),
    )(x, w1, b1, w2p, b2p)
    return out[:, :num_classes]


# ------------------------------- glue (JAX) --------------------------------

def _unfold(x, p):
    # torch.nn.Unfold(kernel_size=p, stride=p) followed by .permute(0, 2, 1):
    # [B,C,H,W] -> [B, L, C*p*p]; per-patch features ordered (c, ki, kj),
    # patches in row-major order over the (H/p, W/p) grid (matches PyTorch).
    B, C, H, W = x.shape
    gh, gw = H // p, W // p
    x = x.reshape(B, C, gh, p, gw, p)
    x = x.transpose(0, 2, 4, 1, 3, 5)                # [B, gh, gw, C, p, p]
    return x.reshape(B, gh * gw, C * p * p)


def prepare_params(params, cfg):
    """One-time weight preparation (run OUTSIDE the traced forward):
    QKV weight fusion, bf16 pre-casts, bias reshapes, class-dim padding.
    Removes per-forward concat/cast HBM traffic between pallas_calls."""
    D = cfg["dim"]
    F = 4 * D
    N = cfg["num_classes"]
    n_pad = _round_up(N, 128)
    pos = params["pos_emb"]
    prep = {
        "proj_w": params["proj_w"].astype(_MXU_DTYPE),
        "proj_b": params["proj_b"].reshape(1, D).astype(jnp.float32),
        "pos_emb": pos.reshape(pos.shape[1], pos.shape[2]).astype(jnp.float32),
    }
    layers = []
    for lyr in params["layers"]:
        wqkv = jnp.concatenate([lyr["wq"], lyr["wk"], lyr["wv"]], axis=1)
        bqkv = jnp.concatenate([lyr["bq"], lyr["bk"], lyr["bv"]], axis=0)
        layers.append({
            "ln1_g": lyr["ln1_g"].reshape(1, D), "ln1_b": lyr["ln1_b"].reshape(1, D),
            "wqkv": wqkv.astype(_MXU_DTYPE), "bqkv": bqkv.reshape(1, 3 * D),
            "wo": lyr["wo"].astype(_MXU_DTYPE), "bo": lyr["bo"].reshape(1, D),
            "ln2_g": lyr["ln2_g"].reshape(1, D), "ln2_b": lyr["ln2_b"].reshape(1, D),
            "w1": lyr["w1"].astype(_MXU_DTYPE), "b1": lyr["b1"].reshape(1, F),
            "w2": lyr["w2"].astype(_MXU_DTYPE), "b2": lyr["b2"].reshape(1, D),
        })
    prep["layers"] = layers
    prep["hw1"] = params["hw1"].astype(_MXU_DTYPE)
    prep["hb1"] = params["hb1"].reshape(1, D).astype(jnp.float32)
    hw2 = jnp.zeros((D, n_pad), jnp.float32).at[:, :N].set(params["hw2"])
    hb2 = jnp.zeros((1, n_pad), jnp.float32).at[:, :N].set(params["hb2"].reshape(1, N))
    prep["hw2"] = hw2.astype(_MXU_DTYPE)
    prep["hb2"] = hb2
    return prep


def vit_forward(x, prep, cfg):
    B = x.shape[0]
    p, D, NH = cfg["patch"], cfg["dim"], cfg["heads"]
    HD = D // NH
    patches = _unfold(x, p)                          # [B, L, C*p*p]
    L = patches.shape[1]

    # patch projection + bias + positional embedding, fused in one kernel
    h = patch_project(patches, prep["proj_w"], prep["proj_b"], prep["pos_emb"])
    h = h.reshape(B * L, D)                          # f32 residual stream

    # TODO(synk): the `Transformer` submodule is not defined in the source file;
    # implemented as a standard pre-LN encoder (MHA + GELU MLP, hidden 4*D),
    # dropout treated as 0 (inference).
    scale = 1.0 / (HD ** 0.5)
    for lyr in prep["layers"]:
        # fused LN + Q|K|V matmul, bf16 intermediate
        qkv = ln_qkv(h, lyr["ln1_g"], lyr["ln1_b"], lyr["wqkv"], lyr["bqkv"])

        # attention (all heads per batch element) + out-proj + residual;
        # reshapes below are free (row-major views)
        h = attention_block(qkv.reshape(B, L, 3 * D), lyr["wo"], lyr["bo"],
                            h.reshape(B, L, D), NH, scale).reshape(B * L, D)

        # fused LN + FFN (both matmuls, GELU) + residual
        h = ln_ffn(h, lyr["ln2_g"], lyr["ln2_b"],
                   lyr["w1"], lyr["b1"], lyr["w2"], lyr["b2"])

    # pooling_type == 'average' + main_mlp head (Linear -> ReLU -> Linear)
    return pool_head(h.reshape(B, L, D), prep["hw1"], prep["hb1"],
                     prep["hw2"], prep["hb2"], cfg["num_classes"])


def vit_reference(x, params, cfg):
    """Pure-JAX reference for correctness check (uses raw params)."""
    B = x.shape[0]
    p, D, NH = cfg["patch"], cfg["dim"], cfg["heads"]
    HD = D // NH
    patches = _unfold(x, p)
    L = patches.shape[1]
    h = patches @ params["proj_w"] + params["proj_b"] + params["pos_emb"]
    scale = 1.0 / (HD ** 0.5)

    def ln(t, g, b):
        mu = jnp.mean(t, axis=-1, keepdims=True)
        var = jnp.mean(jnp.square(t - mu), axis=-1, keepdims=True)
        return (t - mu) * jax.lax.rsqrt(var + 1e-5) * g + b

    for lyr in params["layers"]:
        hn = ln(h, lyr["ln1_g"], lyr["ln1_b"])
        q = (hn @ lyr["wq"] + lyr["bq"]).reshape(B, L, NH, HD).transpose(0, 2, 1, 3)
        k = (hn @ lyr["wk"] + lyr["bk"]).reshape(B, L, NH, HD).transpose(0, 2, 1, 3)
        v = (hn @ lyr["wv"] + lyr["bv"]).reshape(B, L, NH, HD).transpose(0, 2, 1, 3)
        s = jnp.einsum("bhqd,bhkd->bhqk", q, k) * scale
        a = jax.nn.softmax(s, axis=-1)
        o = jnp.einsum("bhqk,bhkd->bhqd", a, v).transpose(0, 2, 1, 3).reshape(B, L, D)
        h = o @ lyr["wo"] + lyr["bo"] + h
        hn2 = ln(h, lyr["ln2_g"], lyr["ln2_b"])
        ff = jax.nn.gelu(hn2 @ lyr["w1"] + lyr["b1"])
        h = ff @ lyr["w2"] + lyr["b2"] + h
    pooled = jnp.mean(h, axis=1)
    y = jnp.maximum(pooled @ params["hw1"] + params["hb1"], 0.0)
    return y @ params["hw2"] + params["hb2"]


# ------------------------------ parameters ---------------------------------

def init_params(key, cfg):
    C, H, W = cfg["image_shape"]
    p, D = cfg["patch"], cfg["dim"]
    L = (H // p) * (W // p)
    F = 4 * D
    patch_dim = C * p * p
    keys = iter(jax.random.split(key, 64))

    def lin_init(k, fan_in, fan_out):
        k1, k2 = jax.random.split(k)
        bound = 1.0 / (fan_in ** 0.5)
        w = jax.random.uniform(k1, (fan_in, fan_out), jnp.float32, -bound, bound)
        b = jax.random.uniform(k2, (fan_out,), jnp.float32, -bound, bound)
        return w, b

    params = {}
    params["proj_w"], params["proj_b"] = lin_init(next(keys), patch_dim, D)
    params["pos_emb"] = jax.random.uniform(next(keys), (1, L, D), jnp.float32)  # ~torch.rand
    layers = []
    for _ in range(cfg["layers"]):
        lyr = {"ln1_g": jnp.ones((D,), jnp.float32), "ln1_b": jnp.zeros((D,), jnp.float32),
               "ln2_g": jnp.ones((D,), jnp.float32), "ln2_b": jnp.zeros((D,), jnp.float32)}
        lyr["wq"], lyr["bq"] = lin_init(next(keys), D, D)
        lyr["wk"], lyr["bk"] = lin_init(next(keys), D, D)
        lyr["wv"], lyr["bv"] = lin_init(next(keys), D, D)
        lyr["wo"], lyr["bo"] = lin_init(next(keys), D, D)
        lyr["w1"], lyr["b1"] = lin_init(next(keys), D, F)
        lyr["w2"], lyr["b2"] = lin_init(next(keys), F, D)
        layers.append(lyr)
    params["layers"] = layers
    params["hw1"], params["hb1"] = lin_init(next(keys), D, D)
    params["hw2"], params["hb2"] = lin_init(next(keys), D, cfg["num_classes"])
    return params


# --------------------------------- main -------------------------------------

if __name__ == "__main__":
    # D=128 keeps the demo lane-dense (feedback: avoid sub-128-lane stores)
    # while staying small: 3x16x16 image, 4x4 patches -> 16 tokens.
    cfg = dict(image_shape=(3, 16, 16), patch=4, layers=2, dim=128, heads=4,
               num_classes=10, pooling_type="average")
    key = jax.random.PRNGKey(0)
    kp, kx = jax.random.split(key)
    params = init_params(kp, cfg)
    prep = prepare_params(params, cfg)   # one-time weight fusion / bf16 casts

    B = 2
    x = jax.random.normal(kx, (B, *cfg["image_shape"]), jnp.float32)

    fwd = jax.jit(functools.partial(vit_forward, cfg=cfg))
    out = jax.block_until_ready(fwd(x, prep))

    ref = vit_reference(x, params, cfg)
    assert out.shape == (B, cfg["num_classes"]), out.shape
    assert bool(jnp.all(jnp.isfinite(out)))
    assert bool(jnp.allclose(out, ref, rtol=5e-2, atol=5e-2)), (
        f"max abs diff {float(jnp.max(jnp.abs(out - ref)))}")
    print("KERNEL_OK")
</pallas_src>

<mosaic_0001>
module attributes {stable_mosaic.version = 11 : i64} {
  func.func @_patch_proj_kernel(%arg0: i32, %arg1: memref<1x16x48xf32, #tpu.memory_space<vmem>>, %arg2: memref<48x128xbf16, #tpu.memory_space<vmem>>, %arg3: memref<1x128xf32, #tpu.memory_space<vmem>>, %arg4: memref<16x128xf32, #tpu.memory_space<vmem>>, %arg5: memref<1x16x128xf32, #tpu.memory_space<vmem>>) attributes {dimension_semantics = [#tpu.dimension_semantics<parallel>], iteration_bounds = array<i64: 2>, scalar_prefetch = 0 : i64, scratch_operands = 0 : i64, tpu.core_type = #tpu.core_type<tc>, window_params = [{transform_indices = @transform_0, window_bounds = array<i64: 1, 16, 48>}, {pipeline_mode = #tpu.pipeline_mode<synchronous>, transform_indices = @transform_1, window_bounds = array<i64: 48, 128>}, {pipeline_mode = #tpu.pipeline_mode<synchronous>, transform_indices = @transform_2, window_bounds = array<i64: 1, 128>}, {pipeline_mode = #tpu.pipeline_mode<synchronous>, transform_indices = @transform_3, window_bounds = array<i64: 16, 128>}, {transform_indices = @transform_4, window_bounds = array<i64: 1, 16, 128>}]} {
    %c0 = arith.constant 0 : index
    %c0_0 = arith.constant 0 : index
    %c0_1 = arith.constant 0 : index
    %0 = vector.load %arg1[%c0, %c0_0, %c0_1] : memref<1x16x48xf32, #tpu.memory_space<vmem>>, vector<1x16x48xf32>
    %1 = vector.shape_cast %0 : vector<1x16x48xf32> to vector<16x48xf32>
    %2 = arith.truncf %1 : vector<16x48xf32> to vector<16x48xbf16>
    %c0_2 = arith.constant 0 : index
    %c0_3 = arith.constant 0 : index
    %3 = vector.load %arg2[%c0_2, %c0_3] : memref<48x128xbf16, #tpu.memory_space<vmem>>, vector<48x128xbf16>
    %cst = arith.constant dense<0.000000e+00> : vector<16x128xf32>
    %4 = tpu.matmul %2, %3, %cst {dimension_numbers = #tpu.dot_dimension_numbers<[1], [0], [0], [1], [0, 0, 1, 1], [], []>} : vector<16x48xbf16>, vector<48x128xbf16>, vector<16x128xf32> -> vector<16x128xf32>
    %c0_4 = arith.constant 0 : index
    %c0_5 = arith.constant 0 : index
    %5 = vector.load %arg3[%c0_4, %c0_5] : memref<1x128xf32, #tpu.memory_space<vmem>>, vector<1x128xf32>
    %6 = vector.broadcast %5 : vector<1x128xf32> to vector<16x128xf32>
    %7 = arith.addf %4, %6 : vector<16x128xf32>
    %c0_6 = arith.constant 0 : index
    %c0_7 = arith.constant 0 : index
    %8 = vector.load %arg4[%c0_6, %c0_7] : memref<16x128xf32, #tpu.memory_space<vmem>>, vector<16x128xf32>
    %9 = arith.addf %7, %8 : vector<16x128xf32>
    %c0_8 = arith.constant 0 : index
    %c0_9 = arith.constant 0 : index
    %c0_10 = arith.constant 0 : index
    %10 = vector.load %arg5[%c0_8, %c0_9, %c0_10] : memref<1x16x128xf32, #tpu.memory_space<vmem>>, vector<1x16x128xf32>
    %11 = vector.shape_cast %10 : vector<1x16x128xf32> to vector<16x128xf32>
    %12 = vector.shape_cast %9 : vector<16x128xf32> to vector<1x16x128xf32>
    tpu.vector_store %arg5[%c0_8, %c0_9, %c0_10], %12 {strides = array<i32>} : memref<1x16x128xf32, #tpu.memory_space<vmem>>, vector<1x16x128xf32>,
    return
  }
  func.func @transform_0(%arg0: i32) -> (i32, i32, i32) {
    %c0_i32 = arith.constant 0 : i32
    %c0_i32_0 = arith.constant 0 : i32
    %c0_i32_1 = arith.constant 0 : i32
    return %arg0, %c0_i32, %c0_i32_0 : i32, i32, i32
  }
  func.func @transform_1(%arg0: i32) -> (i32, i32) {
    %c0_i32 = arith.constant 0 : i32
    %c0_i32_0 = arith.constant 0 : i32
    %c0_i32_1 = arith.constant 0 : i32
    return %c0_i32, %c0_i32_0 : i32, i32
  }
  func.func @transform_2(%arg0: i32) -> (i32, i32) {
    %c0_i32 = arith.constant 0 : i32
    %c0_i32_0 = arith.constant 0 : i32
    %c0_i32_1 = arith.constant 0 : i32
    return %c0_i32, %c0_i32_0 : i32, i32
  }
  func.func @transform_3(%arg0: i32) -> (i32, i32) {
    %c0_i32 = arith.constant 0 : i32
    %c0_i32_0 = arith.constant 0 : i32
    %c0_i32_1 = arith.constant 0 : i32
    return %c0_i32, %c0_i32_0 : i32, i32
  }
  func.func @transform_4(%arg0: i32) -> (i32, i32, i32) {
    %c0_i32 = arith.constant 0 : i32
    %c0_i32_0 = arith.constant 0 : i32
    %c0_i32_1 = arith.constant 0 : i32
    return %arg0, %c0_i32, %c0_i32_0 : i32, i32, i32
  }
}

module attributes {stable_mosaic.version = 11 : i64} {
  func.func @_ln_ffn_kernel(%arg0: i32, %arg1: memref<16x128xf32, #tpu.memory_space<vmem>>, %arg2: memref<1x128xf32, #tpu.memory_space<vmem>>, %arg3: memref<1x128xf32, #tpu.memory_space<vmem>>, %arg4: memref<128x512xbf16, #tpu.memory_space<vmem>>, %arg5: memref<1x512xf32, #tpu.memory_space<vmem>>, %arg6: memref<512x128xbf16, #tpu.memory_space<vmem>>, %arg7: memref<1x128xf32, #tpu.memory_space<vmem>>, %arg8: memref<16x128xf32, #tpu.memory_space<vmem>>) attributes {dimension_semantics = [#tpu.dimension_semantics<parallel>], iteration_bounds = array<i64: 2>, scalar_prefetch = 0 : i64, scratch_operands = 0 : i64, tpu.core_type = #tpu.core_type<tc>, window_params = [{transform_indices = @transform_0, window_bounds = array<i64: 16, 128>}, {pipeline_mode = #tpu.pipeline_mode<synchronous>, transform_indices = @transform_1, window_bounds = array<i64: 1, 128>}, {pipeline_mode = #tpu.pipeline_mode<synchronous>, transform_indices = @transform_2, window_bounds = array<i64: 1, 128>}, {pipeline_mode = #tpu.pipeline_mode<synchronous>, transform_indices = @transform_3, window_bounds = array<i64: 128, 512>}, {pipeline_mode = #tpu.pipeline_mode<synchronous>, transform_indices = @transform_4, window_bounds = array<i64: 1, 512>}, {pipeline_mode = #tpu.pipeline_mode<synchronous>, transform_indices = @transform_5, window_bounds = array<i64: 512, 128>}, {pipeline_mode = #tpu.pipeline_mode<synchronous>, transform_indices = @transform_6, window_bounds = array<i64: 1, 128>}, {transform_indices = @transform_7, window_bounds = array<i64: 16, 128>}]} {
    %c0 = arith.constant 0 : index
    %c0_0 = arith.constant 0 : index
    %0 = vector.load %arg1[%c0, %c0_0] : memref<16x128xf32, #tpu.memory_space<vmem>>, vector<16x128xf32>
    %c0_1 = arith.constant 0 : index
    %c0_2 = arith.constant 0 : index
    %1 = vector.load %arg2[%c0_1, %c0_2] : memref<1x128xf32, #tpu.memory_space<vmem>>, vector<1x128xf32>
    %c0_3 = arith.constant 0 : index
    %c0_4 = arith.constant 0 : index
    %2 = vector.load %arg3[%c0_3, %c0_4] : memref<1x128xf32, #tpu.memory_space<vmem>>, vector<1x128xf32>
    %cst = arith.constant dense<0.000000e+00> : vector<16xf32>
    %3 = vector.multi_reduction <add>, %0, %cst [1] : vector<16x128xf32> to vector<16xf32>
    %4 = vector.shape_cast %3 : vector<16xf32> to vector<16x1xf32>
    %cst_5 = arith.constant 1.280000e+02 : f32
    %5 = vector.broadcast %cst_5 : f32 to vector<16x1xf32>
    %6 = arith.divf %4, %5 : vector<16x1xf32>
    %7 = vector.broadcast %6 : vector<16x1xf32> to vector<16x128xf32>
    %8 = arith.subf %0, %7 : vector<16x128xf32>
    %9 = arith.mulf %8, %8 : vector<16x128xf32>
    %cst_6 = arith.constant dense<0.000000e+00> : vector<16xf32>
    %10 = vector.multi_reduction <add>, %9, %cst_6 [1] : vector<16x128xf32> to vector<16xf32>
    %11 = vector.shape_cast %10 : vector<16xf32> to vector<16x1xf32>
    %cst_7 = arith.constant 1.280000e+02 : f32
    %12 = vector.broadcast %cst_7 : f32 to vector<16x1xf32>
    %13 = arith.divf %11, %12 : vector<16x1xf32>
    %14 = vector.broadcast %6 : vector<16x1xf32> to vector<16x128xf32>
    %15 = arith.subf %0, %14 : vector<16x128xf32>
    %cst_8 = arith.constant 9.99999974E-6 : f32
    %16 = vector.broadcast %cst_8 : f32 to vector<16x1xf32>
    %17 = arith.addf %13, %16 : vector<16x1xf32>
    %18 = math.rsqrt %17 : vector<16x1xf32>
    %19 = vector.broadcast %18 : vector<16x1xf32> to vector<16x128xf32>
    %20 = arith.mulf %15, %19 : vector<16x128xf32>
    %21 = vector.broadcast %1 : vector<1x128xf32> to vector<16x128xf32>
    %22 = arith.mulf %20, %21 : vector<16x128xf32>
    %23 = vector.broadcast %2 : vector<1x128xf32> to vector<16x128xf32>
    %24 = arith.addf %22, %23 : vector<16x128xf32>
    %25 = arith.truncf %24 : vector<16x128xf32> to vector<16x128xbf16>
    %c0_9 = arith.constant 0 : index
    %c0_10 = arith.constant 0 : index
    %26 = vector.load %arg4[%c0_9, %c0_10] : memref<128x512xbf16, #tpu.memory_space<vmem>>, vector<128x512xbf16>
    %cst_11 = arith.constant dense<0.000000e+00> : vector<16x512xf32>
    %27 = tpu.matmul %25, %26, %cst_11 {dimension_numbers = #tpu.dot_dimension_numbers<[1], [0], [0], [1], [0, 0, 1, 1], [], []>} : vector<16x128xbf16>, vector<128x512xbf16>, vector<16x512xf32> -> vector<16x512xf32>
    %c0_12 = arith.constant 0 : index
    %c0_13 = arith.constant 0 : index
    %28 = vector.load %arg5[%c0_12, %c0_13] : memref<1x512xf32, #tpu.memory_space<vmem>>, vector<1x512xf32>
    %29 = vector.broadcast %28 : vector<1x512xf32> to vector<16x512xf32>
    %30 = arith.addf %27, %29 : vector<16x512xf32>
    %31 = arith.mulf %30, %30 : vector<16x512xf32>
    %32 = arith.mulf %30, %31 : vector<16x512xf32>
    %cst_14 = arith.constant 4.471500e-02 : f32
    %33 = vector.broadcast %cst_14 : f32 to vector<16x512xf32>
    %34 = arith.mulf %33, %32 : vector<16x512xf32>
    %35 = arith.addf %30, %34 : vector<16x512xf32>
    %cst_15 = arith.constant 0.797884583 : f32
    %36 = vector.broadcast %cst_15 : f32 to vector<16x512xf32>
    %37 = arith.mulf %36, %35 : vector<16x512xf32>
    %38 = math.tanh %37 : vector<16x512xf32>
    %cst_16 = arith.constant 1.000000e+00 : f32
    %39 = vector.broadcast %cst_16 : f32 to vector<16x512xf32>
    %40 = arith.addf %39, %38 : vector<16x512xf32>
    %cst_17 = arith.constant 5.000000e-01 : f32
    %41 = vector.broadcast %cst_17 : f32 to vector<16x512xf32>
    %42 = arith.mulf %41, %40 : vector<16x512xf32>
    %43 = arith.mulf %30, %42 : vector<16x512xf32>
    %44 = arith.truncf %43 : vector<16x512xf32> to vector<16x512xbf16>
    %c0_18 = arith.constant 0 : index
    %c0_19 = arith.constant 0 : index
    %45 = vector.load %arg6[%c0_18, %c0_19] : memref<512x128xbf16, #tpu.memory_space<vmem>>, vector<512x128xbf16>
    %cst_20 = arith.constant dense<0.000000e+00> : vector<16x128xf32>
    %46 = tpu.matmul %44, %45, %cst_20 {dimension_numbers = #tpu.dot_dimension_numbers<[1], [0], [0], [1], [0, 0, 1, 1], [], []>} : vector<16x512xbf16>, vector<512x128xbf16>, vector<16x128xf32> -> vector<16x128xf32>
    %c0_21 = arith.constant 0 : index
    %c0_22 = arith.constant 0 : index
    %47 = vector.load %arg7[%c0_21, %c0_22] : memref<1x128xf32, #tpu.memory_space<vmem>>, vector<1x128xf32>
    %48 = vector.broadcast %47 : vector<1x128xf32> to vector<16x128xf32>
    %49 = arith.addf %46, %48 : vector<16x128xf32>
    %50 = arith.addf %49, %0 : vector<16x128xf32>
    %c0_23 = arith.constant 0 : index
    %c0_24 = arith.constant 0 : index
    %51 = vector.load %arg8[%c0_23, %c0_24] : memref<16x128xf32, #tpu.memory_space<vmem>>, vector<16x128xf32>
    tpu.vector_store %arg8[%c0_23, %c0_24], %50 {strides = array<i32>} : memref<16x128xf32, #tpu.memory_space<vmem>>, vector<16x128xf32>,
    return
  }
  func.func @transform_0(%arg0: i32) -> (i32, i32) {
    %c0_i32 = arith.constant 0 : i32
    %c0_i32_0 = arith.constant 0 : i32
    return %arg0, %c0_i32 : i32, i32
  }
  func.func @transform_1(%arg0: i32) -> (i32, i32) {
    %c0_i32 = arith.constant 0 : i32
    %c0_i32_0 = arith.constant 0 : i32
    %c0_i32_1 = arith.constant 0 : i32
    return %c0_i32, %c0_i32_0 : i32, i32
  }
  func.func @transform_2(%arg0: i32) -> (i32, i32) {
    %c0_i32 = arith.constant 0 : i32
    %c0_i32_0 = arith.constant 0 : i32
    %c0_i32_1 = arith.constant 0 : i32
    return %c0_i32, %c0_i32_0 : i32, i32
  }
  func.func @transform_3(%arg0: i32) -> (i32, i32) {
    %c0_i32 = arith.constant 0 : i32
    %c0_i32_0 = arith.constant 0 : i32
    %c0_i32_1 = arith.constant 0 : i32
    return %c0_i32, %c0_i32_0 : i32, i32
  }
  func.func @transform_4(%arg0: i32) -> (i32, i32) {
    %c0_i32 = arith.constant 0 : i32
    %c0_i32_0 = arith.constant 0 : i32
    %c0_i32_1 = arith.constant 0 : i32
    return %c0_i32, %c0_i32_0 : i32, i32
  }
  func.func @transform_5(%arg0: i32) -> (i32, i32) {
    %c0_i32 = arith.constant 0 : i32
    %c0_i32_0 = arith.constant 0 : i32
    %c0_i32_1 = arith.constant 0 : i32
    return %c0_i32, %c0_i32_0 : i32, i32
  }
  func.func @transform_6(%arg0: i32) -> (i32, i32) {
    %c0_i32 = arith.constant 0 : i32
    %c0_i32_0 = arith.constant 0 : i32
    %c0_i32_1 = arith.constant 0 : i32
    return %c0_i32, %c0_i32_0 : i32, i32
  }
  func.func @transform_7(%arg0: i32) -> (i32, i32) {
    %c0_i32 = arith.constant 0 : i32
    %c0_i32_0 = arith.constant 0 : i32
    return %arg0, %c0_i32 : i32, i32
  }
}

module attributes {stable_mosaic.version = 11 : i64} {
  func.func @_ln_qkv_kernel(%arg0: i32, %arg1: memref<16x128xf32, #tpu.memory_space<vmem>>, %arg2: memref<1x128xf32, #tpu.memory_space<vmem>>, %arg3: memref<1x128xf32, #tpu.memory_space<vmem>>, %arg4: memref<128x384xbf16, #tpu.memory_space<vmem>>, %arg5: memref<1x384xf32, #tpu.memory_space<vmem>>, %arg6: memref<16x384xbf16, #tpu.memory_space<vmem>>) attributes {dimension_semantics = [#tpu.dimension_semantics<parallel>], iteration_bounds = array<i64: 2>, scalar_prefetch = 0 : i64, scratch_operands = 0 : i64, tpu.core_type = #tpu.core_type<tc>, window_params = [{transform_indices = @transform_0, window_bounds = array<i64: 16, 128>}, {pipeline_mode = #tpu.pipeline_mode<synchronous>, transform_indices = @transform_1, window_bounds = array<i64: 1, 128>}, {pipeline_mode = #tpu.pipeline_mode<synchronous>, transform_indices = @transform_2, window_bounds = array<i64: 1, 128>}, {pipeline_mode = #tpu.pipeline_mode<synchronous>, transform_indices = @transform_3, window_bounds = array<i64: 128, 384>}, {pipeline_mode = #tpu.pipeline_mode<synchronous>, transform_indices = @transform_4, window_bounds = array<i64: 1, 384>}, {transform_indices = @transform_5, window_bounds = array<i64: 16, 384>}]} {
    %c0 = arith.constant 0 : index
    %c0_0 = arith.constant 0 : index
    %0 = vector.load %arg1[%c0, %c0_0] : memref<16x128xf32, #tpu.memory_space<vmem>>, vector<16x128xf32>
    %c0_1 = arith.constant 0 : index
    %c0_2 = arith.constant 0 : index
    %1 = vector.load %arg2[%c0_1, %c0_2] : memref<1x128xf32, #tpu.memory_space<vmem>>, vector<1x128xf32>
    %c0_3 = arith.constant 0 : index
    %c0_4 = arith.constant 0 : index
    %2 = vector.load %arg3[%c0_3, %c0_4] : memref<1x128xf32, #tpu.memory_space<vmem>>, vector<1x128xf32>
    %cst = arith.constant dense<0.000000e+00> : vector<16xf32>
    %3 = vector.multi_reduction <add>, %0, %cst [1] : vector<16x128xf32> to vector<16xf32>
    %4 = vector.shape_cast %3 : vector<16xf32> to vector<16x1xf32>
    %cst_5 = arith.constant 1.280000e+02 : f32
    %5 = vector.broadcast %cst_5 : f32 to vector<16x1xf32>
    %6 = arith.divf %4, %5 : vector<16x1xf32>
    %7 = vector.broadcast %6 : vector<16x1xf32> to vector<16x128xf32>
    %8 = arith.subf %0, %7 : vector<16x128xf32>
    %9 = arith.mulf %8, %8 : vector<16x128xf32>
    %cst_6 = arith.constant dense<0.000000e+00> : vector<16xf32>
    %10 = vector.multi_reduction <add>, %9, %cst_6 [1] : vector<16x128xf32> to vector<16xf32>
    %11 = vector.shape_cast %10 : vector<16xf32> to vector<16x1xf32>
    %cst_7 = arith.constant 1.280000e+02 : f32
    %12 = vector.broadcast %cst_7 : f32 to vector<16x1xf32>
    %13 = arith.divf %11, %12 : vector<16x1xf32>
    %14 = vector.broadcast %6 : vector<16x1xf32> to vector<16x128xf32>
    %15 = arith.subf %0, %14 : vector<16x128xf32>
    %cst_8 = arith.constant 9.99999974E-6 : f32
    %16 = vector.broadcast %cst_8 : f32 to vector<16x1xf32>
    %17 = arith.addf %13, %16 : vector<16x1xf32>
    %18 = math.rsqrt %17 : vector<16x1xf32>
    %19 = vector.broadcast %18 : vector<16x1xf32> to vector<16x128xf32>
    %20 = arith.mulf %15, %19 : vector<16x128xf32>
    %21 = vector.broadcast %1 : vector<1x128xf32> to vector<16x128xf32>
    %22 = arith.mulf %20, %21 : vector<16x128xf32>
    %23 = vector.broadcast %2 : vector<1x128xf32> to vector<16x128xf32>
    %24 = arith.addf %22, %23 : vector<16x128xf32>
    %25 = arith.truncf %24 : vector<16x128xf32> to vector<16x128xbf16>
    %c0_9 = arith.constant 0 : index
    %c0_10 = arith.constant 0 : index
    %26 = vector.load %arg4[%c0_9, %c0_10] : memref<128x384xbf16, #tpu.memory_space<vmem>>, vector<128x384xbf16>
    %cst_11 = arith.constant dense<0.000000e+00> : vector<16x384xf32>
    %27 = tpu.matmul %25, %26, %cst_11 {dimension_numbers = #tpu.dot_dimension_numbers<[1], [0], [0], [1], [0, 0, 1, 1], [], []>} : vector<16x128xbf16>, vector<128x384xbf16>, vector<16x384xf32> -> vector<16x384xf32>
    %c0_12 = arith.constant 0 : index
    %c0_13 = arith.constant 0 : index
    %28 = vector.load %arg5[%c0_12, %c0_13] : memref<1x384xf32, #tpu.memory_space<vmem>>, vector<1x384xf32>
    %29 = vector.broadcast %28 : vector<1x384xf32> to vector<16x384xf32>
    %30 = arith.addf %27, %29 : vector<16x384xf32>
    %31 = arith.truncf %30 : vector<16x384xf32> to vector<16x384xbf16>
    %c0_14 = arith.constant 0 : index
    %c0_15 = arith.constant 0 : index
    %32 = vector.load %arg6[%c0_14, %c0_15] : memref<16x384xbf16, #tpu.memory_space<vmem>>, vector<16x384xbf16>
    tpu.vector_store %arg6[%c0_14, %c0_15], %31 {strides = array<i32>} : memref<16x384xbf16, #tpu.memory_space<vmem>>, vector<16x384xbf16>,
    return
  }
  func.func @transform_0(%arg0: i32) -> (i32, i32) {
    %c0_i32 = arith.constant 0 : i32
    %c0_i32_0 = arith.constant 0 : i32
    return %arg0, %c0_i32 : i32, i32
  }
  func.func @transform_1(%arg0: i32) -> (i32, i32) {
    %c0_i32 = arith.constant 0 : i32
    %c0_i32_0 = arith.constant 0 : i32
    %c0_i32_1 = arith.constant 0 : i32
    return %c0_i32, %c0_i32_0 : i32, i32
  }
  func.func @transform_2(%arg0: i32) -> (i32, i32) {
    %c0_i32 = arith.constant 0 : i32
    %c0_i32_0 = arith.constant 0 : i32
    %c0_i32_1 = arith.constant 0 : i32
    return %c0_i32, %c0_i32_0 : i32, i32
  }
  func.func @transform_3(%arg0: i32) -> (i32, i32) {
    %c0_i32 = arith.constant 0 : i32
    %c0_i32_0 = arith.constant 0 : i32
    %c0_i32_1 = arith.constant 0 : i32
    return %c0_i32, %c0_i32_0 : i32, i32
  }
  func.func @transform_4(%arg0: i32) -> (i32, i32) {
    %c0_i32 = arith.constant 0 : i32
    %c0_i32_0 = arith.constant 0 : i32
    %c0_i32_1 = arith.constant 0 : i32
    return %c0_i32, %c0_i32_0 : i32, i32
  }
  func.func @transform_5(%arg0: i32) -> (i32, i32) {
    %c0_i32 = arith.constant 0 : i32
    %c0_i32_0 = arith.constant 0 : i32
    return %arg0, %c0_i32 : i32, i32
  }
}

module attributes {stable_mosaic.version = 11 : i64} {
  func.func @_attn_kernel(%arg0: i32, %arg1: memref<1x16x384xbf16, #tpu.memory_space<vmem>>, %arg2: memref<128x128xbf16, #tpu.memory_space<vmem>>, %arg3: memref<1x128xf32, #tpu.memory_space<vmem>>, %arg4: memref<1x16x128xf32, #tpu.memory_space<vmem>>, %arg5: memref<1x16x128xf32, #tpu.memory_space<vmem>>, %arg6: memref<16x128xf32, #tpu.memory_space<vmem>>) attributes {dimension_semantics = [#tpu.dimension_semantics<parallel>], iteration_bounds = array<i64: 2>, scalar_prefetch = 0 : i64, scratch_operands = 1 : i64, tpu.core_type = #tpu.core_type<tc>, window_params = [{transform_indices = @transform_0, window_bounds = array<i64: 1, 16, 384>}, {pipeline_mode = #tpu.pipeline_mode<synchronous>, transform_indices = @transform_1, window_bounds = array<i64: 128, 128>}, {pipeline_mode = #tpu.pipeline_mode<synchronous>, transform_indices = @transform_2, window_bounds = array<i64: 1, 128>}, {transform_indices = @transform_3, window_bounds = array<i64: 1, 16, 128>}, {transform_indices = @transform_4, window_bounds = array<i64: 1, 16, 128>}]} {
    %c0 = arith.constant 0 : index
    %c0_0 = arith.constant 0 : index
    %c0_1 = arith.constant 0 : index
    %0 = vector.load %arg1[%c0, %c0_0, %c0_1] : memref<1x16x384xbf16, #tpu.memory_space<vmem>>, vector<1x16x384xbf16>
    %1 = vector.shape_cast %0 : vector<1x16x384xbf16> to vector<16x384xbf16>
    %2 = vector.extract_strided_slice %1 {offsets = [0, 0], sizes = [16, 32], strides = [1, 1]} : vector<16x384xbf16> to vector<16x32xbf16>
    %3 = vector.extract_strided_slice %1 {offsets = [0, 128], sizes = [16, 32], strides = [1, 1]} : vector<16x384xbf16> to vector<16x32xbf16>
    %4 = vector.extract_strided_slice %1 {offsets = [0, 256], sizes = [16, 32], strides = [1, 1]} : vector<16x384xbf16> to vector<16x32xbf16>
    %cst = arith.constant dense<0.000000e+00> : vector<16x16xf32>
    %5 = tpu.matmul %2, %3, %cst {dimension_numbers = #tpu.dot_dimension_numbers<[1], [1], [0], [0], [0, 0, 1, 0], [], []>} : vector<16x32xbf16>, vector<16x32xbf16>, vector<16x16xf32> -> vector<16x16xf32>
    %cst_2 = arith.constant 0.176776692 : f32
    %6 = vector.broadcast %cst_2 : f32 to vector<16x16xf32>
    %7 = arith.mulf %5, %6 : vector<16x16xf32>
    %cst_3 = arith.constant dense<0xFF800000> : vector<16xf32>
    %8 = vector.multi_reduction <maximumf>, %7, %cst_3 [1] : vector<16x16xf32> to vector<16xf32>
    %9 = vector.shape_cast %8 : vector<16xf32> to vector<16x1xf32>
    %10 = vector.broadcast %9 : vector<16x1xf32> to vector<16x16xf32>
    %11 = arith.subf %7, %10 : vector<16x16xf32>
    %12 = math.exp %11 : vector<16x16xf32>
    %cst_4 = arith.constant dense<0.000000e+00> : vector<16xf32>
    %13 = vector.multi_reduction <add>, %12, %cst_4 [1] : vector<16x16xf32> to vector<16xf32>
    %14 = vector.shape_cast %13 : vector<16xf32> to vector<16x1xf32>
    %15 = tpu.reciprocal %14 {approx = true} : vector<16x1xf32> -> vector<16x1xf32>
    %16 = vector.broadcast %15 : vector<16x1xf32> to vector<16x16xf32>
    %17 = arith.mulf %12, %16 : vector<16x16xf32>
    %18 = arith.truncf %17 : vector<16x16xf32> to vector<16x16xbf16>
    %cst_5 = arith.constant dense<0.000000e+00> : vector<16x32xf32>
    %19 = tpu.matmul %18, %4, %cst_5 {dimension_numbers = #tpu.dot_dimension_numbers<[1], [0], [0], [1], [0, 0, 1, 1], [], []>} : vector<16x16xbf16>, vector<16x32xbf16>, vector<16x32xf32> -> vector<16x32xf32>
    %c0_6 = arith.constant 0 : index
    %c0_7 = arith.constant 0 : index
    %20 = vector.load %arg6[%c0_6, %c0_7] : memref<16x128xf32, #tpu.memory_space<vmem>>, vector<16x32xf32>
    tpu.vector_store %arg6[%c0_6, %c0_7], %19 {strides = array<i32>} : memref<16x128xf32, #tpu.memory_space<vmem>>, vector<16x32xf32>,
    %21 = vector.extract_strided_slice %1 {offsets = [0, 32], sizes = [16, 32], strides = [1, 1]} : vector<16x384xbf16> to vector<16x32xbf16>
    %22 = vector.extract_strided_slice %1 {offsets = [0, 160], sizes = [16, 32], strides = [1, 1]} : vector<16x384xbf16> to vector<16x32xbf16>
    %23 = vector.extract_strided_slice %1 {offsets = [0, 288], sizes = [16, 32], strides = [1, 1]} : vector<16x384xbf16> to vector<16x32xbf16>
    %cst_8 = arith.constant dense<0.000000e+00> : vector<16x16xf32>
    %24 = tpu.matmul %21, %22, %cst_8 {dimension_numbers = #tpu.dot_dimension_numbers<[1], [1], [0], [0], [0, 0, 1, 0], [], []>} : vector<16x32xbf16>, vector<16x32xbf16>, vector<16x16xf32> -> vector<16x16xf32>
    %cst_9 = arith.constant 0.176776692 : f32
    %25 = vector.broadcast %cst_9 : f32 to vector<16x16xf32>
    %26 = arith.mulf %24, %25 : vector<16x16xf32>
    %cst_10 = arith.constant dense<0xFF800000> : vector<16xf32>
    %27 = vector.multi_reduction <maximumf>, %26, %cst_10 [1] : vector<16x16xf32> to vector<16xf32>
    %28 = vector.shape_cast %27 : vector<16xf32> to vector<16x1xf32>
    %29 = vector.broadcast %28 : vector<16x1xf32> to vector<16x16xf32>
    %30 = arith.subf %26, %29 : vector<16x16xf32>
    %31 = math.exp %30 : vector<16x16xf32>
    %cst_11 = arith.constant dense<0.000000e+00> : vector<16xf32>
    %32 = vector.multi_reduction <add>, %31, %cst_11 [1] : vector<16x16xf32> to vector<16xf32>
    %33 = vector.shape_cast %32 : vector<16xf32> to vector<16x1xf32>
    %34 = tpu.reciprocal %33 {approx = true} : vector<16x1xf32> -> vector<16x1xf32>
    %35 = vector.broadcast %34 : vector<16x1xf32> to vector<16x16xf32>
    %36 = arith.mulf %31, %35 : vector<16x16xf32>
    %37 = arith.truncf %36 : vector<16x16xf32> to vector<16x16xbf16>
    %cst_12 = arith.constant dense<0.000000e+00> : vector<16x32xf32>
    %38 = tpu.matmul %37, %23, %cst_12 {dimension_numbers = #tpu.dot_dimension_numbers<[1], [0], [0], [1], [0, 0, 1, 1], [], []>} : vector<16x16xbf16>, vector<16x32xbf16>, vector<16x32xf32> -> vector<16x32xf32>
    %c0_13 = arith.constant 0 : index
    %c32 = arith.constant 32 : index
    %39 = vector.load %arg6[%c0_13, %c32] : memref<16x128xf32, #tpu.memory_space<vmem>>, vector<16x32xf32>
    tpu.vector_store %arg6[%c0_13, %c32], %38 {strides = array<i32>} : memref<16x128xf32, #tpu.memory_space<vmem>>, vector<16x32xf32>,
    %40 = vector.extract_strided_slice %1 {offsets = [0, 64], sizes = [16, 32], strides = [1, 1]} : vector<16x384xbf16> to vector<16x32xbf16>
    %41 = vector.extract_strided_slice %1 {offsets = [0, 192], sizes = [16, 32], strides = [1, 1]} : vector<16x384xbf16> to vector<16x32xbf16>
    %42 = vector.extract_strided_slice %1 {offsets = [0, 320], sizes = [16, 32], strides = [1, 1]} : vector<16x384xbf16> to vector<16x32xbf16>
    %cst_14 = arith.constant dense<0.000000e+00> : vector<16x16xf32>
    %43 = tpu.matmul %40, %41, %cst_14 {dimension_numbers = #tpu.dot_dimension_numbers<[1], [1], [0], [0], [0, 0, 1, 0], [], []>} : vector<16x32xbf16>, vector<16x32xbf16>, vector<16x16xf32> -> vector<16x16xf32>
    %cst_15 = arith.constant 0.176776692 : f32
    %44 = vector.broadcast %cst_15 : f32 to vector<16x16xf32>
    %45 = arith.mulf %43, %44 : vector<16x16xf32>
    %cst_16 = arith.constant dense<0xFF800000> : vector<16xf32>
    %46 = vector.multi_reduction <maximumf>, %45, %cst_16 [1] : vector<16x16xf32> to vector<16xf32>
    %47 = vector.shape_cast %46 : vector<16xf32> to vector<16x1xf32>
    %48 = vector.broadcast %47 : vector<16x1xf32> to vector<16x16xf32>
    %49 = arith.subf %45, %48 : vector<16x16xf32>
    %50 = math.exp %49 : vector<16x16xf32>
    %cst_17 = arith.constant dense<0.000000e+00> : vector<16xf32>
    %51 = vector.multi_reduction <add>, %50, %cst_17 [1] : vector<16x16xf32> to vector<16xf32>
    %52 = vector.shape_cast %51 : vector<16xf32> to vector<16x1xf32>
    %53 = tpu.reciprocal %52 {approx = true} : vector<16x1xf32> -> vector<16x1xf32>
    %54 = vector.broadcast %53 : vector<16x1xf32> to vector<16x16xf32>
    %55 = arith.mulf %50, %54 : vector<16x16xf32>
    %56 = arith.truncf %55 : vector<16x16xf32> to vector<16x16xbf16>
    %cst_18 = arith.constant dense<0.000000e+00> : vector<16x32xf32>
    %57 = tpu.matmul %56, %42, %cst_18 {dimension_numbers = #tpu.dot_dimension_numbers<[1], [0], [0], [1], [0, 0, 1, 1], [], []>} : vector<16x16xbf16>, vector<16x32xbf16>, vector<16x32xf32> -> vector<16x32xf32>
    %c0_19 = arith.constant 0 : index
    %c64 = arith.constant 64 : index
    %58 = vector.load %arg6[%c0_19, %c64] : memref<16x128xf32, #tpu.memory_space<vmem>>, vector<16x32xf32>
    tpu.vector_store %arg6[%c0_19, %c64], %57 {strides = array<i32>} : memref<16x128xf32, #tpu.memory_space<vmem>>, vector<16x32xf32>,
    %59 = vector.extract_strided_slice %1 {offsets = [0, 96], sizes = [16, 32], strides = [1, 1]} : vector<16x384xbf16> to vector<16x32xbf16>
    %60 = vector.extract_strided_slice %1 {offsets = [0, 224], sizes = [16, 32], strides = [1, 1]} : vector<16x384xbf16> to vector<16x32xbf16>
    %61 = vector.extract_strided_slice %1 {offsets = [0, 352], sizes = [16, 32], strides = [1, 1]} : vector<16x384xbf16> to vector<16x32xbf16>
    %cst_20 = arith.constant dense<0.000000e+00> : vector<16x16xf32>
    %62 = tpu.matmul %59, %60, %cst_20 {dimension_numbers = #tpu.dot_dimension_numbers<[1], [1], [0], [0], [0, 0, 1, 0], [], []>} : vector<16x32xbf16>, vector<16x32xbf16>, vector<16x16xf32> -> vector<16x16xf32>
    %cst_21 = arith.constant 0.176776692 : f32
    %63 = vector.broadcast %cst_21 : f32 to vector<16x16xf32>
    %64 = arith.mulf %62, %63 : vector<16x16xf32>
    %cst_22 = arith.constant dense<0xFF800000> : vector<16xf32>
    %65 = vector.multi_reduction <maximumf>, %64, %cst_22 [1] : vector<16x16xf32> to vector<16xf32>
    %66 = vector.shape_cast %65 : vector<16xf32> to vector<16x1xf32>
    %67 = vector.broadcast %66 : vector<16x1xf32> to vector<16x16xf32>
    %68 = arith.subf %64, %67 : vector<16x16xf32>
    %69 = math.exp %68 : vector<16x16xf32>
    %cst_23 = arith.constant dense<0.000000e+00> : vector<16xf32>
    %70 = vector.multi_reduction <add>, %69, %cst_23 [1] : vector<16x16xf32> to vector<16xf32>
    %71 = vector.shape_cast %70 : vector<16xf32> to vector<16x1xf32>
    %72 = tpu.reciprocal %71 {approx = true} : vector<16x1xf32> -> vector<16x1xf32>
    %73 = vector.broadcast %72 : vector<16x1xf32> to vector<16x16xf32>
    %74 = arith.mulf %69, %73 : vector<16x16xf32>
    %75 = arith.truncf %74 : vector<16x16xf32> to vector<16x16xbf16>
    %cst_24 = arith.constant dense<0.000000e+00> : vector<16x32xf32>
    %76 = tpu.matmul %75, %61, %cst_24 {dimension_numbers = #tpu.dot_dimension_numbers<[1], [0], [0], [1], [0, 0, 1, 1], [], []>} : vector<16x16xbf16>, vector<16x32xbf16>, vector<16x32xf32> -> vector<16x32xf32>
    %c0_25 = arith.constant 0 : index
    %c96 = arith.constant 96 : index
    %77 = vector.load %arg6[%c0_25, %c96] : memref<16x128xf32, #tpu.memory_space<vmem>>, vector<16x32xf32>
    tpu.vector_store %arg6[%c0_25, %c96], %76 {strides = array<i32>} : memref<16x128xf32, #tpu.memory_space<vmem>>, vector<16x32xf32>,
    %c0_26 = arith.constant 0 : index
    %c0_27 = arith.constant 0 : index
    %78 = vector.load %arg6[%c0_26, %c0_27] : memref<16x128xf32, #tpu.memory_space<vmem>>, vector<16x128xf32>
    %79 = arith.truncf %78 : vector<16x128xf32> to vector<16x128xbf16>
    %c0_28 = arith.constant 0 : index
    %c0_29 = arith.constant 0 : index
    %80 = vector.load %arg2[%c0_28, %c0_29] : memref<128x128xbf16, #tpu.memory_space<vmem>>, vector<128x128xbf16>
    %cst_30 = arith.constant dense<0.000000e+00> : vector<16x128xf32>
    %81 = tpu.matmul %79, %80, %cst_30 {dimension_numbers = #tpu.dot_dimension_numbers<[1], [0], [0], [1], [0, 0, 1, 1], [], []>} : vector<16x128xbf16>, vector<128x128xbf16>, vector<16x128xf32> -> vector<16x128xf32>
    %c0_31 = arith.constant 0 : index
    %c0_32 = arith.constant 0 : index
    %82 = vector.load %arg3[%c0_31, %c0_32] : memref<1x128xf32, #tpu.memory_space<vmem>>, vector<1x128xf32>
    %83 = vector.broadcast %82 : vector<1x128xf32> to vector<16x128xf32>
    %84 = arith.addf %81, %83 : vector<16x128xf32>
    %c0_33 = arith.constant 0 : index
    %c0_34 = arith.constant 0 : index
    %c0_35 = arith.constant 0 : index
    %85 = vector.load %arg4[%c0_33, %c0_34, %c0_35] : memref<1x16x128xf32, #tpu.memory_space<vmem>>, vector<1x16x128xf32>
    %86 = vector.shape_cast %85 : vector<1x16x128xf32> to vector<16x128xf32>
    %87 = arith.addf %84, %86 : vector<16x128xf32>
    %c0_36 = arith.constant 0 : index
    %c0_37 = arith.constant 0 : index
    %c0_38 = arith.constant 0 : index
    %88 = vector.load %arg5[%c0_36, %c0_37, %c0_38] : memref<1x16x128xf32, #tpu.memory_space<vmem>>, vector<1x16x128xf32>
    %89 = vector.shape_cast %88 : vector<1x16x128xf32> to vector<16x128xf32>
    %90 = vector.shape_cast %87 : vector<16x128xf32> to vector<1x16x128xf32>
    tpu.vector_store %arg5[%c0_36, %c0_37, %c0_38], %90 {strides = array<i32>} : memref<1x16x128xf32, #tpu.memory_space<vmem>>, vector<1x16x128xf32>,
    return
  }
  func.func @transform_0(%arg0: i32) -> (i32, i32, i32) {
    %c0_i32 = arith.constant 0 : i32
    %c0_i32_0 = arith.constant 0 : i32
    %c0_i32_1 = arith.constant 0 : i32
    return %arg0, %c0_i32, %c0_i32_0 : i32, i32, i32
  }
  func.func @transform_1(%arg0: i32) -> (i32, i32) {
    %c0_i32 = arith.constant 0 : i32
    %c0_i32_0 = arith.constant 0 : i32
    %c0_i32_1 = arith.constant 0 : i32
    return %c0_i32, %c0_i32_0 : i32, i32
  }
  func.func @transform_2(%arg0: i32) -> (i32, i32) {
    %c0_i32 = arith.constant 0 : i32
    %c0_i32_0 = arith.constant 0 : i32
    %c0_i32_1 = arith.constant 0 : i32
    return %c0_i32, %c0_i32_0 : i32, i32
  }
  func.func @transform_3(%arg0: i32) -> (i32, i32, i32) {
    %c0_i32 = arith.constant 0 : i32
    %c0_i32_0 = arith.constant 0 : i32
    %c0_i32_1 = arith.constant 0 : i32
    return %arg0, %c0_i32, %c0_i32_0 : i32, i32, i32
  }
  func.func @transform_4(%arg0: i32) -> (i32, i32, i32) {
    %c0_i32 = arith.constant 0 : i32
    %c0_i32_0 = arith.constant 0 : i32
    %c0_i32_1 = arith.constant 0 : i32
    return %arg0, %c0_i32, %c0_i32_0 : i32, i32, i32
  }
}

module attributes {stable_mosaic.version = 11 : i64} {
  func.func @_pool_head_kernel(%arg0: i32, %arg1: memref<2x16x128xf32, #tpu.memory_space<vmem>>, %arg2: memref<128x128xbf16, #tpu.memory_space<vmem>>, %arg3: memref<1x128xf32, #tpu.memory_space<vmem>>, %arg4: memref<128x128xbf16, #tpu.memory_space<vmem>>, %arg5: memref<1x128xf32, #tpu.memory_space<vmem>>, %arg6: memref<2x128xf32, #tpu.memory_space<vmem>>) attributes {dimension_semantics = [#tpu.dimension_semantics<parallel>], iteration_bounds = array<i64: 1>, scalar_prefetch = 0 : i64, scratch_operands = 0 : i64, tpu.core_type = #tpu.core_type<tc>, window_params = [{transform_indices = @transform_0, window_bounds = array<i64: 2, 16, 128>}, {pipeline_mode = #tpu.pipeline_mode<synchronous>, transform_indices = @transform_1, window_bounds = array<i64: 128, 128>}, {pipeline_mode = #tpu.pipeline_mode<synchronous>, transform_indices = @transform_2, window_bounds = array<i64: 1, 128>}, {pipeline_mode = #tpu.pipeline_mode<synchronous>, transform_indices = @transform_3, window_bounds = array<i64: 128, 128>}, {pipeline_mode = #tpu.pipeline_mode<synchronous>, transform_indices = @transform_4, window_bounds = array<i64: 1, 128>}, {transform_indices = @transform_5, window_bounds = array<i64: 2, 128>}]} {
    %c0 = arith.constant 0 : index
    %c0_0 = arith.constant 0 : index
    %c0_1 = arith.constant 0 : index
    %0 = vector.load %arg1[%c0, %c0_0, %c0_1] : memref<2x16x128xf32, #tpu.memory_space<vmem>>, vector<2x16x128xf32>
    %cst = arith.constant dense<0.000000e+00> : vector<2x128xf32>
    %1 = vector.multi_reduction <add>, %0, %cst [1] : vector<2x16x128xf32> to vector<2x128xf32>
    %cst_2 = arith.constant 1.600000e+01 : f32
    %2 = vector.broadcast %cst_2 : f32 to vector<2x128xf32>
    %3 = arith.divf %1, %2 : vector<2x128xf32>
    %4 = arith.truncf %3 : vector<2x128xf32> to vector<2x128xbf16>
    %c0_3 = arith.constant 0 : index
    %c0_4 = arith.constant 0 : index
    %5 = vector.load %arg2[%c0_3, %c0_4] : memref<128x128xbf16, #tpu.memory_space<vmem>>, vector<128x128xbf16>
    %cst_5 = arith.constant dense<0.000000e+00> : vector<2x128xf32>
    %6 = tpu.matmul %4, %5, %cst_5 {dimension_numbers = #tpu.dot_dimension_numbers<[1], [0], [0], [1], [0, 0, 1, 1], [], []>} : vector<2x128xbf16>, vector<128x128xbf16>, vector<2x128xf32> -> vector<2x128xf32>
    %c0_6 = arith.constant 0 : index
    %c0_7 = arith.constant 0 : index
    %7 = vector.load %arg3[%c0_6, %c0_7] : memref<1x128xf32, #tpu.memory_space<vmem>>, vector<1x128xf32>
    %8 = vector.broadcast %7 : vector<1x128xf32> to vector<2x128xf32>
    %9 = arith.addf %6, %8 : vector<2x128xf32>
    %cst_8 = arith.constant 0.000000e+00 : f32
    %10 = vector.broadcast %cst_8 : f32 to vector<2x128xf32>
    %11 = arith.maximumf %9, %10 : vector<2x128xf32>
    %12 = arith.truncf %11 : vector<2x128xf32> to vector<2x128xbf16>
    %c0_9 = arith.constant 0 : index
    %c0_10 = arith.constant 0 : index
    %13 = vector.load %arg4[%c0_9, %c0_10] : memref<128x128xbf16, #tpu.memory_space<vmem>>, vector<128x128xbf16>
    %cst_11 = arith.constant dense<0.000000e+00> : vector<2x128xf32>
    %14 = tpu.matmul %12, %13, %cst_11 {dimension_numbers = #tpu.dot_dimension_numbers<[1], [0], [0], [1], [0, 0, 1, 1], [], []>} : vector<2x128xbf16>, vector<128x128xbf16>, vector<2x128xf32> -> vector<2x128xf32>
    %c0_12 = arith.constant 0 : index
    %c0_13 = arith.constant 0 : index
    %15 = vector.load %arg5[%c0_12, %c0_13] : memref<1x128xf32, #tpu.memory_space<vmem>>, vector<1x128xf32>
    %16 = vector.broadcast %15 : vector<1x128xf32> to vector<2x128xf32>
    %17 = arith.addf %14, %16 : vector<2x128xf32>
    %c0_14 = arith.constant 0 : index
    %c0_15 = arith.constant 0 : index
    %18 = vector.load %arg6[%c0_14, %c0_15] : memref<2x128xf32, #tpu.memory_space<vmem>>, vector<2x128xf32>
    tpu.vector_store %arg6[%c0_14, %c0_15], %17 {strides = array<i32>} : memref<2x128xf32, #tpu.memory_space<vmem>>, vector<2x128xf32>,
    return
  }
  func.func @transform_0(%arg0: i32) -> (i32, i32, i32) {
    %c0_i32 = arith.constant 0 : i32
    %c0_i32_0 = arith.constant 0 : i32
    %c0_i32_1 = arith.constant 0 : i32
    return %arg0, %c0_i32, %c0_i32_0 : i32, i32, i32
  }
  func.func @transform_1(%arg0: i32) -> (i32, i32) {
    %c0_i32 = arith.constant 0 : i32
    %c0_i32_0 = arith.constant 0 : i32
    %c0_i32_1 = arith.constant 0 : i32
    return %c0_i32, %c0_i32_0 : i32, i32
  }
  func.func @transform_2(%arg0: i32) -> (i32, i32) {
    %c0_i32 = arith.constant 0 : i32
    %c0_i32_0 = arith.constant 0 : i32
    %c0_i32_1 = arith.constant 0 : i32
    return %c0_i32, %c0_i32_0 : i32, i32
  }
  func.func @transform_3(%arg0: i32) -> (i32, i32) {
    %c0_i32 = arith.constant 0 : i32
    %c0_i32_0 = arith.constant 0 : i32
    %c0_i32_1 = arith.constant 0 : i32
    return %c0_i32, %c0_i32_0 : i32, i32
  }
  func.func @transform_4(%arg0: i32) -> (i32, i32) {
    %c0_i32 = arith.constant 0 : i32
    %c0_i32_0 = arith.constant 0 : i32
    %c0_i32_1 = arith.constant 0 : i32
    return %c0_i32, %c0_i32_0 : i32, i32
  }
  func.func @transform_5(%arg0: i32) -> (i32, i32) {
    %c0_i32 = arith.constant 0 : i32
    %c0_i32_0 = arith.constant 0 : i32
    return %arg0, %c0_i32 : i32, i32
  }
}

</mosaic_0001>

<llo_original>
// kernel: vit_forward.8
$region0: #{vit_forward.8}
  #allocation0 [shape = 'u32[]', space=smem, size = 0x4, offset = 0x4, fixed_abs, tag = 'smem constant byte address 0x4 - core index']
  #allocation1 [shape = 'u32[72,128]{1,0:T(1,128)}', space=vmem, size = 0x9000, scoped, tag = 'internal scratch']
  %s0 = inlined_call_operand.vmem [shape: f32[2,16,48], index: 0, kind: input, shape index: {}]
  %s1 = inlined_call_operand.vmem [shape: bf16[48,128], index: 1, kind: input, shape index: {}]
  %s2 = inlined_call_operand.vmem [shape: f32[1,128], index: 2, kind: input, shape index: {}]
  %s3 = inlined_call_operand.vmem [shape: f32[16,128], index: 3, kind: input, shape index: {}]
  %s4 = inlined_call_operand.vmem [shape: f32[2,16,128], index: 4, kind: output, shape index: {}]
  %s5 = sld [smem:[#allocation0]]
  $region49: #{vit_forward.8} parent=0
    _
  %s7 = ssub.s32 1, %s5
  %s8 = scalar_select 0, %s7, %s5
  loop: start=0, step=1, limit=4
  $region2: #{vit_forward.8} parent=0 // loop_pre_header
    _
  $region3: #{vit_forward.8} parent=0 // loop_header
    %s10 = sphi 0, %s14
    %p11 = scmp.ge.s32.totalorder %s10, 4
    %s20 = sphi 0, %s22
    %s23 = sphi 0, %s20
    %s24 = sphi 0, %s23
    %s40 = sphi 0, %s24
    %s44 = sphi 0, %s44
    %s46 = sphi 0, %s44
    %s47 = sphi 0, %s46
    %s61 = sphi 0, %s47
    %s65 = sphi 0, %s65
    %s67 = sphi 0, %s65
    %s68 = sphi 0, %s67
    %s82 = sphi 0, %s68
    %s86 = sphi 0, %s86
    %s88 = sphi 0, %s86
    %s89 = sphi 0, %s88
    %s103 = sphi 0, %s89
    %s109 = sphi 0, %s111
    %s112 = sphi 0, %s109
    %s113 = sphi 0, %s112
    %s129 = sphi 0, %s113
  $region4: #{vit_forward.8} parent=0 // loop_header_branch
    %13 = sbr.rel (%p11) target = $region8
  $region5: #{vit_forward.8} parent=0 // loop_body
    %s15 = ssub.s32 %s10, 1
    %s16 = ssub.s32 %s10, 2
    %s17 = sadd.s32 %s10, 1
    %s18 = ssub.s32 %s10, %s17
    %p19 = scmp.eq.s32.totalorder %s18, 0
    %s21 = sadd.s32 %s20, 1
    %s22 = scalar_select %p19, %s20, %s21
    %p25 = pneg %p19
    %p26 = scmp.eq.s32.totalorder %s10, 1
    %p27 = por %p25, %p26
    %p28 = scmp.ne.s32.totalorder %s20, %s23
    %p29 = scmp.eq.s32.totalorder %s10, 0
    %p30 = por %p28, %p29
    %p31 = scmp.ne.s32.totalorder %s20, %s23
    %p32 = scmp.eq.s32.totalorder %s15, 1
    %p33 = por %p31, %p32
    %p34 = scmp.ne.s32.totalorder %s23, %s24
    %p35 = scmp.eq.s32.totalorder %s15, 0
    %p36 = por %p34, %p35
    %p37 = scmp.ne.s32.totalorder %s23, %s24
    %p38 = scmp.eq.s32.totalorder %s16, 1
    %p39 = por %p37, %p38
    %p41 = scmp.ne.s32.totalorder %s24, %s40
    %p42 = scmp.eq.s32.totalorder %s16, 0
    %p43 = por %p41, %p42
    %s45 = sadd.s32 %s44, 1
    %p48 = scmp.eq.s32.totalorder %s10, 1
    %p49 = scmp.ne.s32.totalorder %s44, %s46
    %p50 = scmp.eq.s32.totalorder %s10, 0
    %p51 = por %p49, %p50
    %p52 = scmp.ne.s32.totalorder %s44, %s46
    %p53 = scmp.eq.s32.totalorder %s15, 1
    %p54 = por %p52, %p53
    %p55 = scmp.ne.s32.totalorder %s46, %s47
    %p56 = scmp.eq.s32.totalorder %s15, 0
    %p57 = por %p55, %p56
    %p58 = scmp.ne.s32.totalorder %s46, %s47
    %p59 = scmp.eq.s32.totalorder %s16, 1
    %p60 = por %p58, %p59
    %p62 = scmp.ne.s32.totalorder %s47, %s61
    %p63 = scmp.eq.s32.totalorder %s16, 0
    %p64 = por %p62, %p63
    %s66 = sadd.s32 %s65, 1
    %p69 = scmp.eq.s32.totalorder %s10, 1
    %p70 = scmp.ne.s32.totalorder %s65, %s67
    %p71 = scmp.eq.s32.totalorder %s10, 0
    %p72 = por %p70, %p71
    %p73 = scmp.ne.s32.totalorder %s65, %s67
    %p74 = scmp.eq.s32.totalorder %s15, 1
    %p75 = por %p73, %p74
    %p76 = scmp.ne.s32.totalorder %s67, %s68
    %p77 = scmp.eq.s32.totalorder %s15, 0
    %p78 = por %p76, %p77
    %p79 = scmp.ne.s32.totalorder %s67, %s68
    %p80 = scmp.eq.s32.totalorder %s16, 1
    %p81 = por %p79, %p80
    %p83 = scmp.ne.s32.totalorder %s68, %s82
    %p84 = scmp.eq.s32.totalorder %s16, 0
    %p85 = por %p83, %p84
    %s87 = sadd.s32 %s86, 1
    %p90 = scmp.eq.s32.totalorder %s10, 1
    %p91 = scmp.ne.s32.totalorder %s86, %s88
    %p92 = scmp.eq.s32.totalorder %s10, 0
    %p93 = por %p91, %p92
    %p94 = scmp.ne.s32.totalorder %s86, %s88
    %p95 = scmp.eq.s32.totalorder %s15, 1
    %p96 = por %p94, %p95
    %p97 = scmp.ne.s32.totalorder %s88, %s89
    %p98 = scmp.eq.s32.totalorder %s15, 0
    %p99 = por %p97, %p98
    %p100 = scmp.ne.s32.totalorder %s88, %s89
    %p101 = scmp.eq.s32.totalorder %s16, 1
    %p102 = por %p100, %p101
    %p104 = scmp.ne.s32.totalorder %s89, %s103
    %p105 = scmp.eq.s32.totalorder %s16, 0
    %p106 = por %p104, %p105
    %s107 = ssub.s32 %s10, %s17
    %p108 = scmp.eq.s32.totalorder %s107, 0
    %s110 = sadd.s32 %s109, 1
    %s111 = scalar_select %p108, %s109, %s110
    %p114 = pneg %p108
    %p115 = scmp.eq.s32.totalorder %s10, 1
    %p116 = por %p114, %p115
    %p117 = scmp.ne.s32.totalorder %s109, %s112
    %p118 = scmp.eq.s32.totalorder %s10, 0
    %p119 = por %p117, %p118
    %p120 = scmp.ne.s32.totalorder %s109, %s112
    %p121 = scmp.eq.s32.totalorder %s15, 1
    %p122 = por %p120, %p121
    %p123 = scmp.ne.s32.totalorder %s112, %s113
    %p124 = scmp.eq.s32.totalorder %s15, 0
    %p125 = por %p123, %p124
    %p126 = scmp.ne.s32.totalorder %s112, %s113
    %p127 = scmp.eq.s32.totalorder %s16, 1
    %p128 = por %p126, %p127
    %p130 = scmp.ne.s32.totalorder %s113, %s129
    %p131 = scmp.eq.s32.totalorder %s16, 0
    %p132 = por %p130, %p131
    %p133 = scmp.le.s32.totalorder 1, %s10
    %p134 = scmp.lt.s32.totalorder %s10, 3
    %p135 = pnand %p133, %p134
    %p136 = pneg %p135
    // Predicated region
    $region9: #{vit_forward.8} parent=5 // pred_check
      _
    $region10: #{vit_forward.8} parent=5 // pred_check_branch
      %138 = sbr.rel (%p135) target = $region12
    $region11: #{vit_forward.8} parent=5 // pred_region
      %s139 = ssub.s32 %s10, 1
      // Predicated region
      $region13: #{vit_forward.8} parent=11 // pred_check
        %p140 = pneg %p57
      $region14: #{vit_forward.8} parent=11 // pred_check_branch
        %142 = sbr.rel (%p140) target = $region16
      $region15: #{vit_forward.8} parent=11 // pred_region
        _
      $region16: #{vit_forward.8} parent=11 // pred_fallthru
        _
      // Predicated region
      $region17: #{vit_forward.8} parent=11 // pred_check
        %p143 = pneg %p78
      $region18: #{vit_forward.8} parent=11 // pred_check_branch
        %145 = sbr.rel (%p143) target = $region20
      $region19: #{vit_forward.8} parent=11 // pred_region
        _
      $region20: #{vit_forward.8} parent=11 // pred_fallthru
        _
      // Predicated region
      $region21: #{vit_forward.8} parent=11 // pred_check
        %p146 = pneg %p99
      $region22: #{vit_forward.8} parent=11 // pred_check_branch
        %148 = sbr.rel (%p146) target = $region24
      $region23: #{vit_forward.8} parent=11 // pred_region
        _
      $region24: #{vit_forward.8} parent=11 // pred_fallthru
        _
    $region12: #{vit_forward.8} parent=5 // pred_fallthru
      _
    %p149 = scmp.lt.s32.totalorder %s10, 2
    // Predicated region
    $region25: #{vit_forward.8} parent=5 // pred_check
      %p150 = pneg %p149
    $region26: #{vit_forward.8} parent=5 // pred_check_branch
      %152 = sbr.rel (%p150) target = $region28
    $region27: #{vit_forward.8} parent=5 // pred_region
      // Predicated region
      $region29: #{vit_forward.8} parent=27 // pred_check
        %p153 = pneg %p30
      $region30: #{vit_forward.8} parent=27 // pred_check_branch
        %155 = sbr.rel (%p153) target = $region32
      $region31: #{vit_forward.8} parent=27 // pred_region
        %p156 = scmp.lt.s32.totalorder %s10, 1
        %s157 = scalar_select %p156, %s10, 1
        %s158 = smul.addr %s157, 2
        %s159 = smul.addr %s158, 8
        %s160 = scalar_lea.vmem %s0, %s159
      $region32: #{vit_forward.8} parent=27 // pred_fallthru
        _
    $region28: #{vit_forward.8} parent=5 // pred_fallthru
      _
    %p161 = scmp.le.s32.totalorder 1, %s10
    %p162 = scmp.lt.s32.totalorder %s10, 3
    %p163 = pnand %p161, %p162
    %p164 = pneg %p163
    // Predicated region
    $region33: #{vit_forward.8} parent=5 // pred_check
      _
    $region34: #{vit_forward.8} parent=5 // pred_check_branch
      %166 = sbr.rel (%p163) target = $region36
    $region35: #{vit_forward.8} parent=5 // pred_region
      %s167 = ssub.s32 %s10, 1
      %p168 = scmp.lt.s32.totalorder %s15, 1
      %s169 = scalar_select %p168, %s15, 1
      %s170 = smul.addr %s169, 2
      %s171 = smul.addr %s170, 8
      %s172 = scalar_lea.vmem %s0, %s171
      %p173 = pneg %p36
      %p174 = pneg %p33
      %p175 = pneg %p57
      %p176 = pneg %p54
      %p177 = pneg %p78
      %p178 = pneg %p75
      %p179 = pneg %p99
      %p180 = pneg %p96
      %p181 = pneg %p125
      %p182 = pneg %p122
      %p183 = scmp.lt.s32.totalorder %s15, 1
      %s184 = scalar_select %p183, %s15, 1
      %s185 = smul.addr %s184, 2
      %s186 = smul.addr %s185, 8
      %s187 = scalar_lea.vmem %s4, %s186
      %p188 = scmp.lt.s32.totalorder %s15, 1
      %s189 = scalar_select %p188, %s15, 1
      %s190 = smul.addr %s189, 2
      %s191 = smul.addr %s190, 8
      %s192 = scalar_lea.vmem %s0, %s191
      %p193 = scmp.lt.s32.totalorder %s15, 1
      %s194 = scalar_select %p193, %s15, 1
      %s195 = smul.addr %s194, 2
      %s196 = smul.addr %s195, 8
      %s197 = scalar_lea.vmem %s4, %s196
      %v199 = vld [vmem:[%s192] sm:$0xff]
      %v200 = vld [vmem:[%s192 + $0x8] sm:$0xff]
      %v201 = vpack.c.bf16 %v200, %v199
      %v202 = vld [vmem:[%s1] sm:$0xf]
      %v203 = vld [vmem:[%s1 + $0x4] sm:$0xf]
      %v204 = vld [vmem:[%s1 + $0x8] sm:$0xf]
      %v205 = vld [vmem:[%s1 + $0xc] sm:$0xf]
      %v206 = vld [vmem:[%s1 + $0x10] sm:$0xf]
      %v207 = vld [vmem:[%s1 + $0x14] sm:$0xf]
      %v208 = vld [vmem:[%s2] sm:$0x1]
      %v210 = vperm.slane %v208, 0
      %v218 = vunpack.c.l.b16 %v202
      %v219 = vunpack.c.l.b16 %v203
      %v220 = vunpack.c.l.b16 %v204
      %v221 = vunpack.c.l.b16 %v205
      %v222 = vunpack.c.l.b16 %v206
      %v223 = vunpack.c.l.b16 %v207
      %v224 = vpack.c.b16 %v219, %v218
      %v225 = vpack.c.b16 %v221, %v220
      %v226 = vpack.c.b16 %v223, %v222
      %vm230 = vcmask 392192
      %v232 = vsel %vm230, %v201, 0
      %234 = vmatpush.bf16.msra.mxu0 0
      %235 = vmatpush.bf16.msra.mxu0 0
      %236 = vmatpush.bf16.msra.mxu0 0
      %237 = vmatpush.bf16.msra.mxu0 0
      %238 = vmatpush.bf16.msra.mxu0 0
      %239 = vmatpush.bf16.msra.mxu0 %v226
      %240 = vmatpush.bf16.msra.mxu0 %v225
      %241 = vmatpush.bf16.msra.mxu0 %v224
      %242 = vmatmul.bf16.gmra.mxu0 %v232
      %v243 = vpop.f32.mrf.mxu0
      %v244 = vadd.f32 %v210, %v243
      %v245 = vpop.f32.mrf.mxu0
      %v246 = vadd.f32 %v210, %v245
      %247 = vdwg.mxu0
      %v248 = vld [vmem:[%s3] sm:$0xff]
      %v249 = vld [vmem:[%s3 + $0x8] sm:$0xff]
      %v250 = vadd.f32 %v244, %v248
      %v251 = vadd.f32 %v246, %v249
      %252 = vst [vmem:[%s197] sm:$0xff] %v250
      %253 = vst [vmem:[%s197 + $0x8] sm:$0xff] %v251
      %p254 = scmp.lt.s32.totalorder %s15, 1
      %s255 = scalar_select %p254, %s15, 1
      %s256 = smul.addr %s255, 2
      %s257 = smul.addr %s256, 8
      %s258 = scalar_lea.vmem %s4, %s257
      // Predicated region
      $region37: #{vit_forward.8} parent=35 // pred_check
        %p259 = pneg %p122
      $region38: #{vit_forward.8} parent=35 // pred_check_branch
        %261 = sbr.rel (%p259) target = $region40
      $region39: #{vit_forward.8} parent=35 // pred_region
        _
      $region40: #{vit_forward.8} parent=35 // pred_fallthru
        _
    $region36: #{vit_forward.8} parent=5 // pred_fallthru
      _
    %p262 = scmp.le.s32.totalorder 2, %s10
    // Predicated region
    $region41: #{vit_forward.8} parent=5 // pred_check
      %p263 = pneg %p262
    $region42: #{vit_forward.8} parent=5 // pred_check_branch
      %265 = sbr.rel (%p263) target = $region44
    $region43: #{vit_forward.8} parent=5 // pred_region
      %s266 = ssub.s32 %s10, 2
      // Predicated region
      $region45: #{vit_forward.8} parent=43 // pred_check
        %p267 = pneg %p128
      $region46: #{vit_forward.8} parent=43 // pred_check_branch
        %269 = sbr.rel (%p267) target = $region48
      $region47: #{vit_forward.8} parent=43 // pred_region
        %p270 = scmp.lt.s32.totalorder %s16, 1
        %s271 = scalar_select %p270, %s16, 1
        %s272 = smul.addr %s271, 2
        %s273 = smul.addr %s272, 8
        %s274 = scalar_lea.vmem %s4, %s273
      $region48: #{vit_forward.8} parent=43 // pred_fallthru
        _
    $region44: #{vit_forward.8} parent=5 // pred_fallthru
      _
  $region6: #{vit_forward.8} parent=0 // loop_footer
    %s14 = sadd.s32 1, %s10
  $region7: #{vit_forward.8} parent=0 // loop_footer_branch
    %9 = sbr.rel target = $region3
  $region8: #{vit_forward.8} parent=0 // loop_exit
    _

// kernel: vit_forward.9
$region0: #{vit_forward.9}
  #allocation0 [shape = 'u32[]', space=smem, size = 0x4, offset = 0x4, fixed_abs, tag = 'smem constant byte address 0x4 - core index']
  #allocation1 [shape = 'u32[72,128]{1,0:T(1,128)}', space=vmem, size = 0x9000, scoped, tag = 'internal scratch']
  %s0 = inlined_call_operand.vmem [shape: f32[32,128], index: 0, kind: input, shape index: {}]
  %s1 = inlined_call_operand.vmem [shape: f32[1,128], index: 1, kind: input, shape index: {}]
  %s2 = inlined_call_operand.vmem [shape: f32[1,128], index: 2, kind: input, shape index: {}]
  %s3 = inlined_call_operand.vmem [shape: bf16[128,384], index: 3, kind: input, shape index: {}]
  %s4 = inlined_call_operand.vmem [shape: f32[1,384], index: 4, kind: input, shape index: {}]
  %s5 = inlined_call_operand.vmem [shape: bf16[32,384], index: 5, kind: output, shape index: {}]
  %s6 = sld [smem:[#allocation0]]
  $region53: #{vit_forward.9} parent=0
    _
  %s8 = ssub.s32 1, %s6
  %s9 = scalar_select 0, %s8, %s6
  loop: start=0, step=1, limit=4
  $region2: #{vit_forward.9} parent=0 // loop_pre_header
    _
  $region3: #{vit_forward.9} parent=0 // loop_header
    %s11 = sphi 0, %s15
    %p12 = scmp.ge.s32.totalorder %s11, 4
    %s21 = sphi 0, %s23
    %s24 = sphi 0, %s21
    %s25 = sphi 0, %s24
    %s41 = sphi 0, %s25
    %s45 = sphi 0, %s45
    %s47 = sphi 0, %s45
    %s48 = sphi 0, %s47
    %s62 = sphi 0, %s48
    %s66 = sphi 0, %s66
    %s68 = sphi 0, %s66
    %s69 = sphi 0, %s68
    %s83 = sphi 0, %s69
    %s87 = sphi 0, %s87
    %s89 = sphi 0, %s87
    %s90 = sphi 0, %s89
    %s104 = sphi 0, %s90
    %s108 = sphi 0, %s108
    %s110 = sphi 0, %s108
    %s111 = sphi 0, %s110
    %s125 = sphi 0, %s111
    %s131 = sphi 0, %s133
    %s134 = sphi 0, %s131
    %s135 = sphi 0, %s134
    %s151 = sphi 0, %s135
  $region4: #{vit_forward.9} parent=0 // loop_header_branch
    %14 = sbr.rel (%p12) target = $region8
  $region5: #{vit_forward.9} parent=0 // loop_body
    %s16 = ssub.s32 %s11, 1
    %s17 = ssub.s32 %s11, 2
    %s18 = sadd.s32 %s11, 1
    %s19 = ssub.s32 %s11, %s18
    %p20 = scmp.eq.s32.totalorder %s19, 0
    %s22 = sadd.s32 %s21, 1
    %s23 = scalar_select %p20, %s21, %s22
    %p26 = pneg %p20
    %p27 = scmp.eq.s32.totalorder %s11, 1
    %p28 = por %p26, %p27
    %p29 = scmp.ne.s32.totalorder %s21, %s24
    %p30 = scmp.eq.s32.totalorder %s11, 0
    %p31 = por %p29, %p30
    %p32 = scmp.ne.s32.totalorder %s21, %s24
    %p33 = scmp.eq.s32.totalorder %s16, 1
    %p34 = por %p32, %p33
    %p35 = scmp.ne.s32.totalorder %s24, %s25
    %p36 = scmp.eq.s32.totalorder %s16, 0
    %p37 = por %p35, %p36
    %p38 = scmp.ne.s32.totalorder %s24, %s25
    %p39 = scmp.eq.s32.totalorder %s17, 1
    %p40 = por %p38, %p39
    %p42 = scmp.ne.s32.totalorder %s25, %s41
    %p43 = scmp.eq.s32.totalorder %s17, 0
    %p44 = por %p42, %p43
    %s46 = sadd.s32 %s45, 1
    %p49 = scmp.eq.s32.totalorder %s11, 1
    %p50 = scmp.ne.s32.totalorder %s45, %s47
    %p51 = scmp.eq.s32.totalorder %s11, 0
    %p52 = por %p50, %p51
    %p53 = scmp.ne.s32.totalorder %s45, %s47
    %p54 = scmp.eq.s32.totalorder %s16, 1
    %p55 = por %p53, %p54
    %p56 = scmp.ne.s32.totalorder %s47, %s48
    %p57 = scmp.eq.s32.totalorder %s16, 0
    %p58 = por %p56, %p57
    %p59 = scmp.ne.s32.totalorder %s47, %s48
    %p60 = scmp.eq.s32.totalorder %s17, 1
    %p61 = por %p59, %p60
    %p63 = scmp.ne.s32.totalorder %s48, %s62
    %p64 = scmp.eq.s32.totalorder %s17, 0
    %p65 = por %p63, %p64
    %s67 = sadd.s32 %s66, 1
    %p70 = scmp.eq.s32.totalorder %s11, 1
    %p71 = scmp.ne.s32.totalorder %s66, %s68
    %p72 = scmp.eq.s32.totalorder %s11, 0
    %p73 = por %p71, %p72
    %p74 = scmp.ne.s32.totalorder %s66, %s68
    %p75 = scmp.eq.s32.totalorder %s16, 1
    %p76 = por %p74, %p75
    %p77 = scmp.ne.s32.totalorder %s68, %s69
    %p78 = scmp.eq.s32.totalorder %s16, 0
    %p79 = por %p77, %p78
    %p80 = scmp.ne.s32.totalorder %s68, %s69
    %p81 = scmp.eq.s32.totalorder %s17, 1
    %p82 = por %p80, %p81
    %p84 = scmp.ne.s32.totalorder %s69, %s83
    %p85 = scmp.eq.s32.totalorder %s17, 0
    %p86 = por %p84, %p85
    %s88 = sadd.s32 %s87, 1
    %p91 = scmp.eq.s32.totalorder %s11, 1
    %p92 = scmp.ne.s32.totalorder %s87, %s89
    %p93 = scmp.eq.s32.totalorder %s11, 0
    %p94 = por %p92, %p93
    %p95 = scmp.ne.s32.totalorder %s87, %s89
    %p96 = scmp.eq.s32.totalorder %s16, 1
    %p97 = por %p95, %p96
    %p98 = scmp.ne.s32.totalorder %s89, %s90
    %p99 = scmp.eq.s32.totalorder %s16, 0
    %p100 = por %p98, %p99
    %p101 = scmp.ne.s32.totalorder %s89, %s90
    %p102 = scmp.eq.s32.totalorder %s17, 1
    %p103 = por %p101, %p102
    %p105 = scmp.ne.s32.totalorder %s90, %s104
    %p106 = scmp.eq.s32.totalorder %s17, 0
    %p107 = por %p105, %p106
    %s109 = sadd.s32 %s108, 1
    %p112 = scmp.eq.s32.totalorder %s11, 1
    %p113 = scmp.ne.s32.totalorder %s108, %s110
    %p114 = scmp.eq.s32.totalorder %s11, 0
    %p115 = por %p113, %p114
    %p116 = scmp.ne.s32.totalorder %s108, %s110
    %p117 = scmp.eq.s32.totalorder %s16, 1
    %p118 = por %p116, %p117
    %p119 = scmp.ne.s32.totalorder %s110, %s111
    %p120 = scmp.eq.s32.totalorder %s16, 0
    %p121 = por %p119, %p120
    %p122 = scmp.ne.s32.totalorder %s110, %s111
    %p123 = scmp.eq.s32.totalorder %s17, 1
    %p124 = por %p122, %p123
    %p126 = scmp.ne.s32.totalorder %s111, %s125
    %p127 = scmp.eq.s32.totalorder %s17, 0
    %p128 = por %p126, %p127
    %s129 = ssub.s32 %s11, %s18
    %p130 = scmp.eq.s32.totalorder %s129, 0
    %s132 = sadd.s32 %s131, 1
    %s133 = scalar_select %p130, %s131, %s132
    %p136 = pneg %p130
    %p137 = scmp.eq.s32.totalorder %s11, 1
    %p138 = por %p136, %p137
    %p139 = scmp.ne.s32.totalorder %s131, %s134
    %p140 = scmp.eq.s32.totalorder %s11, 0
    %p141 = por %p139, %p140
    %p142 = scmp.ne.s32.totalorder %s131, %s134
    %p143 = scmp.eq.s32.totalorder %s16, 1
    %p144 = por %p142, %p143
    %p145 = scmp.ne.s32.totalorder %s134, %s135
    %p146 = scmp.eq.s32.totalorder %s16, 0
    %p147 = por %p145, %p146
    %p148 = scmp.ne.s32.totalorder %s134, %s135
    %p149 = scmp.eq.s32.totalorder %s17, 1
    %p150 = por %p148, %p149
    %p152 = scmp.ne.s32.totalorder %s135, %s151
    %p153 = scmp.eq.s32.totalorder %s17, 0
    %p154 = por %p152, %p153
    %p155 = scmp.le.s32.totalorder 1, %s11
    %p156 = scmp.lt.s32.totalorder %s11, 3
    %p157 = pnand %p155, %p156
    %p158 = pneg %p157
    // Predicated region
    $region9: #{vit_forward.9} parent=5 // pred_check
      _
    $region10: #{vit_forward.9} parent=5 // pred_check_branch
      %160 = sbr.rel (%p157) target = $region12
    $region11: #{vit_forward.9} parent=5 // pred_region
      %s161 = ssub.s32 %s11, 1
      // Predicated region
      $region13: #{vit_forward.9} parent=11 // pred_check
        %p162 = pneg %p58
      $region14: #{vit_forward.9} parent=11 // pred_check_branch
        %164 = sbr.rel (%p162) target = $region16
      $region15: #{vit_forward.9} parent=11 // pred_region
        _
      $region16: #{vit_forward.9} parent=11 // pred_fallthru
        _
      // Predicated region
      $region17: #{vit_forward.9} parent=11 // pred_check
        %p165 = pneg %p79
      $region18: #{vit_forward.9} parent=11 // pred_check_branch
        %167 = sbr.rel (%p165) target = $region20
      $region19: #{vit_forward.9} parent=11 // pred_region
        _
      $region20: #{vit_forward.9} parent=11 // pred_fallthru
        _
      // Predicated region
      $region21: #{vit_forward.9} parent=11 // pred_check
        %p168 = pneg %p100
      $region22: #{vit_forward.9} parent=11 // pred_check_branch
        %170 = sbr.rel (%p168) target = $region24
      $region23: #{vit_forward.9} parent=11 // pred_region
        _
      $region24: #{vit_forward.9} parent=11 // pred_fallthru
        _
      // Predicated region
      $region25: #{vit_forward.9} parent=11 // pred_check
        %p171 = pneg %p121
      $region26: #{vit_forward.9} parent=11 // pred_check_branch
        %173 = sbr.rel (%p171) target = $region28
      $region27: #{vit_forward.9} parent=11 // pred_region
        _
      $region28: #{vit_forward.9} parent=11 // pred_fallthru
        _
    $region12: #{vit_forward.9} parent=5 // pred_fallthru
      _
    %p174 = scmp.lt.s32.totalorder %s11, 2
    // Predicated region
    $region29: #{vit_forward.9} parent=5 // pred_check
      %p175 = pneg %p174
    $region30: #{vit_forward.9} parent=5 // pred_check_branch
      %177 = sbr.rel (%p175) target = $region32
    $region31: #{vit_forward.9} parent=5 // pred_region
      // Predicated region
      $region33: #{vit_forward.9} parent=31 // pred_check
        %p178 = pneg %p31
      $region34: #{vit_forward.9} parent=31 // pred_check_branch
        %180 = sbr.rel (%p178) target = $region36
      $region35: #{vit_forward.9} parent=31 // pred_region
        %s181 = smul.u32 2, %s11
        %p182 = scmp.lt.s32.totalorder %s181, 3
        %s183 = scalar_select %p182, %s181, 3
        %s184 = smul.addr %s183, 8
        %s185 = scalar_lea.vmem %s0, %s184
        %s186 = smul.u32 2, %s11
      $region36: #{vit_forward.9} parent=31 // pred_fallthru
        _
    $region32: #{vit_forward.9} parent=5 // pred_fallthru
      _
    %p187 = scmp.le.s32.totalorder 1, %s11
    %p188 = scmp.lt.s32.totalorder %s11, 3
    %p189 = pnand %p187, %p188
    %p190 = pneg %p189
    // Predicated region
    $region37: #{vit_forward.9} parent=5 // pred_check
      _
    $region38: #{vit_forward.9} parent=5 // pred_check_branch
      %192 = sbr.rel (%p189) target = $region40
    $region39: #{vit_forward.9} parent=5 // pred_region
      %s193 = ssub.s32 %s11, 1
      %s194 = smul.u32 2, %s16
      %p195 = scmp.lt.s32.totalorder %s194, 3
      %s196 = scalar_select %p195, %s194, 3
      %s197 = smul.addr %s196, 8
      %s198 = scalar_lea.vmem %s0, %s197
      %p199 = pneg %p37
      %p200 = pneg %p34
      %p201 = pneg %p58
      %p202 = pneg %p55
      %p203 = pneg %p79
      %p204 = pneg %p76
      %p205 = pneg %p100
      %p206 = pneg %p97
      %p207 = pneg %p121
      %p208 = pneg %p118
      %p209 = pneg %p147
      %p210 = pneg %p144
      %s211 = smul.u32 2, %s16
      %p212 = scmp.lt.s32.totalorder %s211, 3
      %s213 = scalar_select %p212, %s211, 3
      %s214 = smul.addr %s213, 3
      %s215 = smul.addr %s214, 4
      %s216 = scalar_lea.vmem %s5, %s215
      %s217 = smul.u32 2, %s16
      %p218 = scmp.lt.s32.totalorder %s217, 3
      %s219 = scalar_select %p218, %s217, 3
      %s220 = smul.addr %s219, 8
      %s221 = scalar_lea.vmem %s0, %s220
      %s222 = smul.u32 2, %s16
      %s223 = smul.u32 2, %s16
      %p224 = scmp.lt.s32.totalorder %s223, 3
      %s225 = scalar_select %p224, %s223, 3
      %s226 = smul.addr %s225, 3
      %s227 = smul.addr %s226, 4
      %s228 = scalar_lea.vmem %s5, %s227
      %s229 = smul.u32 2, %s16
      %v230 = vld [vmem:[%s221] sm:$0xff]
      %v231 = vld [vmem:[%s221 + $0x8] sm:$0xff]
      %v232 = vld [vmem:[%s1] sm:$0x1]
      %v233 = vld [vmem:[%s2] sm:$0x1]
      %234 = vadd.xlane.f32.xlu0 %v230
      %v235 = vpop.xlane.xlu0 %234
      %236 = vadd.xlane.f32.xlu0 %v231
      %v237 = vpop.xlane.xlu0 %236
      %v238 = vrcp.pop 128.0
      %v239 = vmul.f32 128.0, %v238
      %v240 = vsub.f32 1.0, %v239
      %v241 = vmul.f32 %v238, %v240
      %v242 = vadd.f32 %v238, %v241
      %vm243 = vweird.f32 %v238
      %v244 = vsel %vm243, %v238, %v242
      %v245 = vmul.f32 %v235, %v244
      %v246 = vmul.f32 %v237, %v244
      %v247 = vsub.f32 %v230, %v245
      %v248 = vsub.f32 %v231, %v246
      %v249 = vmul.f32 %v247, %v247
      %v250 = vmul.f32 %v248, %v248
      %251 = vadd.xlane.f32.xlu0 %v249
      %v252 = vpop.xlane.xlu0 %251
      %253 = vadd.xlane.f32.xlu0 %v250
      %v254 = vpop.xlane.xlu0 %253
      %v255 = vmul.f32 %v252, %v244
      %v256 = vmul.f32 %v254, %v244
      %v257 = vadd.f32 %v255, 1e-05
      %v258 = vadd.f32 %v256, 1e-05
      %v259 = vrsqrt.pop %v257
      %v260 = vmul.f32 %v259, %v257
      %v261 = vmul.f32 %v260, %v259
      %v262 = vmul.f32 0.5, %v261
      %v263 = vsub.f32 1.5, %v262
      %v264 = vmul.f32 %v259, %v263
      %vm265 = vweird.f32 %v257
      %vm266 = vweird.f32 %v259
      %vm267 = vmor %vm265, %vm266
      %v268 = vsel %vm267, %v259, %v264
      %v269 = vrsqrt.pop %v258
      %v270 = vmul.f32 %v269, %v258
      %v271 = vmul.f32 %v270, %v269
      %v272 = vmul.f32 0.5, %v271
      %v273 = vsub.f32 1.5, %v272
      %v274 = vmul.f32 %v269, %v273
      %vm275 = vweird.f32 %v258
      %vm276 = vweird.f32 %v269
      %vm277 = vmor %vm275, %vm276
      %v278 = vsel %vm277, %v269, %v274
      %v279 = vmul.f32 %v247, %v268
      %v280 = vmul.f32 %v248, %v278
      %v282 = vperm.slane %v232, 0
      %v284 = vmul.f32 %v279, %v282
      %v285 = vmul.f32 %v280, %v282
      %v287 = vperm.slane %v233, 0
      %v289 = vadd.f32 %v284, %v287
      %v290 = vadd.f32 %v285, %v287
      %v291 = vpack.c.bf16 %v290, %v289
      %v292 = vld [vmem:[%s3] sm:$0xff]
      %v293 = vld [vmem:[%s3 + $0x8] sm:$0xf]
      %v294 = vld [vmem:[%s3 + $0xc] sm:$0xff]
      %v295 = vld [vmem:[%s3 + $0x14] sm:$0xf]
      %v296 = vld [vmem:[%s3 + $0x18] sm:$0xff]
      %v297 = vld [vmem:[%s3 + $0x20] sm:$0xf]
      %v298 = vld [vmem:[%s3 + $0x24] sm:$0xff]
      %v299 = vld [vmem:[%s3 + $0x2c] sm:$0xf]
      %v300 = vld [vmem:[%s3 + $0x30] sm:$0xff]
      %v301 = vld [vmem:[%s3 + $0x38] sm:$0xf]
      %v302 = vld [vmem:[%s3 + $0x3c] sm:$0xff]
      %v303 = vld [vmem:[%s3 + $0x44] sm:$0xf]
      %v304 = vld [vmem:[%s3 + $0x48] sm:$0xff]
      %v305 = vld [vmem:[%s3 + $0x50] sm:$0xf]
      %v306 = vld [vmem:[%s3 + $0x54] sm:$0xff]
      %v307 = vld [vmem:[%s3 + $0x5c] sm:$0xf]
      %v308 = vld [vmem:[%s3 + $0x60] sm:$0xff]
      %v309 = vld [vmem:[%s3 + $0x68] sm:$0xf]
      %v310 = vld [vmem:[%s3 + $0x6c] sm:$0xff]
      %v311 = vld [vmem:[%s3 + $0x74] sm:$0xf]
      %v312 = vld [vmem:[%s3 + $0x78] sm:$0xff]
      %v313 = vld [vmem:[%s3 + $0x80] sm:$0xf]
      %v314 = vld [vmem:[%s3 + $0x84] sm:$0xff]
      %v315 = vld [vmem:[%s3 + $0x8c] sm:$0xf]
      %v316 = vld [vmem:[%s3 + $0x90] sm:$0xff]
      %v317 = vld [vmem:[%s3 + $0x98] sm:$0xf]
      %v318 = vld [vmem:[%s3 + $0x9c] sm:$0xff]
      %v319 = vld [vmem:[%s3 + $0xa4] sm:$0xf]
      %v320 = vld [vmem:[%s3 + $0xa8] sm:$0xff]
      %v321 = vld [vmem:[%s3 + $0xb0] sm:$0xf]
      %v322 = vld [vmem:[%s3 + $0xb4] sm:$0xff]
      %v323 = vld [vmem:[%s3 + $0xbc] sm:$0xf]
      %v324 = vld [vmem:[%s4] sm:$0x7]
      %v326 = vperm.slane %v324, 0
      %v327 = vperm.slane %v324, 1
      %v328 = vperm.slane %v324, 2
      %v364 = vunpack.c.l.b16 %v292
      %v365 = vunpack.c.h.b16 %v292
      %v366 = vunpack.c.l.b16 %v293
      %v367 = vunpack.c.l.b16 %v294
      %v368 = vunpack.c.h.b16 %v294
      %v369 = vunpack.c.l.b16 %v295
      %v370 = vunpack.c.l.b16 %v296
      %v371 = vunpack.c.h.b16 %v296
      %v372 = vunpack.c.l.b16 %v297
      %v373 = vunpack.c.l.b16 %v298
      %v374 = vunpack.c.h.b16 %v298
      %v375 = vunpack.c.l.b16 %v299
      %v376 = vunpack.c.l.b16 %v300
      %v377 = vunpack.c.h.b16 %v300
      %v378 = vunpack.c.l.b16 %v301
      %v379 = vunpack.c.l.b16 %v302
      %v380 = vunpack.c.h.b16 %v302
      %v381 = vunpack.c.l.b16 %v303
      %v382 = vunpack.c.l.b16 %v304
      %v383 = vunpack.c.h.b16 %v304
      %v384 = vunpack.c.l.b16 %v305
      %v385 = vunpack.c.l.b16 %v306
      %v386 = vunpack.c.h.b16 %v306
      %v387 = vunpack.c.l.b16 %v307
      %v388 = vunpack.c.l.b16 %v308
      %v389 = vunpack.c.h.b16 %v308
      %v390 = vunpack.c.l.b16 %v309
      %v391 = vunpack.c.l.b16 %v310
      %v392 = vunpack.c.h.b16 %v310
      %v393 = vunpack.c.l.b16 %v311
      %v394 = vunpack.c.l.b16 %v312
      %v395 = vunpack.c.h.b16 %v312
      %v396 = vunpack.c.l.b16 %v313
      %v397 = vunpack.c.l.b16 %v314
      %v398 = vunpack.c.h.b16 %v314
      %v399 = vunpack.c.l.b16 %v315
      %v400 = vunpack.c.l.b16 %v316
      %v401 = vunpack.c.h.b16 %v316
      %v402 = vunpack.c.l.b16 %v317
      %v403 = vunpack.c.l.b16 %v318
      %v404 = vunpack.c.h.b16 %v318
      %v405 = vunpack.c.l.b16 %v319
      %v406 = vunpack.c.l.b16 %v320
      %v407 = vunpack.c.h.b16 %v320
      %v408 = vunpack.c.l.b16 %v321
      %v409 = vunpack.c.l.b16 %v322
      %v410 = vunpack.c.h.b16 %v322
      %v411 = vunpack.c.l.b16 %v323
      %v412 = vpack.c.b16 %v367, %v364
      %v413 = vpack.c.b16 %v368, %v365
      %v414 = vpack.c.b16 %v369, %v366
      %v415 = vpack.c.b16 %v373, %v370
      %v416 = vpack.c.b16 %v374, %v371
      %v417 = vpack.c.b16 %v375, %v372
      %v418 = vpack.c.b16 %v379, %v376
      %v419 = vpack.c.b16 %v380, %v377
      %v420 = vpack.c.b16 %v381, %v378
      %v421 = vpack.c.b16 %v385, %v382
      %v422 = vpack.c.b16 %v386, %v383
      %v423 = vpack.c.b16 %v387, %v384
      %v424 = vpack.c.b16 %v391, %v388
      %v425 = vpack.c.b16 %v392, %v389
      %v426 = vpack.c.b16 %v393, %v390
      %v427 = vpack.c.b16 %v397, %v394
      %v428 = vpack.c.b16 %v398, %v395
      %v429 = vpack.c.b16 %v399, %v396
      %v430 = vpack.c.b16 %v403, %v400
      %v431 = vpack.c.b16 %v404, %v401
      %v432 = vpack.c.b16 %v405, %v402
      %v433 = vpack.c.b16 %v409, %v406
      %v434 = vpack.c.b16 %v410, %v407
      %v435 = vpack.c.b16 %v411, %v408
      %460 = vmatpush.bf16.msra.mxu0 %v433
      %461 = vmatpush.bf16.msra.mxu0 %v430
      %462 = vmatpush.bf16.msra.mxu0 %v427
      %463 = vmatpush.bf16.msra.mxu0 %v424
      %464 = vmatpush.bf16.msra.mxu0 %v421
      %465 = vmatpush.bf16.msra.mxu0 %v418
      %466 = vmatpush.bf16.msra.mxu0 %v415
      %467 = vmatpush.bf16.msra.mxu0 %v412
      %468 = vmatmul.bf16.gmra.mxu0 %v291
      %v469 = vpop.f32.mrf.mxu0
      %v470 = vadd.f32 %v326, %v469
      %v471 = vpop.f32.mrf.mxu0
      %v472 = vadd.f32 %v326, %v471
      %473 = vdwg.mxu0
      %474 = vmatpush.bf16.msra.mxu0 %v434
      %475 = vmatpush.bf16.msra.mxu0 %v431
      %476 = vmatpush.bf16.msra.mxu0 %v428
      %477 = vmatpush.bf16.msra.mxu0 %v425
      %478 = vmatpush.bf16.msra.mxu0 %v422
      %479 = vmatpush.bf16.msra.mxu0 %v419
      %480 = vmatpush.bf16.msra.mxu0 %v416
      %481 = vmatpush.bf16.msra.mxu0 %v413
      %482 = vmatmul.bf16.gmra.mxu0 %v291
      %v483 = vpop.f32.mrf.mxu0
      %v484 = vadd.f32 %v327, %v483
      %v485 = vpop.f32.mrf.mxu0
      %v486 = vadd.f32 %v327, %v485
      %487 = vdwg.mxu0
      %488 = vmatpush.bf16.msra.mxu0 %v435
      %489 = vmatpush.bf16.msra.mxu0 %v432
      %490 = vmatpush.bf16.msra.mxu0 %v429
      %491 = vmatpush.bf16.msra.mxu0 %v426
      %492 = vmatpush.bf16.msra.mxu0 %v423
      %493 = vmatpush.bf16.msra.mxu0 %v420
      %494 = vmatpush.bf16.msra.mxu0 %v417
      %495 = vmatpush.bf16.msra.mxu0 %v414
      %496 = vmatmul.bf16.gmra.mxu0 %v291
      %v497 = vpop.f32.mrf.mxu0
      %v498 = vadd.f32 %v328, %v497
      %v499 = vpop.f32.mrf.mxu0
      %v500 = vadd.f32 %v328, %v499
      %501 = vdwg.mxu0
      %v502 = vpack.c.bf16 %v484, %v470
      %v503 = vpack.c.bf16 %v498, %v498
      %v504 = vpack.c.bf16 %v486, %v472
      %v505 = vpack.c.bf16 %v500, %v500
      %506 = vst [vmem:[%s228] sm:$0xff] %v502
      %507 = vst [vmem:[%s228 + $0x8] sm:$0xf] %v503
      %508 = vst [vmem:[%s228 + $0xc] sm:$0xff] %v504
      %509 = vst [vmem:[%s228 + $0x14] sm:$0xf] %v505
      %s510 = smul.u32 2, %s16
      %p511 = scmp.lt.s32.totalorder %s510, 3
      %s512 = scalar_select %p511, %s510, 3
      %s513 = smul.addr %s512, 3
      %s514 = smul.addr %s513, 4
      %s515 = scalar_lea.vmem %s5, %s514
      // Predicated region
      $region41: #{vit_forward.9} parent=39 // pred_check
        %p516 = pneg %p144
      $region42: #{vit_forward.9} parent=39 // pred_check_branch
        %518 = sbr.rel (%p516) target = $region44
      $region43: #{vit_forward.9} parent=39 // pred_region
        %s519 = smul.u32 2, %s16
      $region44: #{vit_forward.9} parent=39 // pred_fallthru
        _
    $region40: #{vit_forward.9} parent=5 // pred_fallthru
      _
    %p520 = scmp.le.s32.totalorder 2, %s11
    // Predicated region
    $region45: #{vit_forward.9} parent=5 // pred_check
      %p521 = pneg %p520
    $region46: #{vit_forward.9} parent=5 // pred_check_branch
      %523 = sbr.rel (%p521) target = $region48
    $region47: #{vit_forward.9} parent=5 // pred_region
      %s524 = ssub.s32 %s11, 2
      // Predicated region
      $region49: #{vit_forward.9} parent=47 // pred_check
        %p525 = pneg %p150
      $region50: #{vit_forward.9} parent=47 // pred_check_branch
        %527 = sbr.rel (%p525) target = $region52
      $region51: #{vit_forward.9} parent=47 // pred_region
        %s528 = smul.u32 2, %s17
        %p529 = scmp.lt.s32.totalorder %s528, 3
        %s530 = scalar_select %p529, %s528, 3
        %s531 = smul.addr %s530, 3
        %s532 = smul.addr %s531, 4
        %s533 = scalar_lea.vmem %s5, %s532
      $region52: #{vit_forward.9} parent=47 // pred_fallthru
        _
    $region48: #{vit_forward.9} parent=5 // pred_fallthru
      _
  $region6: #{vit_forward.9} parent=0 // loop_footer
    %s15 = sadd.s32 1, %s11
  $region7: #{vit_forward.9} parent=0 // loop_footer_branch
    %10 = sbr.rel target = $region3
  $region8: #{vit_forward.9} parent=0 // loop_exit
    _

// kernel: vit_forward.11
$region0: #{vit_forward.11}
  #allocation0 [shape = 'u32[]', space=smem, size = 0x4, offset = 0x4, fixed_abs, tag = 'smem constant byte address 0x4 - core index']
  #allocation1 [shape = 'u32[72,128]{1,0:T(1,128)}', space=vmem, size = 0x9000, scoped, tag = 'internal scratch']
  %s0 = inlined_call_operand.vmem [shape: f32[32,128], index: 0, kind: input, shape index: {}]
  %s1 = inlined_call_operand.vmem [shape: f32[1,128], index: 1, kind: input, shape index: {}]
  %s2 = inlined_call_operand.vmem [shape: f32[1,128], index: 2, kind: input, shape index: {}]
  %s3 = inlined_call_operand.vmem [shape: bf16[128,512], index: 3, kind: input, shape index: {}]
  %s4 = inlined_call_operand.vmem [shape: f32[1,512], index: 4, kind: input, shape index: {}]
  %s5 = inlined_call_operand.vmem [shape: bf16[512,128], index: 5, kind: input, shape index: {}]
  %s6 = inlined_call_operand.vmem [shape: f32[1,128], index: 6, kind: input, shape index: {}]
  %s7 = inlined_call_operand.vmem [shape: f32[32,128], index: 7, kind: output, shape index: {}]
  %s8 = sld [smem:[#allocation0]]
  $region61: #{vit_forward.11} parent=0
    _
  %s10 = ssub.s32 1, %s8
  %s11 = scalar_select 0, %s10, %s8
  loop: start=0, step=1, limit=4
  $region2: #{vit_forward.11} parent=0 // loop_pre_header
    _
  $region3: #{vit_forward.11} parent=0 // loop_header
    %s13 = sphi 0, %s17
    %p14 = scmp.ge.s32.totalorder %s13, 4
    %s23 = sphi 0, %s25
    %s26 = sphi 0, %s23
    %s27 = sphi 0, %s26
    %s43 = sphi 0, %s27
    %s47 = sphi 0, %s47
    %s49 = sphi 0, %s47
    %s50 = sphi 0, %s49
    %s64 = sphi 0, %s50
    %s68 = sphi 0, %s68
    %s70 = sphi 0, %s68
    %s71 = sphi 0, %s70
    %s85 = sphi 0, %s71
    %s89 = sphi 0, %s89
    %s91 = sphi 0, %s89
    %s92 = sphi 0, %s91
    %s106 = sphi 0, %s92
    %s110 = sphi 0, %s110
    %s112 = sphi 0, %s110
    %s113 = sphi 0, %s112
    %s127 = sphi 0, %s113
    %s131 = sphi 0, %s131
    %s133 = sphi 0, %s131
    %s134 = sphi 0, %s133
    %s148 = sphi 0, %s134
    %s152 = sphi 0, %s152
    %s154 = sphi 0, %s152
    %s155 = sphi 0, %s154
    %s169 = sphi 0, %s155
    %s175 = sphi 0, %s177
    %s178 = sphi 0, %s175
    %s179 = sphi 0, %s178
    %s195 = sphi 0, %s179
  $region4: #{vit_forward.11} parent=0 // loop_header_branch
    %16 = sbr.rel (%p14) target = $region8
  $region5: #{vit_forward.11} parent=0 // loop_body
    %s18 = ssub.s32 %s13, 1
    %s19 = ssub.s32 %s13, 2
    %s20 = sadd.s32 %s13, 1
    %s21 = ssub.s32 %s13, %s20
    %p22 = scmp.eq.s32.totalorder %s21, 0
    %s24 = sadd.s32 %s23, 1
    %s25 = scalar_select %p22, %s23, %s24
    %p28 = pneg %p22
    %p29 = scmp.eq.s32.totalorder %s13, 1
    %p30 = por %p28, %p29
    %p31 = scmp.ne.s32.totalorder %s23, %s26
    %p32 = scmp.eq.s32.totalorder %s13, 0
    %p33 = por %p31, %p32
    %p34 = scmp.ne.s32.totalorder %s23, %s26
    %p35 = scmp.eq.s32.totalorder %s18, 1
    %p36 = por %p34, %p35
    %p37 = scmp.ne.s32.totalorder %s26, %s27
    %p38 = scmp.eq.s32.totalorder %s18, 0
    %p39 = por %p37, %p38
    %p40 = scmp.ne.s32.totalorder %s26, %s27
    %p41 = scmp.eq.s32.totalorder %s19, 1
    %p42 = por %p40, %p41
    %p44 = scmp.ne.s32.totalorder %s27, %s43
    %p45 = scmp.eq.s32.totalorder %s19, 0
    %p46 = por %p44, %p45
    %s48 = sadd.s32 %s47, 1
    %p51 = scmp.eq.s32.totalorder %s13, 1
    %p52 = scmp.ne.s32.totalorder %s47, %s49
    %p53 = scmp.eq.s32.totalorder %s13, 0
    %p54 = por %p52, %p53
    %p55 = scmp.ne.s32.totalorder %s47, %s49
    %p56 = scmp.eq.s32.totalorder %s18, 1
    %p57 = por %p55, %p56
    %p58 = scmp.ne.s32.totalorder %s49, %s50
    %p59 = scmp.eq.s32.totalorder %s18, 0
    %p60 = por %p58, %p59
    %p61 = scmp.ne.s32.totalorder %s49, %s50
    %p62 = scmp.eq.s32.totalorder %s19, 1
    %p63 = por %p61, %p62
    %p65 = scmp.ne.s32.totalorder %s50, %s64
    %p66 = scmp.eq.s32.totalorder %s19, 0
    %p67 = por %p65, %p66
    %s69 = sadd.s32 %s68, 1
    %p72 = scmp.eq.s32.totalorder %s13, 1
    %p73 = scmp.ne.s32.totalorder %s68, %s70
    %p74 = scmp.eq.s32.totalorder %s13, 0
    %p75 = por %p73, %p74
    %p76 = scmp.ne.s32.totalorder %s68, %s70
    %p77 = scmp.eq.s32.totalorder %s18, 1
    %p78 = por %p76, %p77
    %p79 = scmp.ne.s32.totalorder %s70, %s71
    %p80 = scmp.eq.s32.totalorder %s18, 0
    %p81 = por %p79, %p80
    %p82 = scmp.ne.s32.totalorder %s70, %s71
    %p83 = scmp.eq.s32.totalorder %s19, 1
    %p84 = por %p82, %p83
    %p86 = scmp.ne.s32.totalorder %s71, %s85
    %p87 = scmp.eq.s32.totalorder %s19, 0
    %p88 = por %p86, %p87
    %s90 = sadd.s32 %s89, 1
    %p93 = scmp.eq.s32.totalorder %s13, 1
    %p94 = scmp.ne.s32.totalorder %s89, %s91
    %p95 = scmp.eq.s32.totalorder %s13, 0
    %p96 = por %p94, %p95
    %p97 = scmp.ne.s32.totalorder %s89, %s91
    %p98 = scmp.eq.s32.totalorder %s18, 1
    %p99 = por %p97, %p98
    %p100 = scmp.ne.s32.totalorder %s91, %s92
    %p101 = scmp.eq.s32.totalorder %s18, 0
    %p102 = por %p100, %p101
    %p103 = scmp.ne.s32.totalorder %s91, %s92
    %p104 = scmp.eq.s32.totalorder %s19, 1
    %p105 = por %p103, %p104
    %p107 = scmp.ne.s32.totalorder %s92, %s106
    %p108 = scmp.eq.s32.totalorder %s19, 0
    %p109 = por %p107, %p108
    %s111 = sadd.s32 %s110, 1
    %p114 = scmp.eq.s32.totalorder %s13, 1
    %p115 = scmp.ne.s32.totalorder %s110, %s112
    %p116 = scmp.eq.s32.totalorder %s13, 0
    %p117 = por %p115, %p116
    %p118 = scmp.ne.s32.totalorder %s110, %s112
    %p119 = scmp.eq.s32.totalorder %s18, 1
    %p120 = por %p118, %p119
    %p121 = scmp.ne.s32.totalorder %s112, %s113
    %p122 = scmp.eq.s32.totalorder %s18, 0
    %p123 = por %p121, %p122
    %p124 = scmp.ne.s32.totalorder %s112, %s113
    %p125 = scmp.eq.s32.totalorder %s19, 1
    %p126 = por %p124, %p125
    %p128 = scmp.ne.s32.totalorder %s113, %s127
    %p129 = scmp.eq.s32.totalorder %s19, 0
    %p130 = por %p128, %p129
    %s132 = sadd.s32 %s131, 1
    %p135 = scmp.eq.s32.totalorder %s13, 1
    %p136 = scmp.ne.s32.totalorder %s131, %s133
    %p137 = scmp.eq.s32.totalorder %s13, 0
    %p138 = por %p136, %p137
    %p139 = scmp.ne.s32.totalorder %s131, %s133
    %p140 = scmp.eq.s32.totalorder %s18, 1
    %p141 = por %p139, %p140
    %p142 = scmp.ne.s32.totalorder %s133, %s134
    %p143 = scmp.eq.s32.totalorder %s18, 0
    %p144 = por %p142, %p143
    %p145 = scmp.ne.s32.totalorder %s133, %s134
    %p146 = scmp.eq.s32.totalorder %s19, 1
    %p147 = por %p145, %p146
    %p149 = scmp.ne.s32.totalorder %s134, %s148
    %p150 = scmp.eq.s32.totalorder %s19, 0
    %p151 = por %p149, %p150
    %s153 = sadd.s32 %s152, 1
    %p156 = scmp.eq.s32.totalorder %s13, 1
    %p157 = scmp.ne.s32.totalorder %s152, %s154
    %p158 = scmp.eq.s32.totalorder %s13, 0
    %p159 = por %p157, %p158
    %p160 = scmp.ne.s32.totalorder %s152, %s154
    %p161 = scmp.eq.s32.totalorder %s18, 1
    %p162 = por %p160, %p161
    %p163 = scmp.ne.s32.totalorder %s154, %s155
    %p164 = scmp.eq.s32.totalorder %s18, 0
    %p165 = por %p163, %p164
    %p166 = scmp.ne.s32.totalorder %s154, %s155
    %p167 = scmp.eq.s32.totalorder %s19, 1
    %p168 = por %p166, %p167
    %p170 = scmp.ne.s32.totalorder %s155, %s169
    %p171 = scmp.eq.s32.totalorder %s19, 0
    %p172 = por %p170, %p171
    %s173 = ssub.s32 %s13, %s20
    %p174 = scmp.eq.s32.totalorder %s173, 0
    %s176 = sadd.s32 %s175, 1
    %s177 = scalar_select %p174, %s175, %s176
    %p180 = pneg %p174
    %p181 = scmp.eq.s32.totalorder %s13, 1
    %p182 = por %p180, %p181
    %p183 = scmp.ne.s32.totalorder %s175, %s178
    %p184 = scmp.eq.s32.totalorder %s13, 0
    %p185 = por %p183, %p184
    %p186 = scmp.ne.s32.totalorder %s175, %s178
    %p187 = scmp.eq.s32.totalorder %s18, 1
    %p188 = por %p186, %p187
    %p189 = scmp.ne.s32.totalorder %s178, %s179
    %p190 = scmp.eq.s32.totalorder %s18, 0
    %p191 = por %p189, %p190
    %p192 = scmp.ne.s32.totalorder %s178, %s179
    %p193 = scmp.eq.s32.totalorder %s19, 1
    %p194 = por %p192, %p193
    %p196 = scmp.ne.s32.totalorder %s179, %s195
    %p197 = scmp.eq.s32.totalorder %s19, 0
    %p198 = por %p196, %p197
    %p199 = scmp.le.s32.totalorder 1, %s13
    %p200 = scmp.lt.s32.totalorder %s13, 3
    %p201 = pnand %p199, %p200
    %p202 = pneg %p201
    // Predicated region
    $region9: #{vit_forward.11} parent=5 // pred_check
      _
    $region10: #{vit_forward.11} parent=5 // pred_check_branch
      %204 = sbr.rel (%p201) target = $region12
    $region11: #{vit_forward.11} parent=5 // pred_region
      %s205 = ssub.s32 %s13, 1
      // Predicated region
      $region13: #{vit_forward.11} parent=11 // pred_check
        %p206 = pneg %p60
      $region14: #{vit_forward.11} parent=11 // pred_check_branch
        %208 = sbr.rel (%p206) target = $region16
      $region15: #{vit_forward.11} parent=11 // pred_region
        _
      $region16: #{vit_forward.11} parent=11 // pred_fallthru
        _
      // Predicated region
      $region17: #{vit_forward.11} parent=11 // pred_check
        %p209 = pneg %p81
      $region18: #{vit_forward.11} parent=11 // pred_check_branch
        %211 = sbr.rel (%p209) target = $region20
      $region19: #{vit_forward.11} parent=11 // pred_region
        _
      $region20: #{vit_forward.11} parent=11 // pred_fallthru
        _
      // Predicated region
      $region21: #{vit_forward.11} parent=11 // pred_check
        %p212 = pneg %p102
      $region22: #{vit_forward.11} parent=11 // pred_check_branch
        %214 = sbr.rel (%p212) target = $region24
      $region23: #{vit_forward.11} parent=11 // pred_region
        _
      $region24: #{vit_forward.11} parent=11 // pred_fallthru
        _
      // Predicated region
      $region25: #{vit_forward.11} parent=11 // pred_check
        %p215 = pneg %p123
      $region26: #{vit_forward.11} parent=11 // pred_check_branch
        %217 = sbr.rel (%p215) target = $region28
      $region27: #{vit_forward.11} parent=11 // pred_region
        _
      $region28: #{vit_forward.11} parent=11 // pred_fallthru
        _
      // Predicated region
      $region29: #{vit_forward.11} parent=11 // pred_check
        %p218 = pneg %p144
      $region30: #{vit_forward.11} parent=11 // pred_check_branch
        %220 = sbr.rel (%p218) target = $region32
      $region31: #{vit_forward.11} parent=11 // pred_region
        _
      $region32: #{vit_forward.11} parent=11 // pred_fallthru
        _
      // Predicated region
      $region33: #{vit_forward.11} parent=11 // pred_check
        %p221 = pneg %p165
      $region34: #{vit_forward.11} parent=11 // pred_check_branch
        %223 = sbr.rel (%p221) target = $region36
      $region35: #{vit_forward.11} parent=11 // pred_region
        _
      $region36: #{vit_forward.11} parent=11 // pred_fallthru
        _
    $region12: #{vit_forward.11} parent=5 // pred_fallthru
      _
    %p224 = scmp.lt.s32.totalorder %s13, 2
    // Predicated region
    $region37: #{vit_forward.11} parent=5 // pred_check
      %p225 = pneg %p224
    $region38: #{vit_forward.11} parent=5 // pred_check_branch
      %227 = sbr.rel (%p225) target = $region40
    $region39: #{vit_forward.11} parent=5 // pred_region
      // Predicated region
      $region41: #{vit_forward.11} parent=39 // pred_check
        %p228 = pneg %p33
      $region42: #{vit_forward.11} parent=39 // pred_check_branch
        %230 = sbr.rel (%p228) target = $region44
      $region43: #{vit_forward.11} parent=39 // pred_region
        %s231 = smul.u32 2, %s13
        %p232 = scmp.lt.s32.totalorder %s231, 3
        %s233 = scalar_select %p232, %s231, 3
        %s234 = smul.addr %s233, 8
        %s235 = scalar_lea.vmem %s0, %s234
        %s236 = smul.u32 2, %s13
      $region44: #{vit_forward.11} parent=39 // pred_fallthru
        _
    $region40: #{vit_forward.11} parent=5 // pred_fallthru
      _
    %p237 = scmp.le.s32.totalorder 1, %s13
    %p238 = scmp.lt.s32.totalorder %s13, 3
    %p239 = pnand %p237, %p238
    %p240 = pneg %p239
    // Predicated region
    $region45: #{vit_forward.11} parent=5 // pred_check
      _
    $region46: #{vit_forward.11} parent=5 // pred_check_branch
      %242 = sbr.rel (%p239) target = $region48
    $region47: #{vit_forward.11} parent=5 // pred_region
      %s243 = ssub.s32 %s13, 1
      %s244 = smul.u32 2, %s18
      %p245 = scmp.lt.s32.totalorder %s244, 3
      %s246 = scalar_select %p245, %s244, 3
      %s247 = smul.addr %s246, 8
      %s248 = scalar_lea.vmem %s0, %s247
      %p249 = pneg %p39
      %p250 = pneg %p36
      %p251 = pneg %p60
      %p252 = pneg %p57
      %p253 = pneg %p81
      %p254 = pneg %p78
      %p255 = pneg %p102
      %p256 = pneg %p99
      %p257 = pneg %p123
      %p258 = pneg %p120
      %p259 = pneg %p144
      %p260 = pneg %p141
      %p261 = pneg %p165
      %p262 = pneg %p162
      %p263 = pneg %p191
      %p264 = pneg %p188
      %s265 = smul.u32 2, %s18
      %p266 = scmp.lt.s32.totalorder %s265, 3
      %s267 = scalar_select %p266, %s265, 3
      %s268 = smul.addr %s267, 8
      %s269 = scalar_lea.vmem %s7, %s268
      %s270 = smul.u32 2, %s18
      %p271 = scmp.lt.s32.totalorder %s270, 3
      %s272 = scalar_select %p271, %s270, 3
      %s273 = smul.addr %s272, 8
      %s274 = scalar_lea.vmem %s0, %s273
      %s275 = smul.u32 2, %s18
      %s276 = smul.u32 2, %s18
      %p277 = scmp.lt.s32.totalorder %s276, 3
      %s278 = scalar_select %p277, %s276, 3
      %s279 = smul.addr %s278, 8
      %s280 = scalar_lea.vmem %s7, %s279
      %s281 = smul.u32 2, %s18
      %v282 = vld [vmem:[%s274] sm:$0xff]
      %v283 = vld [vmem:[%s274 + $0x8] sm:$0xff]
      %v284 = vld [vmem:[%s1] sm:$0x1]
      %v285 = vld [vmem:[%s2] sm:$0x1]
      %286 = vadd.xlane.f32.xlu0 %v282
      %v287 = vpop.xlane.xlu0 %286
      %288 = vadd.xlane.f32.xlu0 %v283
      %v289 = vpop.xlane.xlu0 %288
      %v290 = vrcp.pop 128.0
      %v291 = vmul.f32 128.0, %v290
      %v292 = vsub.f32 1.0, %v291
      %v293 = vmul.f32 %v290, %v292
      %v294 = vadd.f32 %v290, %v293
      %vm295 = vweird.f32 %v290
      %v296 = vsel %vm295, %v290, %v294
      %v297 = vmul.f32 %v287, %v296
      %v298 = vmul.f32 %v289, %v296
      %v299 = vsub.f32 %v282, %v297
      %v300 = vsub.f32 %v283, %v298
      %v301 = vmul.f32 %v299, %v299
      %v302 = vmul.f32 %v300, %v300
      %303 = vadd.xlane.f32.xlu0 %v301
      %v304 = vpop.xlane.xlu0 %303
      %305 = vadd.xlane.f32.xlu0 %v302
      %v306 = vpop.xlane.xlu0 %305
      %v307 = vmul.f32 %v304, %v296
      %v308 = vmul.f32 %v306, %v296
      %v309 = vadd.f32 %v307, 1e-05
      %v310 = vadd.f32 %v308, 1e-05
      %v311 = vrsqrt.pop %v309
      %v312 = vmul.f32 %v311, %v309
      %v313 = vmul.f32 %v312, %v311
      %v314 = vmul.f32 0.5, %v313
      %v315 = vsub.f32 1.5, %v314
      %v316 = vmul.f32 %v311, %v315
      %vm317 = vweird.f32 %v309
      %vm318 = vweird.f32 %v311
      %vm319 = vmor %vm317, %vm318
      %v320 = vsel %vm319, %v311, %v316
      %v321 = vrsqrt.pop %v310
      %v322 = vmul.f32 %v321, %v310
      %v323 = vmul.f32 %v322, %v321
      %v324 = vmul.f32 0.5, %v323
      %v325 = vsub.f32 1.5, %v324
      %v326 = vmul.f32 %v321, %v325
      %vm327 = vweird.f32 %v310
      %vm328 = vweird.f32 %v321
      %vm329 = vmor %vm327, %vm328
      %v330 = vsel %vm329, %v321, %v326
      %v331 = vmul.f32 %v299, %v320
      %v332 = vmul.f32 %v300, %v330
      %v334 = vperm.slane %v284, 0
      %v336 = vmul.f32 %v331, %v334
      %v337 = vmul.f32 %v332, %v334
      %v339 = vperm.slane %v285, 0
      %v341 = vadd.f32 %v336, %v339
      %v342 = vadd.f32 %v337, %v339
      %v343 = vpack.c.bf16 %v342, %v341
      %v344 = vld [vmem:[%s3] sm:$0xff]
      %v345 = vld [vmem:[%s3 + $0x8] sm:$0xff]
      %v346 = vld [vmem:[%s3 + $0x10] sm:$0xff]
      %v347 = vld [vmem:[%s3 + $0x18] sm:$0xff]
      %v348 = vld [vmem:[%s3 + $0x20] sm:$0xff]
      %v349 = vld [vmem:[%s3 + $0x28] sm:$0xff]
      %v350 = vld [vmem:[%s3 + $0x30] sm:$0xff]
      %v351 = vld [vmem:[%s3 + $0x38] sm:$0xff]
      %v352 = vld [vmem:[%s3 + $0x40] sm:$0xff]
      %v353 = vld [vmem:[%s3 + $0x48] sm:$0xff]
      %v354 = vld [vmem:[%s3 + $0x50] sm:$0xff]
      %v355 = vld [vmem:[%s3 + $0x58] sm:$0xff]
      %v356 = vld [vmem:[%s3 + $0x60] sm:$0xff]
      %v357 = vld [vmem:[%s3 + $0x68] sm:$0xff]
      %v358 = vld [vmem:[%s3 + $0x70] sm:$0xff]
      %v359 = vld [vmem:[%s3 + $0x78] sm:$0xff]
      %v360 = vld [vmem:[%s3 + $0x80] sm:$0xff]
      %v361 = vld [vmem:[%s3 + $0x88] sm:$0xff]
      %v362 = vld [vmem:[%s3 + $0x90] sm:$0xff]
      %v363 = vld [vmem:[%s3 + $0x98] sm:$0xff]
      %v364 = vld [vmem:[%s3 + $0xa0] sm:$0xff]
      %v365 = vld [vmem:[%s3 + $0xa8] sm:$0xff]
      %v366 = vld [vmem:[%s3 + $0xb0] sm:$0xff]
      %v367 = vld [vmem:[%s3 + $0xb8] sm:$0xff]
      %v368 = vld [vmem:[%s3 + $0xc0] sm:$0xff]
      %v369 = vld [vmem:[%s3 + $0xc8] sm:$0xff]
      %v370 = vld [vmem:[%s3 + $0xd0] sm:$0xff]
      %v371 = vld [vmem:[%s3 + $0xd8] sm:$0xff]
      %v372 = vld [vmem:[%s3 + $0xe0] sm:$0xff]
      %v373 = vld [vmem:[%s3 + $0xe8] sm:$0xff]
      %v374 = vld [vmem:[%s3 + $0xf0] sm:$0xff]
      %v375 = vld [vmem:[%s3 + $0xf8] sm:$0xff]
      %v376 = vld [vmem:[%s4] sm:$0xf]
      %v378 = vperm.slane %v376, 0
      %v379 = vperm.slane %v376, 1
      %v380 = vperm.slane %v376, 2
      %v381 = vperm.slane %v376, 3
      %v418 = vunpack.c.l.b16 %v344
      %v419 = vunpack.c.h.b16 %v344
      %v420 = vunpack.c.l.b16 %v345
      %v421 = vunpack.c.h.b16 %v345
      %v422 = vunpack.c.l.b16 %v346
      %v423 = vunpack.c.h.b16 %v346
      %v424 = vunpack.c.l.b16 %v347
      %v425 = vunpack.c.h.b16 %v347
      %v426 = vunpack.c.l.b16 %v348
      %v427 = vunpack.c.h.b16 %v348
      %v428 = vunpack.c.l.b16 %v349
      %v429 = vunpack.c.h.b16 %v349
      %v430 = vunpack.c.l.b16 %v350
      %v431 = vunpack.c.h.b16 %v350
      %v432 = vunpack.c.l.b16 %v351
      %v433 = vunpack.c.h.b16 %v351
      %v434 = vunpack.c.l.b16 %v352
      %v435 = vunpack.c.h.b16 %v352
      %v436 = vunpack.c.l.b16 %v353
      %v437 = vunpack.c.h.b16 %v353
      %v438 = vunpack.c.l.b16 %v354
      %v439 = vunpack.c.h.b16 %v354
      %v440 = vunpack.c.l.b16 %v355
      %v441 = vunpack.c.h.b16 %v355
      %v442 = vunpack.c.l.b16 %v356
      %v443 = vunpack.c.h.b16 %v356
      %v444 = vunpack.c.l.b16 %v357
      %v445 = vunpack.c.h.b16 %v357
      %v446 = vunpack.c.l.b16 %v358
      %v447 = vunpack.c.h.b16 %v358
      %v448 = vunpack.c.l.b16 %v359
      %v449 = vunpack.c.h.b16 %v359
      %v450 = vunpack.c.l.b16 %v360
      %v451 = vunpack.c.h.b16 %v360
      %v452 = vunpack.c.l.b16 %v361
      %v453 = vunpack.c.h.b16 %v361
      %v454 = vunpack.c.l.b16 %v362
      %v455 = vunpack.c.h.b16 %v362
      %v456 = vunpack.c.l.b16 %v363
      %v457 = vunpack.c.h.b16 %v363
      %v458 = vunpack.c.l.b16 %v364
      %v459 = vunpack.c.h.b16 %v364
      %v460 = vunpack.c.l.b16 %v365
      %v461 = vunpack.c.h.b16 %v365
      %v462 = vunpack.c.l.b16 %v366
      %v463 = vunpack.c.h.b16 %v366
      %v464 = vunpack.c.l.b16 %v367
      %v465 = vunpack.c.h.b16 %v367
      %v466 = vunpack.c.l.b16 %v368
      %v467 = vunpack.c.h.b16 %v368
      %v468 = vunpack.c.l.b16 %v369
      %v469 = vunpack.c.h.b16 %v369
      %v470 = vunpack.c.l.b16 %v370
      %v471 = vunpack.c.h.b16 %v370
      %v472 = vunpack.c.l.b16 %v371
      %v473 = vunpack.c.h.b16 %v371
      %v474 = vunpack.c.l.b16 %v372
      %v475 = vunpack.c.h.b16 %v372
      %v476 = vunpack.c.l.b16 %v373
      %v477 = vunpack.c.h.b16 %v373
      %v478 = vunpack.c.l.b16 %v374
      %v479 = vunpack.c.h.b16 %v374
      %v480 = vunpack.c.l.b16 %v375
      %v481 = vunpack.c.h.b16 %v375
      %v482 = vpack.c.b16 %v422, %v418
      %v483 = vpack.c.b16 %v423, %v419
      %v484 = vpack.c.b16 %v424, %v420
      %v485 = vpack.c.b16 %v425, %v421
      %v486 = vpack.c.b16 %v430, %v426
      %v487 = vpack.c.b16 %v431, %v427
      %v488 = vpack.c.b16 %v432, %v428
      %v489 = vpack.c.b16 %v433, %v429
      %v490 = vpack.c.b16 %v438, %v434
      %v491 = vpack.c.b16 %v439, %v435
      %v492 = vpack.c.b16 %v440, %v436
      %v493 = vpack.c.b16 %v441, %v437
      %v494 = vpack.c.b16 %v446, %v442
      %v495 = vpack.c.b16 %v447, %v443
      %v496 = vpack.c.b16 %v448, %v444
      %v497 = vpack.c.b16 %v449, %v445
      %v498 = vpack.c.b16 %v454, %v450
      %v499 = vpack.c.b16 %v455, %v451
      %v500 = vpack.c.b16 %v456, %v452
      %v501 = vpack.c.b16 %v457, %v453
      %v502 = vpack.c.b16 %v462, %v458
      %v503 = vpack.c.b16 %v463, %v459
      %v504 = vpack.c.b16 %v464, %v460
      %v505 = vpack.c.b16 %v465, %v461
      %v506 = vpack.c.b16 %v470, %v466
      %v507 = vpack.c.b16 %v471, %v467
      %v508 = vpack.c.b16 %v472, %v468
      %v509 = vpack.c.b16 %v473, %v469
      %v510 = vpack.c.b16 %v478, %v474
      %v511 = vpack.c.b16 %v479, %v475
      %v512 = vpack.c.b16 %v480, %v476
      %v513 = vpack.c.b16 %v481, %v477
      %546 = vmatpush.bf16.msra.mxu0 %v510
      %547 = vmatpush.bf16.msra.mxu0 %v506
      %548 = vmatpush.bf16.msra.mxu0 %v502
      %549 = vmatpush.bf16.msra.mxu0 %v498
      %550 = vmatpush.bf16.msra.mxu0 %v494
      %551 = vmatpush.bf16.msra.mxu0 %v490
      %552 = vmatpush.bf16.msra.mxu0 %v486
      %553 = vmatpush.bf16.msra.mxu0 %v482
      %554 = vmatmul.bf16.gmra.mxu0 %v343
      %v555 = vpop.f32.mrf.mxu0
      %v556 = vadd.f32 %v378, %v555
      %v557 = vpop.f32.mrf.mxu0
      %v558 = vadd.f32 %v378, %v557
      %559 = vdwg.mxu0
      %560 = vmatpush.bf16.msra.mxu0 %v511
      %561 = vmatpush.bf16.msra.mxu0 %v507
      %562 = vmatpush.bf16.msra.mxu0 %v503
      %563 = vmatpush.bf16.msra.mxu0 %v499
      %564 = vmatpush.bf16.msra.mxu0 %v495
      %565 = vmatpush.bf16.msra.mxu0 %v491
      %566 = vmatpush.bf16.msra.mxu0 %v487
      %567 = vmatpush.bf16.msra.mxu0 %v483
      %568 = vmatmul.bf16.gmra.mxu0 %v343
      %v569 = vpop.f32.mrf.mxu0
      %v570 = vadd.f32 %v379, %v569
      %v571 = vpop.f32.mrf.mxu0
      %v572 = vadd.f32 %v379, %v571
      %573 = vdwg.mxu0
      %574 = vmatpush.bf16.msra.mxu0 %v512
      %575 = vmatpush.bf16.msra.mxu0 %v508
      %576 = vmatpush.bf16.msra.mxu0 %v504
      %577 = vmatpush.bf16.msra.mxu0 %v500
      %578 = vmatpush.bf16.msra.mxu0 %v496
      %579 = vmatpush.bf16.msra.mxu0 %v492
      %580 = vmatpush.bf16.msra.mxu0 %v488
      %581 = vmatpush.bf16.msra.mxu0 %v484
      %582 = vmatmul.bf16.gmra.mxu0 %v343
      %v583 = vpop.f32.mrf.mxu0
      %v584 = vadd.f32 %v380, %v583
      %v585 = vpop.f32.mrf.mxu0
      %v586 = vadd.f32 %v380, %v585
      %587 = vdwg.mxu0
      %588 = vmatpush.bf16.msra.mxu0 %v513
      %589 = vmatpush.bf16.msra.mxu0 %v509
      %590 = vmatpush.bf16.msra.mxu0 %v505
      %591 = vmatpush.bf16.msra.mxu0 %v501
      %592 = vmatpush.bf16.msra.mxu0 %v497
      %593 = vmatpush.bf16.msra.mxu0 %v493
      %594 = vmatpush.bf16.msra.mxu0 %v489
      %595 = vmatpush.bf16.msra.mxu0 %v485
      %596 = vmatmul.bf16.gmra.mxu0 %v343
      %v597 = vpop.f32.mrf.mxu0
      %v598 = vadd.f32 %v381, %v597
      %v599 = vpop.f32.mrf.mxu0
      %v600 = vadd.f32 %v381, %v599
      %601 = vdwg.mxu0
      %v602 = vmul.f32 %v556, %v556
      %v603 = vmul.f32 %v570, %v570
      %v604 = vmul.f32 %v584, %v584
      %v605 = vmul.f32 %v598, %v598
      %v606 = vmul.f32 %v558, %v558
      %v607 = vmul.f32 %v572, %v572
      %v608 = vmul.f32 %v586, %v586
      %v609 = vmul.f32 %v600, %v600
      %v610 = vmul.f32 %v556, %v602
      %v611 = vmul.f32 %v570, %v603
      %v612 = vmul.f32 %v584, %v604
      %v613 = vmul.f32 %v598, %v605
      %v614 = vmul.f32 %v558, %v606
      %v615 = vmul.f32 %v572, %v607
      %v616 = vmul.f32 %v586, %v608
      %v617 = vmul.f32 %v600, %v609
      %v618 = vmul.f32 %v610, 0.044715
      %v619 = vmul.f32 %v611, 0.044715
      %v620 = vmul.f32 %v612, 0.044715
      %v621 = vmul.f32 %v613, 0.044715
      %v622 = vmul.f32 %v614, 0.044715
      %v623 = vmul.f32 %v615, 0.044715
      %v624 = vmul.f32 %v616, 0.044715
      %v625 = vmul.f32 %v617, 0.044715
      %v626 = vadd.f32 %v556, %v618
      %v627 = vadd.f32 %v570, %v619
      %v628 = vadd.f32 %v584, %v620
      %v629 = vadd.f32 %v598, %v621
      %v630 = vadd.f32 %v558, %v622
      %v631 = vadd.f32 %v572, %v623
      %v632 = vadd.f32 %v586, %v624
      %v633 = vadd.f32 %v600, %v625
      %v634 = vmul.f32 %v626, 0.7978846
      %v635 = vmul.f32 %v627, 0.7978846
      %v636 = vmul.f32 %v628, 0.7978846
      %v637 = vmul.f32 %v629, 0.7978846
      %v638 = vmul.f32 %v630, 0.7978846
      %v639 = vmul.f32 %v631, 0.7978846
      %v640 = vmul.f32 %v632, 0.7978846
      %v641 = vmul.f32 %v633, 0.7978846
      %v642 = vtanh.pop %v634
      %v643 = vtanh.pop %v635
      %v644 = vtanh.pop %v636
      %v645 = vtanh.pop %v637
      %v646 = vtanh.pop %v638
      %v647 = vtanh.pop %v639
      %v648 = vtanh.pop %v640
      %v649 = vtanh.pop %v641
      %v650 = vadd.f32 %v642, 1.0
      %v651 = vadd.f32 %v643, 1.0
      %v652 = vadd.f32 %v644, 1.0
      %v653 = vadd.f32 %v645, 1.0
      %v654 = vadd.f32 %v646, 1.0
      %v655 = vadd.f32 %v647, 1.0
      %v656 = vadd.f32 %v648, 1.0
      %v657 = vadd.f32 %v649, 1.0
      %v658 = vmul.f32 %v650, 0.5
      %v659 = vmul.f32 %v651, 0.5
      %v660 = vmul.f32 %v652, 0.5
      %v661 = vmul.f32 %v653, 0.5
      %v662 = vmul.f32 %v654, 0.5
      %v663 = vmul.f32 %v655, 0.5
      %v664 = vmul.f32 %v656, 0.5
      %v665 = vmul.f32 %v657, 0.5
      %v666 = vmul.f32 %v556, %v658
      %v667 = vmul.f32 %v570, %v659
      %v668 = vmul.f32 %v584, %v660
      %v669 = vmul.f32 %v598, %v661
      %v670 = vmul.f32 %v558, %v662
      %v671 = vmul.f32 %v572, %v663
      %v672 = vmul.f32 %v586, %v664
      %v673 = vmul.f32 %v600, %v665
      %v674 = vpack.c.bf16 %v670, %v666
      %v675 = vpack.c.bf16 %v671, %v667
      %v676 = vpack.c.bf16 %v672, %v668
      %v677 = vpack.c.bf16 %v673, %v669
      %v678 = vld [vmem:[%s5] sm:$0xf]
      %v679 = vld [vmem:[%s5 + $0x4] sm:$0xf]
      %v680 = vld [vmem:[%s5 + $0x8] sm:$0xf]
      %v681 = vld [vmem:[%s5 + $0xc] sm:$0xf]
      %v682 = vld [vmem:[%s5 + $0x10] sm:$0xf]
      %v683 = vld [vmem:[%s5 + $0x14] sm:$0xf]
      %v684 = vld [vmem:[%s5 + $0x18] sm:$0xf]
      %v685 = vld [vmem:[%s5 + $0x1c] sm:$0xf]
      %v686 = vld [vmem:[%s5 + $0x20] sm:$0xf]
      %v687 = vld [vmem:[%s5 + $0x24] sm:$0xf]
      %v688 = vld [vmem:[%s5 + $0x28] sm:$0xf]
      %v689 = vld [vmem:[%s5 + $0x2c] sm:$0xf]
      %v690 = vld [vmem:[%s5 + $0x30] sm:$0xf]
      %v691 = vld [vmem:[%s5 + $0x34] sm:$0xf]
      %v692 = vld [vmem:[%s5 + $0x38] sm:$0xf]
      %v693 = vld [vmem:[%s5 + $0x3c] sm:$0xf]
      %v694 = vld [vmem:[%s5 + $0x40] sm:$0xf]
      %v695 = vld [vmem:[%s5 + $0x44] sm:$0xf]
      %v696 = vld [vmem:[%s5 + $0x48] sm:$0xf]
      %v697 = vld [vmem:[%s5 + $0x4c] sm:$0xf]
      %v698 = vld [vmem:[%s5 + $0x50] sm:$0xf]
      %v699 = vld [vmem:[%s5 + $0x54] sm:$0xf]
      %v700 = vld [vmem:[%s5 + $0x58] sm:$0xf]
      %v701 = vld [vmem:[%s5 + $0x5c] sm:$0xf]
      %v702 = vld [vmem:[%s5 + $0x60] sm:$0xf]
      %v703 = vld [vmem:[%s5 + $0x64] sm:$0xf]
      %v704 = vld [vmem:[%s5 + $0x68] sm:$0xf]
      %v705 = vld [vmem:[%s5 + $0x6c] sm:$0xf]
      %v706 = vld [vmem:[%s5 + $0x70] sm:$0xf]
      %v707 = vld [vmem:[%s5 + $0x74] sm:$0xf]
      %v708 = vld [vmem:[%s5 + $0x78] sm:$0xf]
      %v709 = vld [vmem:[%s5 + $0x7c] sm:$0xf]
      %v710 = vld [vmem:[%s5 + $0x80] sm:$0xf]
      %v711 = vld [vmem:[%s5 + $0x84] sm:$0xf]
      %v712 = vld [vmem:[%s5 + $0x88] sm:$0xf]
      %v713 = vld [vmem:[%s5 + $0x8c] sm:$0xf]
      %v714 = vld [vmem:[%s5 + $0x90] sm:$0xf]
      %v715 = vld [vmem:[%s5 + $0x94] sm:$0xf]
      %v716 = vld [vmem:[%s5 + $0x98] sm:$0xf]
      %v717 = vld [vmem:[%s5 + $0x9c] sm:$0xf]
      %v718 = vld [vmem:[%s5 + $0xa0] sm:$0xf]
      %v719 = vld [vmem:[%s5 + $0xa4] sm:$0xf]
      %v720 = vld [vmem:[%s5 + $0xa8] sm:$0xf]
      %v721 = vld [vmem:[%s5 + $0xac] sm:$0xf]
      %v722 = vld [vmem:[%s5 + $0xb0] sm:$0xf]
      %v723 = vld [vmem:[%s5 + $0xb4] sm:$0xf]
      %v724 = vld [vmem:[%s5 + $0xb8] sm:$0xf]
      %v725 = vld [vmem:[%s5 + $0xbc] sm:$0xf]
      %v726 = vld [vmem:[%s5 + $0xc0] sm:$0xf]
      %v727 = vld [vmem:[%s5 + $0xc4] sm:$0xf]
      %v728 = vld [vmem:[%s5 + $0xc8] sm:$0xf]
      %v729 = vld [vmem:[%s5 + $0xcc] sm:$0xf]
      %v730 = vld [vmem:[%s5 + $0xd0] sm:$0xf]
      %v731 = vld [vmem:[%s5 + $0xd4] sm:$0xf]
      %v732 = vld [vmem:[%s5 + $0xd8] sm:$0xf]
      %v733 = vld [vmem:[%s5 + $0xdc] sm:$0xf]
      %v734 = vld [vmem:[%s5 + $0xe0] sm:$0xf]
      %v735 = vld [vmem:[%s5 + $0xe4] sm:$0xf]
      %v736 = vld [vmem:[%s5 + $0xe8] sm:$0xf]
      %v737 = vld [vmem:[%s5 + $0xec] sm:$0xf]
      %v738 = vld [vmem:[%s5 + $0xf0] sm:$0xf]
      %v739 = vld [vmem:[%s5 + $0xf4] sm:$0xf]
      %v740 = vld [vmem:[%s5 + $0xf8] sm:$0xf]
      %v741 = vld [vmem:[%s5 + $0xfc] sm:$0xf]
      %v742 = vld [vmem:[%s6] sm:$0x1]
      %v744 = vperm.slane %v742, 0
      %v810 = vunpack.c.l.b16 %v678
      %v811 = vunpack.c.l.b16 %v679
      %v812 = vunpack.c.l.b16 %v680
      %v813 = vunpack.c.l.b16 %v681
      %v814 = vunpack.c.l.b16 %v682
      %v815 = vunpack.c.l.b16 %v683
      %v816 = vunpack.c.l.b16 %v684
      %v817 = vunpack.c.l.b16 %v685
      %v818 = vunpack.c.l.b16 %v686
      %v819 = vunpack.c.l.b16 %v687
      %v820 = vunpack.c.l.b16 %v688
      %v821 = vunpack.c.l.b16 %v689
      %v822 = vunpack.c.l.b16 %v690
      %v823 = vunpack.c.l.b16 %v691
      %v824 = vunpack.c.l.b16 %v692
      %v825 = vunpack.c.l.b16 %v693
      %v826 = vunpack.c.l.b16 %v694
      %v827 = vunpack.c.l.b16 %v695
      %v828 = vunpack.c.l.b16 %v696
      %v829 = vunpack.c.l.b16 %v697
      %v830 = vunpack.c.l.b16 %v698
      %v831 = vunpack.c.l.b16 %v699
      %v832 = vunpack.c.l.b16 %v700
      %v833 = vunpack.c.l.b16 %v701
      %v834 = vunpack.c.l.b16 %v702
      %v835 = vunpack.c.l.b16 %v703
      %v836 = vunpack.c.l.b16 %v704
      %v837 = vunpack.c.l.b16 %v705
      %v838 = vunpack.c.l.b16 %v706
      %v839 = vunpack.c.l.b16 %v707
      %v840 = vunpack.c.l.b16 %v708
      %v841 = vunpack.c.l.b16 %v709
      %v842 = vunpack.c.l.b16 %v710
      %v843 = vunpack.c.l.b16 %v711
      %v844 = vunpack.c.l.b16 %v712
      %v845 = vunpack.c.l.b16 %v713
      %v846 = vunpack.c.l.b16 %v714
      %v847 = vunpack.c.l.b16 %v715
      %v848 = vunpack.c.l.b16 %v716
      %v849 = vunpack.c.l.b16 %v717
      %v850 = vunpack.c.l.b16 %v718
      %v851 = vunpack.c.l.b16 %v719
      %v852 = vunpack.c.l.b16 %v720
      %v853 = vunpack.c.l.b16 %v721
      %v854 = vunpack.c.l.b16 %v722
      %v855 = vunpack.c.l.b16 %v723
      %v856 = vunpack.c.l.b16 %v724
      %v857 = vunpack.c.l.b16 %v725
      %v858 = vunpack.c.l.b16 %v726
      %v859 = vunpack.c.l.b16 %v727
      %v860 = vunpack.c.l.b16 %v728
      %v861 = vunpack.c.l.b16 %v729
      %v862 = vunpack.c.l.b16 %v730
      %v863 = vunpack.c.l.b16 %v731
      %v864 = vunpack.c.l.b16 %v732
      %v865 = vunpack.c.l.b16 %v733
      %v866 = vunpack.c.l.b16 %v734
      %v867 = vunpack.c.l.b16 %v735
      %v868 = vunpack.c.l.b16 %v736
      %v869 = vunpack.c.l.b16 %v737
      %v870 = vunpack.c.l.b16 %v738
      %v871 = vunpack.c.l.b16 %v739
      %v872 = vunpack.c.l.b16 %v740
      %v873 = vunpack.c.l.b16 %v741
      %v874 = vpack.c.b16 %v811, %v810
      %v875 = vpack.c.b16 %v813, %v812
      %v876 = vpack.c.b16 %v815, %v814
      %v877 = vpack.c.b16 %v817, %v816
      %v878 = vpack.c.b16 %v819, %v818
      %v879 = vpack.c.b16 %v821, %v820
      %v880 = vpack.c.b16 %v823, %v822
      %v881 = vpack.c.b16 %v825, %v824
      %v882 = vpack.c.b16 %v827, %v826
      %v883 = vpack.c.b16 %v829, %v828
      %v884 = vpack.c.b16 %v831, %v830
      %v885 = vpack.c.b16 %v833, %v832
      %v886 = vpack.c.b16 %v835, %v834
      %v887 = vpack.c.b16 %v837, %v836
      %v888 = vpack.c.b16 %v839, %v838
      %v889 = vpack.c.b16 %v841, %v840
      %v890 = vpack.c.b16 %v843, %v842
      %v891 = vpack.c.b16 %v845, %v844
      %v892 = vpack.c.b16 %v847, %v846
      %v893 = vpack.c.b16 %v849, %v848
      %v894 = vpack.c.b16 %v851, %v850
      %v895 = vpack.c.b16 %v853, %v852
      %v896 = vpack.c.b16 %v855, %v854
      %v897 = vpack.c.b16 %v857, %v856
      %v898 = vpack.c.b16 %v859, %v858
      %v899 = vpack.c.b16 %v861, %v860
      %v900 = vpack.c.b16 %v863, %v862
      %v901 = vpack.c.b16 %v865, %v864
      %v902 = vpack.c.b16 %v867, %v866
      %v903 = vpack.c.b16 %v869, %v868
      %v904 = vpack.c.b16 %v871, %v870
      %v905 = vpack.c.b16 %v873, %v872
      %938 = vmatpush.bf16.msra.mxu0 %v881
      %939 = vmatpush.bf16.msra.mxu0 %v880
      %940 = vmatpush.bf16.msra.mxu0 %v879
      %941 = vmatpush.bf16.msra.mxu0 %v878
      %942 = vmatpush.bf16.msra.mxu0 %v877
      %943 = vmatpush.bf16.msra.mxu0 %v876
      %944 = vmatpush.bf16.msra.mxu0 %v875
      %945 = vmatpush.bf16.msra.mxu0 %v874
      %946 = vmatmul.bf16.gmra.mxu0 %v674
      %v947 = vpop.f32.mrf.mxu0
      %v948 = vadd.f32 %v744, %v947
      %v949 = vpop.f32.mrf.mxu0
      %v950 = vadd.f32 %v744, %v949
      %951 = vdwg.mxu0
      %952 = vmatpush.bf16.msra.mxu0 %v889
      %953 = vmatpush.bf16.msra.mxu0 %v888
      %954 = vmatpush.bf16.msra.mxu0 %v887
      %955 = vmatpush.bf16.msra.mxu0 %v886
      %956 = vmatpush.bf16.msra.mxu0 %v885
      %957 = vmatpush.bf16.msra.mxu0 %v884
      %958 = vmatpush.bf16.msra.mxu0 %v883
      %959 = vmatpush.bf16.msra.mxu0 %v882
      %960 = vmatmul.bf16.gmra.mxu0 %v675
      %v961 = vpop.f32.mrf.mxu0
      %v962 = vadd.f32 %v948, %v961
      %v963 = vpop.f32.mrf.mxu0
      %v964 = vadd.f32 %v950, %v963
      %965 = vdwg.mxu0
      %966 = vmatpush.bf16.msra.mxu0 %v897
      %967 = vmatpush.bf16.msra.mxu0 %v896
      %968 = vmatpush.bf16.msra.mxu0 %v895
      %969 = vmatpush.bf16.msra.mxu0 %v894
      %970 = vmatpush.bf16.msra.mxu0 %v893
      %971 = vmatpush.bf16.msra.mxu0 %v892
      %972 = vmatpush.bf16.msra.mxu0 %v891
      %973 = vmatpush.bf16.msra.mxu0 %v890
      %974 = vmatmul.bf16.gmra.mxu0 %v676
      %v975 = vpop.f32.mrf.mxu0
      %v976 = vadd.f32 %v962, %v975
      %v977 = vpop.f32.mrf.mxu0
      %v978 = vadd.f32 %v964, %v977
      %979 = vdwg.mxu0
      %980 = vmatpush.bf16.msra.mxu0 %v905
      %981 = vmatpush.bf16.msra.mxu0 %v904
      %982 = vmatpush.bf16.msra.mxu0 %v903
      %983 = vmatpush.bf16.msra.mxu0 %v902
      %984 = vmatpush.bf16.msra.mxu0 %v901
      %985 = vmatpush.bf16.msra.mxu0 %v900
      %986 = vmatpush.bf16.msra.mxu0 %v899
      %987 = vmatpush.bf16.msra.mxu0 %v898
      %988 = vmatmul.bf16.gmra.mxu0 %v677
      %v989 = vpop.f32.mrf.mxu0
      %v990 = vadd.f32 %v976, %v989
      %v991 = vpop.f32.mrf.mxu0
      %v992 = vadd.f32 %v978, %v991
      %993 = vdwg.mxu0
      %v994 = vadd.f32 %v990, %v282
      %v995 = vadd.f32 %v992, %v283
      %996 = vst [vmem:[%s280] sm:$0xff] %v994
      %997 = vst [vmem:[%s280 + $0x8] sm:$0xff] %v995
      %s998 = smul.u32 2, %s18
      %p999 = scmp.lt.s32.totalorder %s998, 3
      %s1000 = scalar_select %p999, %s998, 3
      %s1001 = smul.addr %s1000, 8
      %s1002 = scalar_lea.vmem %s7, %s1001
      // Predicated region
      $region49: #{vit_forward.11} parent=47 // pred_check
        %p1003 = pneg %p188
      $region50: #{vit_forward.11} parent=47 // pred_check_branch
        %1005 = sbr.rel (%p1003) target = $region52
      $region51: #{vit_forward.11} parent=47 // pred_region
        %s1006 = smul.u32 2, %s18
      $region52: #{vit_forward.11} parent=47 // pred_fallthru
        _
    $region48: #{vit_forward.11} parent=5 // pred_fallthru
      _
    %p1007 = scmp.le.s32.totalorder 2, %s13
    // Predicated region
    $region53: #{vit_forward.11} parent=5 // pred_check
      %p1008 = pneg %p1007
    $region54: #{vit_forward.11} parent=5 // pred_check_branch
      %1010 = sbr.rel (%p1008) target = $region56
    $region55: #{vit_forward.11} parent=5 // pred_region
      %s1011 = ssub.s32 %s13, 2
      // Predicated region
      $region57: #{vit_forward.11} parent=55 // pred_check
        %p1012 = pneg %p194
      $region58: #{vit_forward.11} parent=55 // pred_check_branch
        %1014 = sbr.rel (%p1012) target = $region60
      $region59: #{vit_forward.11} parent=55 // pred_region
        %s1015 = smul.u32 2, %s19
        %p1016 = scmp.lt.s32.totalorder %s1015, 3
        %s1017 = scalar_select %p1016, %s1015, 3
        %s1018 = smul.addr %s1017, 8
        %s1019 = scalar_lea.vmem %s7, %s1018
      $region60: #{vit_forward.11} parent=55 // pred_fallthru
        _
    $region56: #{vit_forward.11} parent=5 // pred_fallthru
      _
  $region6: #{vit_forward.11} parent=0 // loop_footer
    %s17 = sadd.s32 1, %s13
  $region7: #{vit_forward.11} parent=0 // loop_footer_branch
    %12 = sbr.rel target = $region3
  $region8: #{vit_forward.11} parent=0 // loop_exit
    _

// kernel: vit_forward.10
$region0: #{vit_forward.10}
  #allocation0 [shape = 'u32[]', space=smem, size = 0x4, offset = 0x4, fixed_abs, tag = 'smem constant byte address 0x4 - core index']
  #allocation1 [shape = 'u32[72,128]{1,0:T(1,128)}', space=vmem, size = 0x9000, scoped, tag = 'internal scratch']
  #allocation2 [shape = 'f32[16,128]{1,0:T(8,128)}', space=vmem, size = 0x2000, scoped, tag = 'scratch operand']
  %s0 = inlined_call_operand.vmem [shape: bf16[2,16,384], index: 0, kind: input, shape index: {}]
  %s1 = inlined_call_operand.vmem [shape: bf16[128,128], index: 1, kind: input, shape index: {}]
  %s2 = inlined_call_operand.vmem [shape: f32[1,128], index: 2, kind: input, shape index: {}]
  %s3 = inlined_call_operand.vmem [shape: f32[2,16,128], index: 3, kind: input, shape index: {}]
  %s4 = inlined_call_operand.vmem [shape: f32[2,16,128], index: 4, kind: output, shape index: {}]
  %s5 = sld [smem:[#allocation0]]
  $region49: #{vit_forward.10} parent=0
    _
  %s7 = ssub.s32 1, %s5
  %s8 = scalar_select 0, %s7, %s5
  loop: start=0, step=1, limit=4
  $region2: #{vit_forward.10} parent=0 // loop_pre_header
    _
  $region3: #{vit_forward.10} parent=0 // loop_header
    %s10 = sphi 0, %s14
    %p11 = scmp.ge.s32.totalorder %s10, 4
    %s20 = sphi 0, %s22
    %s23 = sphi 0, %s20
    %s24 = sphi 0, %s23
    %s40 = sphi 0, %s24
    %s44 = sphi 0, %s44
    %s46 = sphi 0, %s44
    %s47 = sphi 0, %s46
    %s61 = sphi 0, %s47
    %s65 = sphi 0, %s65
    %s67 = sphi 0, %s65
    %s68 = sphi 0, %s67
    %s82 = sphi 0, %s68
    %s88 = sphi 0, %s90
    %s91 = sphi 0, %s88
    %s92 = sphi 0, %s91
    %s108 = sphi 0, %s92
    %s114 = sphi 0, %s116
    %s117 = sphi 0, %s114
    %s118 = sphi 0, %s117
    %s134 = sphi 0, %s118
  $region4: #{vit_forward.10} parent=0 // loop_header_branch
    %13 = sbr.rel (%p11) target = $region8
  $region5: #{vit_forward.10} parent=0 // loop_body
    %s15 = ssub.s32 %s10, 1
    %s16 = ssub.s32 %s10, 2
    %s17 = sadd.s32 %s10, 1
    %s18 = ssub.s32 %s10, %s17
    %p19 = scmp.eq.s32.totalorder %s18, 0
    %s21 = sadd.s32 %s20, 1
    %s22 = scalar_select %p19, %s20, %s21
    %p25 = pneg %p19
    %p26 = scmp.eq.s32.totalorder %s10, 1
    %p27 = por %p25, %p26
    %p28 = scmp.ne.s32.totalorder %s20, %s23
    %p29 = scmp.eq.s32.totalorder %s10, 0
    %p30 = por %p28, %p29
    %p31 = scmp.ne.s32.totalorder %s20, %s23
    %p32 = scmp.eq.s32.totalorder %s15, 1
    %p33 = por %p31, %p32
    %p34 = scmp.ne.s32.totalorder %s23, %s24
    %p35 = scmp.eq.s32.totalorder %s15, 0
    %p36 = por %p34, %p35
    %p37 = scmp.ne.s32.totalorder %s23, %s24
    %p38 = scmp.eq.s32.totalorder %s16, 1
    %p39 = por %p37, %p38
    %p41 = scmp.ne.s32.totalorder %s24, %s40
    %p42 = scmp.eq.s32.totalorder %s16, 0
    %p43 = por %p41, %p42
    %s45 = sadd.s32 %s44, 1
    %p48 = scmp.eq.s32.totalorder %s10, 1
    %p49 = scmp.ne.s32.totalorder %s44, %s46
    %p50 = scmp.eq.s32.totalorder %s10, 0
    %p51 = por %p49, %p50
    %p52 = scmp.ne.s32.totalorder %s44, %s46
    %p53 = scmp.eq.s32.totalorder %s15, 1
    %p54 = por %p52, %p53
    %p55 = scmp.ne.s32.totalorder %s46, %s47
    %p56 = scmp.eq.s32.totalorder %s15, 0
    %p57 = por %p55, %p56
    %p58 = scmp.ne.s32.totalorder %s46, %s47
    %p59 = scmp.eq.s32.totalorder %s16, 1
    %p60 = por %p58, %p59
    %p62 = scmp.ne.s32.totalorder %s47, %s61
    %p63 = scmp.eq.s32.totalorder %s16, 0
    %p64 = por %p62, %p63
    %s66 = sadd.s32 %s65, 1
    %p69 = scmp.eq.s32.totalorder %s10, 1
    %p70 = scmp.ne.s32.totalorder %s65, %s67
    %p71 = scmp.eq.s32.totalorder %s10, 0
    %p72 = por %p70, %p71
    %p73 = scmp.ne.s32.totalorder %s65, %s67
    %p74 = scmp.eq.s32.totalorder %s15, 1
    %p75 = por %p73, %p74
    %p76 = scmp.ne.s32.totalorder %s67, %s68
    %p77 = scmp.eq.s32.totalorder %s15, 0
    %p78 = por %p76, %p77
    %p79 = scmp.ne.s32.totalorder %s67, %s68
    %p80 = scmp.eq.s32.totalorder %s16, 1
    %p81 = por %p79, %p80
    %p83 = scmp.ne.s32.totalorder %s68, %s82
    %p84 = scmp.eq.s32.totalorder %s16, 0
    %p85 = por %p83, %p84
    %s86 = ssub.s32 %s10, %s17
    %p87 = scmp.eq.s32.totalorder %s86, 0
    %s89 = sadd.s32 %s88, 1
    %s90 = scalar_select %p87, %s88, %s89
    %p93 = pneg %p87
    %p94 = scmp.eq.s32.totalorder %s10, 1
    %p95 = por %p93, %p94
    %p96 = scmp.ne.s32.totalorder %s88, %s91
    %p97 = scmp.eq.s32.totalorder %s10, 0
    %p98 = por %p96, %p97
    %p99 = scmp.ne.s32.totalorder %s88, %s91
    %p100 = scmp.eq.s32.totalorder %s15, 1
    %p101 = por %p99, %p100
    %p102 = scmp.ne.s32.totalorder %s91, %s92
    %p103 = scmp.eq.s32.totalorder %s15, 0
    %p104 = por %p102, %p103
    %p105 = scmp.ne.s32.totalorder %s91, %s92
    %p106 = scmp.eq.s32.totalorder %s16, 1
    %p107 = por %p105, %p106
    %p109 = scmp.ne.s32.totalorder %s92, %s108
    %p110 = scmp.eq.s32.totalorder %s16, 0
    %p111 = por %p109, %p110
    %s112 = ssub.s32 %s10, %s17
    %p113 = scmp.eq.s32.totalorder %s112, 0
    %s115 = sadd.s32 %s114, 1
    %s116 = scalar_select %p113, %s114, %s115
    %p119 = pneg %p113
    %p120 = scmp.eq.s32.totalorder %s10, 1
    %p121 = por %p119, %p120
    %p122 = scmp.ne.s32.totalorder %s114, %s117
    %p123 = scmp.eq.s32.totalorder %s10, 0
    %p124 = por %p122, %p123
    %p125 = scmp.ne.s32.totalorder %s114, %s117
    %p126 = scmp.eq.s32.totalorder %s15, 1
    %p127 = por %p125, %p126
    %p128 = scmp.ne.s32.totalorder %s117, %s118
    %p129 = scmp.eq.s32.totalorder %s15, 0
    %p130 = por %p128, %p129
    %p131 = scmp.ne.s32.totalorder %s117, %s118
    %p132 = scmp.eq.s32.totalorder %s16, 1
    %p133 = por %p131, %p132
    %p135 = scmp.ne.s32.totalorder %s118, %s134
    %p136 = scmp.eq.s32.totalorder %s16, 0
    %p137 = por %p135, %p136
    %p138 = scmp.le.s32.totalorder 1, %s10
    %p139 = scmp.lt.s32.totalorder %s10, 3
    %p140 = pnand %p138, %p139
    %p141 = pneg %p140
    // Predicated region
    $region9: #{vit_forward.10} parent=5 // pred_check
      _
    $region10: #{vit_forward.10} parent=5 // pred_check_branch
      %143 = sbr.rel (%p140) target = $region12
    $region11: #{vit_forward.10} parent=5 // pred_region
      %s144 = ssub.s32 %s10, 1
      // Predicated region
      $region13: #{vit_forward.10} parent=11 // pred_check
        %p145 = pneg %p57
      $region14: #{vit_forward.10} parent=11 // pred_check_branch
        %147 = sbr.rel (%p145) target = $region16
      $region15: #{vit_forward.10} parent=11 // pred_region
        _
      $region16: #{vit_forward.10} parent=11 // pred_fallthru
        _
      // Predicated region
      $region17: #{vit_forward.10} parent=11 // pred_check
        %p148 = pneg %p78
      $region18: #{vit_forward.10} parent=11 // pred_check_branch
        %150 = sbr.rel (%p148) target = $region20
      $region19: #{vit_forward.10} parent=11 // pred_region
        _
      $region20: #{vit_forward.10} parent=11 // pred_fallthru
        _
    $region12: #{vit_forward.10} parent=5 // pred_fallthru
      _
    %p151 = scmp.lt.s32.totalorder %s10, 2
    // Predicated region
    $region21: #{vit_forward.10} parent=5 // pred_check
      %p152 = pneg %p151
    $region22: #{vit_forward.10} parent=5 // pred_check_branch
      %154 = sbr.rel (%p152) target = $region24
    $region23: #{vit_forward.10} parent=5 // pred_region
      // Predicated region
      $region25: #{vit_forward.10} parent=23 // pred_check
        %p155 = pneg %p30
      $region26: #{vit_forward.10} parent=23 // pred_check_branch
        %157 = sbr.rel (%p155) target = $region28
      $region27: #{vit_forward.10} parent=23 // pred_region
        %p158 = scmp.lt.s32.totalorder %s10, 1
        %s159 = scalar_select %p158, %s10, 1
        %s160 = smul.addr %s159, 6
        %s161 = smul.addr %s160, 4
        %s162 = scalar_lea.vmem %s0, %s161
      $region28: #{vit_forward.10} parent=23 // pred_fallthru
        _
      // Predicated region
      $region29: #{vit_forward.10} parent=23 // pred_check
        %p163 = pneg %p98
      $region30: #{vit_forward.10} parent=23 // pred_check_branch
        %165 = sbr.rel (%p163) target = $region32
      $region31: #{vit_forward.10} parent=23 // pred_region
        %p166 = scmp.lt.s32.totalorder %s10, 1
        %s167 = scalar_select %p166, %s10, 1
        %s168 = smul.addr %s167, 2
        %s169 = smul.addr %s168, 8
        %s170 = scalar_lea.vmem %s3, %s169
      $region32: #{vit_forward.10} parent=23 // pred_fallthru
        _
    $region24: #{vit_forward.10} parent=5 // pred_fallthru
      _
    %p171 = scmp.le.s32.totalorder 1, %s10
    %p172 = scmp.lt.s32.totalorder %s10, 3
    %p173 = pnand %p171, %p172
    %p174 = pneg %p173
    // Predicated region
    $region33: #{vit_forward.10} parent=5 // pred_check
      _
    $region34: #{vit_forward.10} parent=5 // pred_check_branch
      %176 = sbr.rel (%p173) target = $region36
    $region35: #{vit_forward.10} parent=5 // pred_region
      %s177 = ssub.s32 %s10, 1
      %p178 = scmp.lt.s32.totalorder %s15, 1
      %s179 = scalar_select %p178, %s15, 1
      %s180 = smul.addr %s179, 6
      %s181 = smul.addr %s180, 4
      %s182 = scalar_lea.vmem %s0, %s181
      %p183 = pneg %p36
      %p184 = pneg %p33
      %p185 = pneg %p57
      %p186 = pneg %p54
      %p187 = pneg %p78
      %p188 = pneg %p75
      %p189 = scmp.lt.s32.totalorder %s15, 1
      %s190 = scalar_select %p189, %s15, 1
      %s191 = smul.addr %s190, 2
      %s192 = smul.addr %s191, 8
      %s193 = scalar_lea.vmem %s3, %s192
      %p194 = pneg %p104
      %p195 = pneg %p101
      %p196 = pneg %p130
      %p197 = pneg %p127
      %p198 = scmp.lt.s32.totalorder %s15, 1
      %s199 = scalar_select %p198, %s15, 1
      %s200 = smul.addr %s199, 2
      %s201 = smul.addr %s200, 8
      %s202 = scalar_lea.vmem %s4, %s201
      %p203 = scmp.lt.s32.totalorder %s15, 1
      %s204 = scalar_select %p203, %s15, 1
      %s205 = smul.addr %s204, 6
      %s206 = smul.addr %s205, 4
      %s207 = scalar_lea.vmem %s0, %s206
      %p208 = scmp.lt.s32.totalorder %s15, 1
      %s209 = scalar_select %p208, %s15, 1
      %s210 = smul.addr %s209, 2
      %s211 = smul.addr %s210, 8
      %s212 = scalar_lea.vmem %s3, %s211
      %p213 = scmp.lt.s32.totalorder %s15, 1
      %s214 = scalar_select %p213, %s15, 1
      %s215 = smul.addr %s214, 2
      %s216 = smul.addr %s215, 8
      %s217 = scalar_lea.vmem %s4, %s216
      %v219 = vld [vmem:[%s207] sm:$0xff]
      %v220 = vld [vmem:[%s207 + $0x8] sm:$0xf]
      %v221 = vld [vmem:[%s207 + $0xc] sm:$0xff]
      %v222 = vld [vmem:[%s207 + $0x14] sm:$0xf]
      %v225 = vunpack.c.l.b16 %v219
      %v226 = vunpack.c.l.b16 %v221
      %v227 = vpack.c.b16 %v226, %v225
      %v228 = vunpack.c.h.b16 %v219
      %v229 = vunpack.c.h.b16 %v221
      %v230 = vpack.c.b16 %v229, %v228
      %vm231 = vcmask 261120
      %v233 = vsel %vm231, %v227, 0
      %v236 = vsel %vm231, %v230, 0
      %238 = vmatpush.bf16.xpose.msra.mxu0 0
      %239 = vmatpush.bf16.xpose.msra.mxu0 0
      %240 = vmatpush.bf16.xpose.msra.mxu0 0
      %241 = vmatpush.bf16.xpose.msra.mxu0 0
      %242 = vmatpush.bf16.xpose.msra.mxu0 0
      %243 = vmatpush.bf16.xpose.msra.mxu0 0
      %244 = vmatpush.bf16.xpose.msra.mxu0 0
      %245 = vmatpush.bf16.xpose.msra.mxu0 %v236
      %246 = vmatmul.bf16.gmra.mxu0 %v233
      %v247 = vpop.f32.mrf.mxu0
      %v248 = vadd.f32 0.0, %v247
      %v249 = vpop.f32.mrf.mxu0
      %v250 = vadd.f32 0.0, %v249
      %251 = vdwg.mxu0
      %v252 = vmul.f32 %v248, 0.17677669
      %v253 = vmul.f32 %v250, 0.17677669
      %vm254 = vcmask 130048
      %v255 = vsel %vm254, %v252, -inf
      %256 = vmax.xlane.f32.xlu0 %v255
      %v257 = vpop.xlane.xlu0 %256
      %v258 = vsel %vm254, %v253, -inf
      %259 = vmax.xlane.f32.xlu0 %v258
      %v260 = vpop.xlane.xlu0 %259
      %v261 = vsub.f32 %v252, %v257
      %v262 = vsub.f32 %v253, %v260
      %v263 = vmul.f32 %v261, 1.442695
      %v264 = vpow.pop %v263
      %v265 = vmul.f32 %v262, 1.442695
      %v266 = vpow.pop %v265
      %v267 = vsel %vm254, %v264, 0.0
      %268 = vadd.xlane.f32.xlu0 %v267
      %v269 = vpop.xlane.xlu0 %268
      %v270 = vsel %vm254, %v266, 0.0
      %271 = vadd.xlane.f32.xlu0 %v270
      %v272 = vpop.xlane.xlu0 %271
      %v273 = vrcp.pop %v269
      %v274 = vrcp.pop %v272
      %v275 = vmul.f32 %v264, %v273
      %v276 = vmul.f32 %v266, %v274
      %v277 = vpack.c.bf16 %v276, %v275
      %v280 = vunpack.c.l.b16 %v220
      %v281 = vunpack.c.l.b16 %v222
      %v282 = vpack.c.b16 %v281, %v280
      %v285 = vsel %vm254, %v277, 0
      %287 = vmatpush.bf16.msra.mxu0 0
      %288 = vmatpush.bf16.msra.mxu0 0
      %289 = vmatpush.bf16.msra.mxu0 0
      %290 = vmatpush.bf16.msra.mxu0 0
      %291 = vmatpush.bf16.msra.mxu0 0
      %292 = vmatpush.bf16.msra.mxu0 0
      %293 = vmatpush.bf16.msra.mxu0 0
      %294 = vmatpush.bf16.msra.mxu0 %v282
      %295 = vmatmul.bf16.gmra.mxu0 %v285
      %v296 = vpop.f32.mrf.mxu0
      %v297 = vadd.f32 0.0, %v296
      %v298 = vpop.f32.mrf.mxu0
      %v299 = vadd.f32 0.0, %v298
      %300 = vdwg.mxu0
      %301 = vst.msk [vmem:[#allocation2] sm:$0xff] %vm231, %v297
      %302 = vst.msk [vmem:[#allocation2 + $0x8] sm:$0xff] %vm231, %v299
      %303 = vrot.lane.b32.xlu0 %v227, 96
      %v304 = vpop.permute.xlu0 %303
      %305 = vrot.lane.b32.xlu0 %v230, 96
      %v306 = vpop.permute.xlu0 %305
      %v308 = vsel %vm231, %v304, 0
      %v311 = vsel %vm231, %v306, 0
      %313 = vmatpush.bf16.xpose.msra.mxu0 0
      %314 = vmatpush.bf16.xpose.msra.mxu0 0
      %315 = vmatpush.bf16.xpose.msra.mxu0 0
      %316 = vmatpush.bf16.xpose.msra.mxu0 0
      %317 = vmatpush.bf16.xpose.msra.mxu0 0
      %318 = vmatpush.bf16.xpose.msra.mxu0 0
      %319 = vmatpush.bf16.xpose.msra.mxu0 0
      %320 = vmatpush.bf16.xpose.msra.mxu0 %v311
      %321 = vmatmul.bf16.gmra.mxu0 %v308
      %v322 = vpop.f32.mrf.mxu0
      %v323 = vadd.f32 0.0, %v322
      %v324 = vpop.f32.mrf.mxu0
      %v325 = vadd.f32 0.0, %v324
      %326 = vdwg.mxu0
      %v327 = vmul.f32 %v323, 0.17677669
      %v328 = vmul.f32 %v325, 0.17677669
      %v329 = vsel %vm254, %v327, -inf
      %330 = vmax.xlane.f32.xlu0 %v329
      %v331 = vpop.xlane.xlu0 %330
      %v332 = vsel %vm254, %v328, -inf
      %333 = vmax.xlane.f32.xlu0 %v332
      %v334 = vpop.xlane.xlu0 %333
      %v335 = vsub.f32 %v327, %v331
      %v336 = vsub.f32 %v328, %v334
      %v337 = vmul.f32 %v335, 1.442695
      %v338 = vpow.pop %v337
      %v339 = vmul.f32 %v336, 1.442695
      %v340 = vpow.pop %v339
      %v341 = vsel %vm254, %v338, 0.0
      %342 = vadd.xlane.f32.xlu0 %v341
      %v343 = vpop.xlane.xlu0 %342
      %v344 = vsel %vm254, %v340, 0.0
      %345 = vadd.xlane.f32.xlu0 %v344
      %v346 = vpop.xlane.xlu0 %345
      %v347 = vrcp.pop %v343
      %v348 = vrcp.pop %v346
      %v349 = vmul.f32 %v338, %v347
      %v350 = vmul.f32 %v340, %v348
      %v351 = vpack.c.bf16 %v350, %v349
      %352 = vrot.lane.b32.xlu0 %v282, 96
      %v353 = vpop.permute.xlu0 %352
      %v356 = vsel %vm254, %v351, 0
      %358 = vmatpush.bf16.msra.mxu0 0
      %359 = vmatpush.bf16.msra.mxu0 0
      %360 = vmatpush.bf16.msra.mxu0 0
      %361 = vmatpush.bf16.msra.mxu0 0
      %362 = vmatpush.bf16.msra.mxu0 0
      %363 = vmatpush.bf16.msra.mxu0 0
      %364 = vmatpush.bf16.msra.mxu0 0
      %365 = vmatpush.bf16.msra.mxu0 %v353
      %366 = vmatmul.bf16.gmra.mxu0 %v356
      %v367 = vpop.f32.mrf.mxu0
      %v368 = vadd.f32 0.0, %v367
      %v369 = vpop.f32.mrf.mxu0
      %v370 = vadd.f32 0.0, %v369
      %371 = vdwg.mxu0
      %374 = vrot.lane.b32.xlu0 %v368, 32
      %v375 = vpop.permute.xlu0 %374
      %376 = vrot.lane.b32.xlu0 %v370, 32
      %v377 = vpop.permute.xlu0 %376
      %vm380 = vcmask 523520
      %381 = vst.msk [vmem:[#allocation2] sm:$0xff] %vm380, %v375
      %382 = vst.msk [vmem:[#allocation2 + $0x8] sm:$0xff] %vm380, %v377
      %383 = vrot.lane.b32.xlu0 %v227, 64
      %v384 = vpop.permute.xlu0 %383
      %385 = vrot.lane.b32.xlu0 %v230, 64
      %v386 = vpop.permute.xlu0 %385
      %v388 = vsel %vm231, %v384, 0
      %v391 = vsel %vm231, %v386, 0
      %393 = vmatpush.bf16.xpose.msra.mxu0 0
      %394 = vmatpush.bf16.xpose.msra.mxu0 0
      %395 = vmatpush.bf16.xpose.msra.mxu0 0
      %396 = vmatpush.bf16.xpose.msra.mxu0 0
      %397 = vmatpush.bf16.xpose.msra.mxu0 0
      %398 = vmatpush.bf16.xpose.msra.mxu0 0
      %399 = vmatpush.bf16.xpose.msra.mxu0 0
      %400 = vmatpush.bf16.xpose.msra.mxu0 %v391
      %401 = vmatmul.bf16.gmra.mxu0 %v388
      %v402 = vpop.f32.mrf.mxu0
      %v403 = vadd.f32 0.0, %v402
      %v404 = vpop.f32.mrf.mxu0
      %v405 = vadd.f32 0.0, %v404
      %406 = vdwg.mxu0
      %v407 = vmul.f32 %v403, 0.17677669
      %v408 = vmul.f32 %v405, 0.17677669
      %v409 = vsel %vm254, %v407, -inf
      %410 = vmax.xlane.f32.xlu0 %v409
      %v411 = vpop.xlane.xlu0 %410
      %v412 = vsel %vm254, %v408, -inf
      %413 = vmax.xlane.f32.xlu0 %v412
      %v414 = vpop.xlane.xlu0 %413
      %v415 = vsub.f32 %v407, %v411
      %v416 = vsub.f32 %v408, %v414
      %v417 = vmul.f32 %v415, 1.442695
      %v418 = vpow.pop %v417
      %v419 = vmul.f32 %v416, 1.442695
      %v420 = vpow.pop %v419
      %v421 = vsel %vm254, %v418, 0.0
      %422 = vadd.xlane.f32.xlu0 %v421
      %v423 = vpop.xlane.xlu0 %422
      %v424 = vsel %vm254, %v420, 0.0
      %425 = vadd.xlane.f32.xlu0 %v424
      %v426 = vpop.xlane.xlu0 %425
      %v427 = vrcp.pop %v423
      %v428 = vrcp.pop %v426
      %v429 = vmul.f32 %v418, %v427
      %v430 = vmul.f32 %v420, %v428
      %v431 = vpack.c.bf16 %v430, %v429
      %432 = vrot.lane.b32.xlu0 %v282, 64
      %v433 = vpop.permute.xlu0 %432
      %v436 = vsel %vm254, %v431, 0
      %438 = vmatpush.bf16.msra.mxu0 0
      %439 = vmatpush.bf16.msra.mxu0 0
      %440 = vmatpush.bf16.msra.mxu0 0
      %441 = vmatpush.bf16.msra.mxu0 0
      %442 = vmatpush.bf16.msra.mxu0 0
      %443 = vmatpush.bf16.msra.mxu0 0
      %444 = vmatpush.bf16.msra.mxu0 0
      %445 = vmatpush.bf16.msra.mxu0 %v433
      %446 = vmatmul.bf16.gmra.mxu0 %v436
      %v447 = vpop.f32.mrf.mxu0
      %v448 = vadd.f32 0.0, %v447
      %v449 = vpop.f32.mrf.mxu0
      %v450 = vadd.f32 0.0, %v449
      %451 = vdwg.mxu0
      %454 = vrot.lane.b32.xlu0 %v448, 64
      %v455 = vpop.permute.xlu0 %454
      %456 = vrot.lane.b32.xlu0 %v450, 64
      %v457 = vpop.permute.xlu0 %456
      %vm460 = vcmask 785920
      %461 = vst.msk [vmem:[#allocation2] sm:$0xff] %vm460, %v455
      %462 = vst.msk [vmem:[#allocation2 + $0x8] sm:$0xff] %vm460, %v457
      %463 = vrot.lane.b32.xlu0 %v227, 32
      %v464 = vpop.permute.xlu0 %463
      %465 = vrot.lane.b32.xlu0 %v230, 32
      %v466 = vpop.permute.xlu0 %465
      %v468 = vsel %vm231, %v464, 0
      %v471 = vsel %vm231, %v466, 0
      %473 = vmatpush.bf16.xpose.msra.mxu0 0
      %474 = vmatpush.bf16.xpose.msra.mxu0 0
      %475 = vmatpush.bf16.xpose.msra.mxu0 0
      %476 = vmatpush.bf16.xpose.msra.mxu0 0
      %477 = vmatpush.bf16.xpose.msra.mxu0 0
      %478 = vmatpush.bf16.xpose.msra.mxu0 0
      %479 = vmatpush.bf16.xpose.msra.mxu0 0
      %480 = vmatpush.bf16.xpose.msra.mxu0 %v471
      %481 = vmatmul.bf16.gmra.mxu0 %v468
      %v482 = vpop.f32.mrf.mxu0
      %v483 = vadd.f32 0.0, %v482
      %v484 = vpop.f32.mrf.mxu0
      %v485 = vadd.f32 0.0, %v484
      %486 = vdwg.mxu0
      %v487 = vmul.f32 %v483, 0.17677669
      %v488 = vmul.f32 %v485, 0.17677669
      %v489 = vsel %vm254, %v487, -inf
      %490 = vmax.xlane.f32.xlu0 %v489
      %v491 = vpop.xlane.xlu0 %490
      %v492 = vsel %vm254, %v488, -inf
      %493 = vmax.xlane.f32.xlu0 %v492
      %v494 = vpop.xlane.xlu0 %493
      %v495 = vsub.f32 %v487, %v491
      %v496 = vsub.f32 %v488, %v494
      %v497 = vmul.f32 %v495, 1.442695
      %v498 = vpow.pop %v497
      %v499 = vmul.f32 %v496, 1.442695
      %v500 = vpow.pop %v499
      %v501 = vsel %vm254, %v498, 0.0
      %502 = vadd.xlane.f32.xlu0 %v501
      %v503 = vpop.xlane.xlu0 %502
      %v504 = vsel %vm254, %v500, 0.0
      %505 = vadd.xlane.f32.xlu0 %v504
      %v506 = vpop.xlane.xlu0 %505
      %v507 = vrcp.pop %v503
      %v508 = vrcp.pop %v506
      %v509 = vmul.f32 %v498, %v507
      %v510 = vmul.f32 %v500, %v508
      %v511 = vpack.c.bf16 %v510, %v509
      %512 = vrot.lane.b32.xlu0 %v282, 32
      %v513 = vpop.permute.xlu0 %512
      %v516 = vsel %vm254, %v511, 0
      %518 = vmatpush.bf16.msra.mxu0 0
      %519 = vmatpush.bf16.msra.mxu0 0
      %520 = vmatpush.bf16.msra.mxu0 0
      %521 = vmatpush.bf16.msra.mxu0 0
      %522 = vmatpush.bf16.msra.mxu0 0
      %523 = vmatpush.bf16.msra.mxu0 0
      %524 = vmatpush.bf16.msra.mxu0 0
      %525 = vmatpush.bf16.msra.mxu0 %v513
      %526 = vmatmul.bf16.gmra.mxu0 %v516
      %v527 = vpop.f32.mrf.mxu0
      %v528 = vadd.f32 0.0, %v527
      %v529 = vpop.f32.mrf.mxu0
      %v530 = vadd.f32 0.0, %v529
      %531 = vdwg.mxu0
      %534 = vrot.lane.b32.xlu0 %v528, 96
      %v535 = vpop.permute.xlu0 %534
      %536 = vrot.lane.b32.xlu0 %v530, 96
      %v537 = vpop.permute.xlu0 %536
      %vm540 = vcmask 1048320
      %541 = vst.msk [vmem:[#allocation2] sm:$0xff] %vm540, %v535
      %542 = vst.msk [vmem:[#allocation2 + $0x8] sm:$0xff] %vm540, %v537
      %v543 = vld [vmem:[#allocation2] sm:$0xff]
      %v544 = vld [vmem:[#allocation2 + $0x8] sm:$0xff]
      %v545 = vpack.c.bf16 %v544, %v543
      %v546 = vld [vmem:[%s1] sm:$0xf]
      %v547 = vld [vmem:[%s1 + $0x4] sm:$0xf]
      %v548 = vld [vmem:[%s1 + $0x8] sm:$0xf]
      %v549 = vld [vmem:[%s1 + $0xc] sm:$0xf]
      %v550 = vld [vmem:[%s1 + $0x10] sm:$0xf]
      %v551 = vld [vmem:[%s1 + $0x14] sm:$0xf]
      %v552 = vld [vmem:[%s1 + $0x18] sm:$0xf]
      %v553 = vld [vmem:[%s1 + $0x1c] sm:$0xf]
      %v554 = vld [vmem:[%s1 + $0x20] sm:$0xf]
      %v555 = vld [vmem:[%s1 + $0x24] sm:$0xf]
      %v556 = vld [vmem:[%s1 + $0x28] sm:$0xf]
      %v557 = vld [vmem:[%s1 + $0x2c] sm:$0xf]
      %v558 = vld [vmem:[%s1 + $0x30] sm:$0xf]
      %v559 = vld [vmem:[%s1 + $0x34] sm:$0xf]
      %v560 = vld [vmem:[%s1 + $0x38] sm:$0xf]
      %v561 = vld [vmem:[%s1 + $0x3c] sm:$0xf]
      %v562 = vld [vmem:[%s2] sm:$0x1]
      %v564 = vperm.slane %v562, 0
      %v582 = vunpack.c.l.b16 %v546
      %v583 = vunpack.c.l.b16 %v547
      %v584 = vunpack.c.l.b16 %v548
      %v585 = vunpack.c.l.b16 %v549
      %v586 = vunpack.c.l.b16 %v550
      %v587 = vunpack.c.l.b16 %v551
      %v588 = vunpack.c.l.b16 %v552
      %v589 = vunpack.c.l.b16 %v553
      %v590 = vunpack.c.l.b16 %v554
      %v591 = vunpack.c.l.b16 %v555
      %v592 = vunpack.c.l.b16 %v556
      %v593 = vunpack.c.l.b16 %v557
      %v594 = vunpack.c.l.b16 %v558
      %v595 = vunpack.c.l.b16 %v559
      %v596 = vunpack.c.l.b16 %v560
      %v597 = vunpack.c.l.b16 %v561
      %v598 = vpack.c.b16 %v583, %v582
      %v599 = vpack.c.b16 %v585, %v584
      %v600 = vpack.c.b16 %v587, %v586
      %v601 = vpack.c.b16 %v589, %v588
      %v602 = vpack.c.b16 %v591, %v590
      %v603 = vpack.c.b16 %v593, %v592
      %v604 = vpack.c.b16 %v595, %v594
      %v605 = vpack.c.b16 %v597, %v596
      %614 = vmatpush.bf16.msra.mxu0 %v605
      %615 = vmatpush.bf16.msra.mxu0 %v604
      %616 = vmatpush.bf16.msra.mxu0 %v603
      %617 = vmatpush.bf16.msra.mxu0 %v602
      %618 = vmatpush.bf16.msra.mxu0 %v601
      %619 = vmatpush.bf16.msra.mxu0 %v600
      %620 = vmatpush.bf16.msra.mxu0 %v599
      %621 = vmatpush.bf16.msra.mxu0 %v598
      %622 = vmatmul.bf16.gmra.mxu0 %v545
      %v623 = vpop.f32.mrf.mxu0
      %v624 = vadd.f32 %v564, %v623
      %v625 = vpop.f32.mrf.mxu0
      %v626 = vadd.f32 %v564, %v625
      %627 = vdwg.mxu0
      %v628 = vld [vmem:[%s212] sm:$0xff]
      %v629 = vld [vmem:[%s212 + $0x8] sm:$0xff]
      %v630 = vadd.f32 %v624, %v628
      %v631 = vadd.f32 %v626, %v629
      %632 = vst [vmem:[%s217] sm:$0xff] %v630
      %633 = vst [vmem:[%s217 + $0x8] sm:$0xff] %v631
      %p634 = scmp.lt.s32.totalorder %s15, 1
      %s635 = scalar_select %p634, %s15, 1
      %s636 = smul.addr %s635, 2
      %s637 = smul.addr %s636, 8
      %s638 = scalar_lea.vmem %s4, %s637
      // Predicated region
      $region37: #{vit_forward.10} parent=35 // pred_check
        %p639 = pneg %p127
      $region38: #{vit_forward.10} parent=35 // pred_check_branch
        %641 = sbr.rel (%p639) target = $region40
      $region39: #{vit_forward.10} parent=35 // pred_region
        _
      $region40: #{vit_forward.10} parent=35 // pred_fallthru
        _
    $region36: #{vit_forward.10} parent=5 // pred_fallthru
      _
    %p642 = scmp.le.s32.totalorder 2, %s10
    // Predicated region
    $region41: #{vit_forward.10} parent=5 // pred_check
      %p643 = pneg %p642
    $region42: #{vit_forward.10} parent=5 // pred_check_branch
      %645 = sbr.rel (%p643) target = $region44
    $region43: #{vit_forward.10} parent=5 // pred_region
      %s646 = ssub.s32 %s10, 2
      // Predicated region
      $region45: #{vit_forward.10} parent=43 // pred_check
        %p647 = pneg %p133
      $region46: #{vit_forward.10} parent=43 // pred_check_branch
        %649 = sbr.rel (%p647) target = $region48
      $region47: #{vit_forward.10} parent=43 // pred_region
        %p650 = scmp.lt.s32.totalorder %s16, 1
        %s651 = scalar_select %p650, %s16, 1
        %s652 = smul.addr %s651, 2
        %s653 = smul.addr %s652, 8
        %s654 = scalar_lea.vmem %s4, %s653
      $region48: #{vit_forward.10} parent=43 // pred_fallthru
        _
    $region44: #{vit_forward.10} parent=5 // pred_fallthru
      _
  $region6: #{vit_forward.10} parent=0 // loop_footer
    %s14 = sadd.s32 1, %s10
  $region7: #{vit_forward.10} parent=0 // loop_footer_branch
    %9 = sbr.rel target = $region3
  $region8: #{vit_forward.10} parent=0 // loop_exit
    _

// kernel: vit_forward.15
$region0: #{vit_forward.15}
  #allocation0 [shape = 'u32[]', space=smem, size = 0x4, offset = 0x4, fixed_abs, tag = 'smem constant byte address 0x4 - core index']
  #allocation1 [shape = 'u32[72,128]{1,0:T(1,128)}', space=vmem, size = 0x9000, scoped, tag = 'internal scratch']
  %s0 = inlined_call_operand.vmem [shape: f32[2,16,128], index: 0, kind: input, shape index: {}]
  %s1 = inlined_call_operand.vmem [shape: bf16[128,128], index: 1, kind: input, shape index: {}]
  %s2 = inlined_call_operand.vmem [shape: f32[1,128], index: 2, kind: input, shape index: {}]
  %s3 = inlined_call_operand.vmem [shape: bf16[128,128], index: 3, kind: input, shape index: {}]
  %s4 = inlined_call_operand.vmem [shape: f32[1,128], index: 4, kind: input, shape index: {}]
  %s5 = inlined_call_operand.hbm [shape: f32[2,128], index: 5, kind: output, shape index: {}]
  %s6 = sld [smem:[#allocation0]]
  $region30: #{vit_forward.15} parent=0
    _
  %s8 = ssub.s32 1, %s6
  %s9 = scalar_select 0, %s8, %s6
  $region1: #{vit_forward.15} parent=0
    #allocation2 [shape = 'u8[1024]{0}', space=vmem, size = 0x400, scoped, tag = 'output window, operand 0, single buffered']
    #allocation3 [shape = 's32[1]{0}', space=sflag, size = 0x4, scoped, tag = 'scoped memory for vit_forward.15']
    %10 = vsyncpa [#allocation3], 0
    // Predicated region
    $region2: #{vit_forward.15} parent=1 // pred_check
      _
    $region3: #{vit_forward.15} parent=1 // pred_check_branch
      %12 = sbr.rel (0) target = $region5
    $region4: #{vit_forward.15} parent=1 // pred_region
      _
    $region5: #{vit_forward.15} parent=1 // pred_fallthru
      _
    // Predicated region
    $region6: #{vit_forward.15} parent=1 // pred_check
      _
    $region7: #{vit_forward.15} parent=1 // pred_check_branch
      %14 = sbr.rel (0) target = $region9
    $region8: #{vit_forward.15} parent=1 // pred_region
      _
    $region9: #{vit_forward.15} parent=1 // pred_fallthru
      _
    // Predicated region
    $region10: #{vit_forward.15} parent=1 // pred_check
      _
    $region11: #{vit_forward.15} parent=1 // pred_check_branch
      %16 = sbr.rel (0) target = $region13
    $region12: #{vit_forward.15} parent=1 // pred_region
      _
    $region13: #{vit_forward.15} parent=1 // pred_fallthru
      _
    // Predicated region
    $region14: #{vit_forward.15} parent=1 // pred_check
      _
    $region15: #{vit_forward.15} parent=1 // pred_check_branch
      %18 = sbr.rel (0) target = $region17
    $region16: #{vit_forward.15} parent=1 // pred_region
      _
    $region17: #{vit_forward.15} parent=1 // pred_fallthru
      _
    // Predicated region
    $region18: #{vit_forward.15} parent=1 // pred_check
      _
    $region19: #{vit_forward.15} parent=1 // pred_check_branch
      %20 = sbr.rel (0) target = $region21
    $region20: #{vit_forward.15} parent=1 // pred_region
      _
    $region21: #{vit_forward.15} parent=1 // pred_fallthru
      _
    %v21 = vld [vmem:[%s0] sm:$0xff]
    %v22 = vld [vmem:[%s0 + $0x8] sm:$0xff]
    %v23 = vld [vmem:[%s0 + $0x10] sm:$0xff]
    %v24 = vld [vmem:[%s0 + $0x18] sm:$0xff]
    %v25 = vadd.f32 %v21, %v22
    %v26 = vrot.slane %v25, 4
    %v27 = vadd.f32 %v25, %v26
    %v28 = vrot.slane %v27, 2
    %v29 = vadd.f32 %v27, %v28
    %v30 = vrot.slane %v29, 1
    %v31 = vadd.f32 %v29, %v30
    %v32 = vadd.f32 %v23, %v24
    %v33 = vrot.slane %v32, 4
    %v34 = vadd.f32 %v32, %v33
    %v35 = vrot.slane %v34, 2
    %v36 = vadd.f32 %v34, %v35
    %v37 = vrot.slane %v36, 1
    %v38 = vadd.f32 %v36, %v37
    %v39 = vrcp.pop 16.0
    %v40 = vmul.f32 16.0, %v39
    %v41 = vsub.f32 1.0, %v40
    %v42 = vmul.f32 %v39, %v41
    %v43 = vadd.f32 %v39, %v42
    %vm44 = vweird.f32 %v39
    %v45 = vsel %vm44, %v39, %v43
    %v46 = vmul.f32 %v31, %v45
    %v47 = vmul.f32 %v38, %v45
    %v48 = vpack.c.bf16 %v46, %v46
    %v49 = vpack.c.bf16 %v47, %v47
    %v50 = vld [vmem:[%s1] sm:$0xf]
    %v51 = vld [vmem:[%s1 + $0x4] sm:$0xf]
    %v52 = vld [vmem:[%s1 + $0x8] sm:$0xf]
    %v53 = vld [vmem:[%s1 + $0xc] sm:$0xf]
    %v54 = vld [vmem:[%s1 + $0x10] sm:$0xf]
    %v55 = vld [vmem:[%s1 + $0x14] sm:$0xf]
    %v56 = vld [vmem:[%s1 + $0x18] sm:$0xf]
    %v57 = vld [vmem:[%s1 + $0x1c] sm:$0xf]
    %v58 = vld [vmem:[%s1 + $0x20] sm:$0xf]
    %v59 = vld [vmem:[%s1 + $0x24] sm:$0xf]
    %v60 = vld [vmem:[%s1 + $0x28] sm:$0xf]
    %v61 = vld [vmem:[%s1 + $0x2c] sm:$0xf]
    %v62 = vld [vmem:[%s1 + $0x30] sm:$0xf]
    %v63 = vld [vmem:[%s1 + $0x34] sm:$0xf]
    %v64 = vld [vmem:[%s1 + $0x38] sm:$0xf]
    %v65 = vld [vmem:[%s1 + $0x3c] sm:$0xf]
    %v66 = vld [vmem:[%s2] sm:$0x1]
    %v68 = vperm.slane %v66, 0
    %v72 = vunpack.c.l.b16 %v48
    %v73 = vunpack.c.l.b16 %v49
    %vm74 = vcmask 1041409
    %v75 = vsel %vm74, %v73, %v72
    %v76 = vpack.c.b16 %v75, %v75
    %v94 = vunpack.c.l.b16 %v50
    %v95 = vunpack.c.l.b16 %v51
    %v96 = vunpack.c.l.b16 %v52
    %v97 = vunpack.c.l.b16 %v53
    %v98 = vunpack.c.l.b16 %v54
    %v99 = vunpack.c.l.b16 %v55
    %v100 = vunpack.c.l.b16 %v56
    %v101 = vunpack.c.l.b16 %v57
    %v102 = vunpack.c.l.b16 %v58
    %v103 = vunpack.c.l.b16 %v59
    %v104 = vunpack.c.l.b16 %v60
    %v105 = vunpack.c.l.b16 %v61
    %v106 = vunpack.c.l.b16 %v62
    %v107 = vunpack.c.l.b16 %v63
    %v108 = vunpack.c.l.b16 %v64
    %v109 = vunpack.c.l.b16 %v65
    %v110 = vpack.c.b16 %v95, %v94
    %v111 = vpack.c.b16 %v97, %v96
    %v112 = vpack.c.b16 %v99, %v98
    %v113 = vpack.c.b16 %v101, %v100
    %v114 = vpack.c.b16 %v103, %v102
    %v115 = vpack.c.b16 %v105, %v104
    %v116 = vpack.c.b16 %v107, %v106
    %v117 = vpack.c.b16 %v109, %v108
    %126 = vmatpush.bf16.msra.mxu0 %v117
    %127 = vmatpush.bf16.msra.mxu0 %v116
    %128 = vmatpush.bf16.msra.mxu0 %v115
    %129 = vmatpush.bf16.msra.mxu0 %v114
    %130 = vmatpush.bf16.msra.mxu0 %v113
    %131 = vmatpush.bf16.msra.mxu0 %v112
    %132 = vmatpush.bf16.msra.mxu0 %v111
    %133 = vmatpush.bf16.msra.mxu0 %v110
    %134 = vmatmul.bf16.gmra.mxu0 %v76
    %v135 = vpop.f32.mrf.mxu0
    %v136 = vadd.f32 %v68, %v135
    %v137 = vpop.f32.mrf.mxu0
    %138 = vdwg.mxu0
    %v139 = vmax.f32 %v136, 0.0
    %v140 = vpack.c.bf16 %v139, %v139
    %v141 = vld [vmem:[%s3] sm:$0xf]
    %v142 = vld [vmem:[%s3 + $0x4] sm:$0xf]
    %v143 = vld [vmem:[%s3 + $0x8] sm:$0xf]
    %v144 = vld [vmem:[%s3 + $0xc] sm:$0xf]
    %v145 = vld [vmem:[%s3 + $0x10] sm:$0xf]
    %v146 = vld [vmem:[%s3 + $0x14] sm:$0xf]
    %v147 = vld [vmem:[%s3 + $0x18] sm:$0xf]
    %v148 = vld [vmem:[%s3 + $0x1c] sm:$0xf]
    %v149 = vld [vmem:[%s3 + $0x20] sm:$0xf]
    %v150 = vld [vmem:[%s3 + $0x24] sm:$0xf]
    %v151 = vld [vmem:[%s3 + $0x28] sm:$0xf]
    %v152 = vld [vmem:[%s3 + $0x2c] sm:$0xf]
    %v153 = vld [vmem:[%s3 + $0x30] sm:$0xf]
    %v154 = vld [vmem:[%s3 + $0x34] sm:$0xf]
    %v155 = vld [vmem:[%s3 + $0x38] sm:$0xf]
    %v156 = vld [vmem:[%s3 + $0x3c] sm:$0xf]
    %v157 = vld [vmem:[%s4] sm:$0x1]
    %v159 = vperm.slane %v157, 0
    %v177 = vunpack.c.l.b16 %v141
    %v178 = vunpack.c.l.b16 %v142
    %v179 = vunpack.c.l.b16 %v143
    %v180 = vunpack.c.l.b16 %v144
    %v181 = vunpack.c.l.b16 %v145
    %v182 = vunpack.c.l.b16 %v146
    %v183 = vunpack.c.l.b16 %v147
    %v184 = vunpack.c.l.b16 %v148
    %v185 = vunpack.c.l.b16 %v149
    %v186 = vunpack.c.l.b16 %v150
    %v187 = vunpack.c.l.b16 %v151
    %v188 = vunpack.c.l.b16 %v152
    %v189 = vunpack.c.l.b16 %v153
    %v190 = vunpack.c.l.b16 %v154
    %v191 = vunpack.c.l.b16 %v155
    %v192 = vunpack.c.l.b16 %v156
    %v193 = vpack.c.b16 %v178, %v177
    %v194 = vpack.c.b16 %v180, %v179
    %v195 = vpack.c.b16 %v182, %v181
    %v196 = vpack.c.b16 %v184, %v183
    %v197 = vpack.c.b16 %v186, %v185
    %v198 = vpack.c.b16 %v188, %v187
    %v199 = vpack.c.b16 %v190, %v189
    %v200 = vpack.c.b16 %v192, %v191
    %209 = vmatpush.bf16.msra.mxu0 %v200
    %210 = vmatpush.bf16.msra.mxu0 %v199
    %211 = vmatpush.bf16.msra.mxu0 %v198
    %212 = vmatpush.bf16.msra.mxu0 %v197
    %213 = vmatpush.bf16.msra.mxu0 %v196
    %214 = vmatpush.bf16.msra.mxu0 %v195
    %215 = vmatpush.bf16.msra.mxu0 %v194
    %216 = vmatpush.bf16.msra.mxu0 %v193
    %217 = vmatmul.bf16.gmra.mxu0 %v140
    %v218 = vpop.f32.mrf.mxu0
    %v219 = vadd.f32 %v159, %v218
    %v220 = vpop.f32.mrf.mxu0
    %221 = vdwg.mxu0
    %222 = vst [vmem:[#allocation2] sm:$0x3] %v219
    // Predicated region
    $region22: #{vit_forward.15} parent=1 // pred_check
      _
    $region23: #{vit_forward.15} parent=1 // pred_check_branch
      %224 = sbr.rel (0) target = $region25
    $region24: #{vit_forward.15} parent=1 // pred_region
      %226 = vsyncadd [#allocation3], 0
      %s228 = sshll.u32 [#allocation2], 4
      %s229 = int_to_ptr.vmem [resolvable:$true] %s228
      %s230 = sshll.u32 %s5, 4
      %s231 = int_to_ptr.hbm [resolvable:$true] %s230
      %233 = dma.vmem_to_hbm [thread:$0]  %s229, 32, %s231, [#allocation3]
    $region25: #{vit_forward.15} parent=1 // pred_fallthru
      _
    // Predicated region
    $region26: #{vit_forward.15} parent=1 // pred_check
      _
    $region27: #{vit_forward.15} parent=1 // pred_check_branch
      %235 = sbr.rel (0) target = $region29
    $region28: #{vit_forward.15} parent=1 // pred_region
      %237 = dma.done [#allocation3], 32
    $region29: #{vit_forward.15} parent=1 // pred_fallthru
      _
    %238 = vsyncpa [#allocation3], 1

</llo_original>
